<compile_context>
chip_gen: v7x
topology: tpu7x:2x2x1
jax: 0.10.0
libtpu: 0.0.40
codegen_flags: <defaults>
</compile_context>

<pallas_src>
import functools
import math

import jax
import jax.numpy as jnp
from jax import lax
from jax.experimental import pallas as pl
from jax.experimental.pallas import tpu as pltpu


def _round_up(x: int, m: int) -> int:
    return ((x + m - 1) // m) * m


def _cdiv(a: int, b: int) -> int:
    return -(-a // b)


def _flash_attention_kernel(q_ref, k_ref, v_ref, o_ref,
                            m_sc, l_sc, acc_sc, *,
                            scale: float, kv_len: int, mask_kv: bool, tk: int,
                            exp_in_bf16: bool, mm_dtype):
    """One (batch, q-tile) with all heads; online softmax over key tiles.

    q_ref: (1, H, tq, D)   k_ref/v_ref: (1, H, tk, D)   o_ref: (1, tq, H*D)
    m_sc/l_sc: (H, tq, 1) f32   acc_sc: (H, tq, D) f32
    """
    ki = pl.program_id(2)

    @pl.when(ki == 0)
    def _init():
        m_sc[...] = jnp.full(m_sc.shape, -jnp.inf, dtype=m_sc.dtype)
        l_sc[...] = jnp.zeros(l_sc.shape, dtype=l_sc.dtype)
        acc_sc[...] = jnp.zeros(acc_sc.shape, dtype=acc_sc.dtype)

    # Fold 1/sqrt(D) into q: H*tq*D multiplies instead of H*tq*tk on scores.
    q = q_ref[0] * scale          # stays in input dtype (weak scalar promote)
    k = k_ref[0]
    v = v_ref[0]
    if mm_dtype is not None:      # optional bf16 matmuls for f32 inputs
        q = q.astype(mm_dtype)
        k = k.astype(mm_dtype)
        v = v.astype(mm_dtype)

    # (H, tq, tk) scores: batched matmul contracting last dims of both
    # operands (no materialized K transpose), f32 MXU accumulation.
    s = jnp.einsum("hqd,hkd->hqk", q, k, preferred_element_type=jnp.float32)

    if mask_kv:                   # only traced in when Nk % tk != 0
        col = ki * tk + lax.broadcasted_iota(jnp.int32, (1, 1, tk), 2)
        s = jnp.where(col < kv_len, s, -1e30)

    m_prev = m_sc[...]                                       # (H, tq, 1)
    m_new = jnp.maximum(m_prev, jnp.max(s, axis=-1, keepdims=True))
    alpha = jnp.exp(m_prev - m_new)                          # rescale factor

    x = s - m_new
    # bf16 exp roughly halves the EUP load on v6e/v7x; l/acc stay f32 below.
    p = jnp.exp(x.astype(jnp.bfloat16) if exp_in_bf16 else x)
    p_mm = p.astype(v.dtype)

    # Row-sum via the under-utilized MXU (p @ ones) instead of an XLU
    # cross-lane reduce over (H, tq, tk); accumulation is f32.
    ones_col = jnp.ones_like(v[:, :, :1])                    # (H, tk, 1)
    row_sum = jnp.einsum("hqk,hko->hqo", p_mm, ones_col,
                         preferred_element_type=jnp.float32)

    l_sc[...] = alpha * l_sc[...] + row_sum
    acc_sc[...] = alpha * acc_sc[...] + jnp.einsum(
        "hqk,hkd->hqd", p_mm, v, preferred_element_type=jnp.float32)
    m_sc[...] = m_new

    @pl.when(ki == pl.num_programs(2) - 1)
    def _finalize():
        # Exact reciprocal: runs once per q tile so its cost is amortized.
        inv_l = 1.0 / l_sc[...]
        # Cast to the output dtype BEFORE the lane-dim head merge so the
        # relayout + store move half the bytes (for bf16 outputs).
        out = (acc_sc[...] * inv_l).astype(o_ref.dtype)       # (H, tq, D)
        num_heads = out.shape[0]
        merged = jnp.concatenate([out[h] for h in range(num_heads)], axis=-1)
        o_ref[0] = merged                                     # lane-dense (tq, H*D)


def _xla_attention(q, k, v, num_heads):
    """Plain-XLA fallback for shapes below the TPU architecture floor."""
    b, n_q, c = q.shape
    d = c // num_heads

    def split(x):
        return x.reshape(b, -1, num_heads, d).transpose(0, 2, 1, 3)

    qh, kh, vh = split(q), split(k), split(v)
    attn = jnp.einsum("bhqd,bhkd->bhqk", qh, kh,
                      preferred_element_type=jnp.float32,
                      precision=lax.Precision.HIGHEST) / math.sqrt(d)
    attn = jax.nn.softmax(attn, axis=-1)
    out = jnp.einsum("bhqk,bhkd->bhqd", attn.astype(vh.dtype), vh,
                     preferred_element_type=jnp.float32,
                     precision=lax.Precision.HIGHEST)
    return out.transpose(0, 2, 1, 3).reshape(b, n_q, c).astype(q.dtype)


def attention_forward(q, k, v, *, embedding_dim: int, num_heads: int,
                      downsample_rate: int = 1,
                      q_tile: int = 256, k_tile: int = 256,
                      exp_in_bf16=None, matmul_in_bf16: bool = False,
                      kv_buffer_count: int = 2,
                      vmem_limit_bytes: int = 48 * 1024 * 1024,
                      use_pallas=None):
    """JAX/Pallas equivalent of Attention.forward (q, k, v already projected)."""
    internal_dim = embedding_dim // downsample_rate
    assert internal_dim % num_heads == 0, "num_heads must divide embedding_dim."
    b, n_q, c = q.shape
    _, n_k, _ = k.shape
    assert c == internal_dim and k.shape[-1] == c and v.shape[-1] == c
    assert v.shape[1] == n_k
    d = c // num_heads

    if use_pallas is None:
        # Below this, the kernel sits under the architecture floor on every
        # TPU generation (lane padding + per-step overhead); let XLA fuse it.
        use_pallas = n_q >= 32 and n_k >= 32 and c >= 64
    if not use_pallas:
        return _xla_attention(q, k, v, num_heads)

    if exp_in_bf16 is None:
        # v6e/v7x EUP is bf16-capable; set exp_in_bf16=False explicitly on v5e.
        exp_in_bf16 = q.dtype == jnp.bfloat16
    mm_dtype = jnp.bfloat16 if matmul_in_bf16 else None

    # Tile selection: multiples of 8 (sublane), capped by q_tile/k_tile.
    # Keep >= 2 parallel grid steps when possible so both v7x TCs get work.
    tq = _round_up(min(q_tile, _round_up(n_q, 8)), 8)
    while b * _cdiv(n_q, tq) < 2 and tq > 8:
        tq = _round_up(tq // 2, 8)
    tk = _round_up(min(k_tile, _round_up(n_k, 8)), 8)

    # Pad non-divisible sequence lengths instead of falling back to a
    # full-extent tile (which would reintroduce an O(Nq*Nk) VMEM intermediate).
    n_q_pad = _round_up(n_q, tq)
    n_k_pad = _round_up(n_k, tk)
    mask_kv = n_k_pad != n_k

    if n_q_pad != n_q:
        q = jnp.pad(q, ((0, 0), (0, n_q_pad - n_q), (0, 0)))
    if mask_kv:
        k = jnp.pad(k, ((0, 0), (0, n_k_pad - n_k), (0, 0)))
        v = jnp.pad(v, ((0, 0), (0, n_k_pad - n_k), (0, 0)))

    # _separate_heads: (B, N, C) -> (B, H, N, D) done by XLA outside the kernel.
    def split_heads(x):
        bb, nn, _ = x.shape
        return x.reshape(bb, nn, num_heads, d).transpose(0, 2, 1, 3)

    qh, kh, vh = split_heads(q), split_heads(k), split_heads(v)

    scale = 1.0 / math.sqrt(d)
    kernel = functools.partial(
        _flash_attention_kernel, scale=scale, kv_len=n_k, mask_kv=mask_kv,
        tk=tk, exp_in_bf16=exp_in_bf16, mm_dtype=mm_dtype)

    kv_kwargs = {}
    if kv_buffer_count and kv_buffer_count > 2:
        # Optional third K/V buffer (v5e) if DMA is still exposed at this tq.
        kv_kwargs = dict(pipeline_mode=pl.Buffered(kv_buffer_count))

    out = pl.pallas_call(
        kernel,
        out_shape=jax.ShapeDtypeStruct((b, n_q_pad, c), q.dtype),
        grid_spec=pltpu.PrefetchScalarGridSpec(
            num_scalar_prefetch=0,
            grid=(b, n_q_pad // tq, n_k_pad // tk),
            in_specs=[
                pl.BlockSpec((1, num_heads, tq, d),
                             lambda bi, qi, ki: (bi, 0, qi, 0)),
                pl.BlockSpec((1, num_heads, tk, d),
                             lambda bi, qi, ki: (bi, 0, ki, 0), **kv_kwargs),
                pl.BlockSpec((1, num_heads, tk, d),
                             lambda bi, qi, ki: (bi, 0, ki, 0), **kv_kwargs),
            ],
            out_specs=pl.BlockSpec((1, tq, c),
                                   lambda bi, qi, ki: (bi, qi, 0)),
            scratch_shapes=[
                pltpu.VMEM((num_heads, tq, 1), jnp.float32),   # running max
                pltpu.VMEM((num_heads, tq, 1), jnp.float32),   # running denom
                pltpu.VMEM((num_heads, tq, d), jnp.float32),   # output accum
            ],
        ),
        compiler_params=pltpu.CompilerParams(
            dimension_semantics=("parallel", "parallel", "arbitrary"),
            vmem_limit_bytes=vmem_limit_bytes),
    )(qh, kh, vh)

    if n_q_pad != n_q:
        out = out[:, :n_q, :]
    return out   # heads already merged in-kernel -> (B, Nq, C)


def _reference(q, k, v, num_heads):
    b, n_q, c = q.shape
    d = c // num_heads

    def split(x):
        return x.reshape(b, -1, num_heads, d).transpose(0, 2, 1, 3)

    qh, kh, vh = (split(t).astype(jnp.float32) for t in (q, k, v))
    attn = jnp.einsum("bhqd,bhkd->bhqk", qh, kh,
                      precision=lax.Precision.HIGHEST) / math.sqrt(d)
    attn = jax.nn.softmax(attn, axis=-1)
    out = jnp.einsum("bhqk,bhkd->bhqd", attn, vh,
                     precision=lax.Precision.HIGHEST)
    return out.transpose(0, 2, 1, 3).reshape(b, n_q, c)


if __name__ == "__main__":
    # Small but TPU-meaningful shapes: C = 128 (lane-dense output), D = 32.
    embedding_dim = 128
    num_heads = 4
    batch = 2
    n_q = 64      # query tokens
    n_k = 128     # key/value tokens

    key = jax.random.PRNGKey(0)
    kq, kk, kv = jax.random.split(key, 3)
    q = jax.random.normal(kq, (batch, n_q, embedding_dim), dtype=jnp.float32)
    k = jax.random.normal(kk, (batch, n_k, embedding_dim), dtype=jnp.float32)
    v = jax.random.normal(kv, (batch, n_k, embedding_dim), dtype=jnp.float32)

    out = jax.block_until_ready(
        attention_forward(q, k, v, embedding_dim=embedding_dim,
                          num_heads=num_heads))
    ref = _reference(q, k, v, num_heads)
    assert out.shape == (batch, n_q, embedding_dim)
    assert jnp.allclose(out, ref, atol=2e-3, rtol=2e-3), \
        float(jnp.max(jnp.abs(out - ref)))

    # Non-divisible Nq/Nk: wrapper pads, kernel masks the key tail.
    q2 = jax.random.normal(kq, (batch, 50, embedding_dim), dtype=jnp.float32)
    k2 = jax.random.normal(kk, (batch, 70, embedding_dim), dtype=jnp.float32)
    v2 = jax.random.normal(kv, (batch, 70, embedding_dim), dtype=jnp.float32)
    out2 = jax.block_until_ready(
        attention_forward(q2, k2, v2, embedding_dim=embedding_dim,
                          num_heads=num_heads))
    ref2 = _reference(q2, k2, v2, num_heads)
    assert out2.shape == (batch, 50, embedding_dim)
    assert jnp.allclose(out2, ref2, atol=2e-3, rtol=2e-3), \
        float(jnp.max(jnp.abs(out2 - ref2)))

    # bf16 path: native MXU dtype, bf16 exp (v6e/v7x), f32 accumulation.
    qb, kb, vb = (x.astype(jnp.bfloat16) for x in (q, k, v))
    out_bf16 = jax.block_until_ready(
        attention_forward(qb, kb, vb, embedding_dim=embedding_dim,
                          num_heads=num_heads))
    assert out_bf16.shape == (batch, n_q, embedding_dim)
    assert jnp.allclose(out_bf16.astype(jnp.float32), ref, atol=1e-1, rtol=1e-1)

    # f32 inputs with bf16 matmuls (optional ~3x MXU win for f32 models).
    out_mm = jax.block_until_ready(
        attention_forward(q, k, v, embedding_dim=embedding_dim,
                          num_heads=num_heads, matmul_in_bf16=True))
    assert jnp.allclose(out_mm, ref, atol=5e-2, rtol=5e-2)

    # Tiny shapes: below the architecture floor -> plain XLA fallback.
    q3 = jax.random.normal(kq, (2, 8, 32), dtype=jnp.float32)
    k3 = jax.random.normal(kk, (2, 16, 32), dtype=jnp.float32)
    v3 = jax.random.normal(kv, (2, 16, 32), dtype=jnp.float32)
    out3 = jax.block_until_ready(
        attention_forward(q3, k3, v3, embedding_dim=32, num_heads=4))
    assert jnp.allclose(out3, _reference(q3, k3, v3, 4), atol=1e-4, rtol=1e-4)

    print("KERNEL_OK")
</pallas_src>

<mosaic_0001>
module attributes {stable_mosaic.version = 11 : i64} {
  func.func @_flash_attention_kernel(%arg0: i32, %arg1: i32, %arg2: i32, %arg3: memref<1x4x64x32xf32, #tpu.memory_space<vmem>>, %arg4: memref<1x4x128x32xf32, #tpu.memory_space<vmem>>, %arg5: memref<1x4x128x32xf32, #tpu.memory_space<vmem>>, %arg6: memref<1x64x128xf32, #tpu.memory_space<vmem>>, %arg7: memref<4x64x1xf32, #tpu.memory_space<vmem>>, %arg8: memref<4x64x1xf32, #tpu.memory_space<vmem>>, %arg9: memref<4x64x32xf32, #tpu.memory_space<vmem>>) attributes {dimension_semantics = [#tpu.dimension_semantics<parallel>, #tpu.dimension_semantics<parallel>, #tpu.dimension_semantics<arbitrary>], iteration_bounds = array<i64: 2, 1, 1>, scalar_prefetch = 0 : i64, scratch_operands = 3 : i64, tpu.core_type = #tpu.core_type<tc>, window_params = [{transform_indices = @transform_0, window_bounds = array<i64: 1, 4, 64, 32>}, {transform_indices = @transform_1, window_bounds = array<i64: 1, 4, 128, 32>}, {transform_indices = @transform_2, window_bounds = array<i64: 1, 4, 128, 32>}, {transform_indices = @transform_3, window_bounds = array<i64: 1, 64, 128>}]} {
    %c0_i32 = arith.constant 0 : i32
    %0 = arith.cmpi eq, %arg2, %c0_i32 : i32
    %1 = arith.extui %0 : i1 to i32
    %c0_i32_0 = arith.constant 0 : i32
    %2 = arith.cmpi ne, %1, %c0_i32_0 : i32
    scf.if %2 {
      %cst_37 = arith.constant 0xFF800000 : f32
      %37 = vector.broadcast %cst_37 : f32 to vector<4x64x1xf32>
      %c0_38 = arith.constant 0 : index
      %c0_39 = arith.constant 0 : index
      %c0_40 = arith.constant 0 : index
      %38 = vector.load %arg7[%c0_38, %c0_39, %c0_40] : memref<4x64x1xf32, #tpu.memory_space<vmem>>, vector<4x64x1xf32>
      tpu.vector_store %arg7[%c0_38, %c0_39, %c0_40], %37 {strides = array<i32>} : memref<4x64x1xf32, #tpu.memory_space<vmem>>, vector<4x64x1xf32>,
      %cst_41 = arith.constant 0.000000e+00 : f32
      %39 = vector.broadcast %cst_41 : f32 to vector<4x64x1xf32>
      %c0_42 = arith.constant 0 : index
      %c0_43 = arith.constant 0 : index
      %c0_44 = arith.constant 0 : index
      %40 = vector.load %arg8[%c0_42, %c0_43, %c0_44] : memref<4x64x1xf32, #tpu.memory_space<vmem>>, vector<4x64x1xf32>
      tpu.vector_store %arg8[%c0_42, %c0_43, %c0_44], %39 {strides = array<i32>} : memref<4x64x1xf32, #tpu.memory_space<vmem>>, vector<4x64x1xf32>,
      %cst_45 = arith.constant 0.000000e+00 : f32
      %41 = vector.broadcast %cst_45 : f32 to vector<4x64x32xf32>
      %c0_46 = arith.constant 0 : index
      %c0_47 = arith.constant 0 : index
      %c0_48 = arith.constant 0 : index
      %42 = vector.load %arg9[%c0_46, %c0_47, %c0_48] : memref<4x64x32xf32, #tpu.memory_space<vmem>>, vector<4x64x32xf32>
      tpu.vector_store %arg9[%c0_46, %c0_47, %c0_48], %41 {strides = array<i32>} : memref<4x64x32xf32, #tpu.memory_space<vmem>>, vector<4x64x32xf32>,
    } else {
    }
    %c0 = arith.constant 0 : index
    %c0_1 = arith.constant 0 : index
    %c0_2 = arith.constant 0 : index
    %c0_3 = arith.constant 0 : index
    %3 = vector.load %arg3[%c0, %c0_1, %c0_2, %c0_3] : memref<1x4x64x32xf32, #tpu.memory_space<vmem>>, vector<1x4x64x32xf32>
    %4 = vector.shape_cast %3 : vector<1x4x64x32xf32> to vector<4x64x32xf32>
    %cst = arith.constant 0.176776692 : f32
    %5 = vector.broadcast %cst : f32 to vector<4x64x32xf32>
    %6 = arith.mulf %4, %5 : vector<4x64x32xf32>
    %c0_4 = arith.constant 0 : index
    %c0_5 = arith.constant 0 : index
    %c0_6 = arith.constant 0 : index
    %c0_7 = arith.constant 0 : index
    %7 = vector.load %arg4[%c0_4, %c0_5, %c0_6, %c0_7] : memref<1x4x128x32xf32, #tpu.memory_space<vmem>>, vector<1x4x128x32xf32>
    %8 = vector.shape_cast %7 : vector<1x4x128x32xf32> to vector<4x128x32xf32>
    %c0_8 = arith.constant 0 : index
    %c0_9 = arith.constant 0 : index
    %c0_10 = arith.constant 0 : index
    %c0_11 = arith.constant 0 : index
    %9 = vector.load %arg5[%c0_8, %c0_9, %c0_10, %c0_11] : memref<1x4x128x32xf32, #tpu.memory_space<vmem>>, vector<1x4x128x32xf32>
    %10 = vector.shape_cast %9 : vector<1x4x128x32xf32> to vector<4x128x32xf32>
    "tpu.trace_start"() <{level = 10 : i32, message = "hqd,hkd->hqk"}> : () -> ()
    %cst_12 = arith.constant dense<0.000000e+00> : vector<4x64x128xf32>
    %11 = tpu.matmul %6, %8, %cst_12 {dimension_numbers = #tpu.dot_dimension_numbers<[2], [2], [1], [1], [0, 0, 0, 1, 1, 1], [0], [0]>} : vector<4x64x32xf32>, vector<4x128x32xf32>, vector<4x64x128xf32> -> vector<4x64x128xf32>
    "tpu.trace_stop"() : () -> ()
    %c0_13 = arith.constant 0 : index
    %c0_14 = arith.constant 0 : index
    %c0_15 = arith.constant 0 : index
    %12 = vector.load %arg7[%c0_13, %c0_14, %c0_15] : memref<4x64x1xf32, #tpu.memory_space<vmem>>, vector<4x64x1xf32>
    %cst_16 = arith.constant dense<0xFF800000> : vector<4x64xf32>
    %13 = vector.multi_reduction <maximumf>, %11, %cst_16 [2] : vector<4x64x128xf32> to vector<4x64xf32>
    %14 = vector.shape_cast %13 : vector<4x64xf32> to vector<4x64x1xf32>
    %15 = arith.maximumf %12, %14 : vector<4x64x1xf32>
    %16 = arith.subf %12, %15 : vector<4x64x1xf32>
    %17 = math.exp %16 : vector<4x64x1xf32>
    %18 = vector.broadcast %15 : vector<4x64x1xf32> to vector<4x64x128xf32>
    %19 = arith.subf %11, %18 : vector<4x64x128xf32>
    %20 = math.exp %19 : vector<4x64x128xf32>
    %cst_17 = arith.constant 1.000000e+00 : f32
    %21 = vector.broadcast %cst_17 : f32 to vector<4x128x1xf32>
    "tpu.trace_start"() <{level = 10 : i32, message = "hqk,hko->hqo"}> : () -> ()
    %cst_18 = arith.constant dense<0.000000e+00> : vector<4x64x1xf32>
    %22 = tpu.matmul %20, %21, %cst_18 {dimension_numbers = #tpu.dot_dimension_numbers<[2], [1], [1], [2], [0, 0, 0, 1, 1, 2], [0], [0]>} : vector<4x64x128xf32>, vector<4x128x1xf32>, vector<4x64x1xf32> -> vector<4x64x1xf32>
    "tpu.trace_stop"() : () -> ()
    %c0_19 = arith.constant 0 : index
    %c0_20 = arith.constant 0 : index
    %c0_21 = arith.constant 0 : index
    %23 = vector.load %arg8[%c0_19, %c0_20, %c0_21] : memref<4x64x1xf32, #tpu.memory_space<vmem>>, vector<4x64x1xf32>
    %24 = arith.mulf %17, %23 : vector<4x64x1xf32>
    %25 = arith.addf %24, %22 : vector<4x64x1xf32>
    %c0_22 = arith.constant 0 : index
    %c0_23 = arith.constant 0 : index
    %c0_24 = arith.constant 0 : index
    %26 = vector.load %arg8[%c0_22, %c0_23, %c0_24] : memref<4x64x1xf32, #tpu.memory_space<vmem>>, vector<4x64x1xf32>
    tpu.vector_store %arg8[%c0_22, %c0_23, %c0_24], %25 {strides = array<i32>} : memref<4x64x1xf32, #tpu.memory_space<vmem>>, vector<4x64x1xf32>,
    %c0_25 = arith.constant 0 : index
    %c0_26 = arith.constant 0 : index
    %c0_27 = arith.constant 0 : index
    %27 = vector.load %arg9[%c0_25, %c0_26, %c0_27] : memref<4x64x32xf32, #tpu.memory_space<vmem>>, vector<4x64x32xf32>
    %28 = vector.broadcast %17 : vector<4x64x1xf32> to vector<4x64x32xf32>
    %29 = arith.mulf %28, %27 : vector<4x64x32xf32>
    "tpu.trace_start"() <{level = 10 : i32, message = "hqk,hkd->hqd"}> : () -> ()
    %cst_28 = arith.constant dense<0.000000e+00> : vector<4x64x32xf32>
    %30 = tpu.matmul %20, %10, %cst_28 {dimension_numbers = #tpu.dot_dimension_numbers<[2], [1], [1], [2], [0, 0, 0, 1, 1, 2], [0], [0]>} : vector<4x64x128xf32>, vector<4x128x32xf32>, vector<4x64x32xf32> -> vector<4x64x32xf32>
    "tpu.trace_stop"() : () -> ()
    %31 = arith.addf %29, %30 : vector<4x64x32xf32>
    %c0_29 = arith.constant 0 : index
    %c0_30 = arith.constant 0 : index
    %c0_31 = arith.constant 0 : index
    %32 = vector.load %arg9[%c0_29, %c0_30, %c0_31] : memref<4x64x32xf32, #tpu.memory_space<vmem>>, vector<4x64x32xf32>
    tpu.vector_store %arg9[%c0_29, %c0_30, %c0_31], %31 {strides = array<i32>} : memref<4x64x32xf32, #tpu.memory_space<vmem>>, vector<4x64x32xf32>,
    %c0_32 = arith.constant 0 : index
    %c0_33 = arith.constant 0 : index
    %c0_34 = arith.constant 0 : index
    %33 = vector.load %arg7[%c0_32, %c0_33, %c0_34] : memref<4x64x1xf32, #tpu.memory_space<vmem>>, vector<4x64x1xf32>
    tpu.vector_store %arg7[%c0_32, %c0_33, %c0_34], %15 {strides = array<i32>} : memref<4x64x1xf32, #tpu.memory_space<vmem>>, vector<4x64x1xf32>,
    %c0_i32_35 = arith.constant 0 : i32
    %34 = arith.cmpi eq, %arg2, %c0_i32_35 : i32
    %35 = arith.extui %34 : i1 to i32
    %c0_i32_36 = arith.constant 0 : i32
    %36 = arith.cmpi ne, %35, %c0_i32_36 : i32
    scf.if %36 {
      %c0_37 = arith.constant 0 : index
      %c0_38 = arith.constant 0 : index
      %c0_39 = arith.constant 0 : index
      %37 = vector.load %arg8[%c0_37, %c0_38, %c0_39] : memref<4x64x1xf32, #tpu.memory_space<vmem>>, vector<4x64x1xf32>
      %cst_40 = arith.constant 1.000000e+00 : f32
      %38 = vector.broadcast %cst_40 : f32 to vector<4x64x1xf32>
      %39 = arith.divf %38, %37 : vector<4x64x1xf32>
      %c0_41 = arith.constant 0 : index
      %c0_42 = arith.constant 0 : index
      %c0_43 = arith.constant 0 : index
      %40 = vector.load %arg9[%c0_41, %c0_42, %c0_43] : memref<4x64x32xf32, #tpu.memory_space<vmem>>, vector<4x64x32xf32>
      %41 = vector.broadcast %39 : vector<4x64x1xf32> to vector<4x64x32xf32>
      %42 = arith.mulf %40, %41 : vector<4x64x32xf32>
      %43 = vector.extract_strided_slice %42 {offsets = [0, 0, 0], sizes = [1, 64, 32], strides = [1, 1, 1]} : vector<4x64x32xf32> to vector<1x64x32xf32>
      %44 = vector.shape_cast %43 : vector<1x64x32xf32> to vector<64x32xf32>
      %45 = vector.extract_strided_slice %42 {offsets = [1, 0, 0], sizes = [1, 64, 32], strides = [1, 1, 1]} : vector<4x64x32xf32> to vector<1x64x32xf32>
      %46 = vector.shape_cast %45 : vector<1x64x32xf32> to vector<64x32xf32>
      %47 = vector.extract_strided_slice %42 {offsets = [2, 0, 0], sizes = [1, 64, 32], strides = [1, 1, 1]} : vector<4x64x32xf32> to vector<1x64x32xf32>
      %48 = vector.shape_cast %47 : vector<1x64x32xf32> to vector<64x32xf32>
      %49 = vector.extract_strided_slice %42 {offsets = [3, 0, 0], sizes = [1, 64, 32], strides = [1, 1, 1]} : vector<4x64x32xf32> to vector<1x64x32xf32>
      %50 = vector.shape_cast %49 : vector<1x64x32xf32> to vector<64x32xf32>
      %51 = tpu.concatenate %44, %46, %48, %50 in 1 : vector<64x32xf32>, vector<64x32xf32>, vector<64x32xf32>, vector<64x32xf32> -> vector<64x128xf32>
      %c0_44 = arith.constant 0 : index
      %c0_45 = arith.constant 0 : index
      %c0_46 = arith.constant 0 : index
      %52 = vector.load %arg6[%c0_44, %c0_45, %c0_46] : memref<1x64x128xf32, #tpu.memory_space<vmem>>, vector<1x64x128xf32>
      %53 = vector.shape_cast %52 : vector<1x64x128xf32> to vector<64x128xf32>
      %54 = vector.shape_cast %51 : vector<64x128xf32> to vector<1x64x128xf32>
      tpu.vector_store %arg6[%c0_44, %c0_45, %c0_46], %54 {strides = array<i32>} : memref<1x64x128xf32, #tpu.memory_space<vmem>>, vector<1x64x128xf32>,
    } else {
    }
    return
  }
  func.func @transform_0(%arg0: i32, %arg1: i32, %arg2: i32) -> (i32, i32, i32, i32) {
    %c0_i32 = arith.constant 0 : i32
    %c0_i32_0 = arith.constant 0 : i32
    %c0_i32_1 = arith.constant 0 : i32
    return %arg0, %c0_i32, %arg1, %c0_i32_0 : i32, i32, i32, i32
  }
  func.func @transform_1(%arg0: i32, %arg1: i32, %arg2: i32) -> (i32, i32, i32, i32) {
    %c0_i32 = arith.constant 0 : i32
    %c0_i32_0 = arith.constant 0 : i32
    %c0_i32_1 = arith.constant 0 : i32
    return %arg0, %c0_i32, %arg2, %c0_i32_0 : i32, i32, i32, i32
  }
  func.func @transform_2(%arg0: i32, %arg1: i32, %arg2: i32) -> (i32, i32, i32, i32) {
    %c0_i32 = arith.constant 0 : i32
    %c0_i32_0 = arith.constant 0 : i32
    %c0_i32_1 = arith.constant 0 : i32
    return %arg0, %c0_i32, %arg2, %c0_i32_0 : i32, i32, i32, i32
  }
  func.func @transform_3(%arg0: i32, %arg1: i32, %arg2: i32) -> (i32, i32, i32) {
    %c0_i32 = arith.constant 0 : i32
    %c0_i32_0 = arith.constant 0 : i32
    return %arg0, %arg1, %c0_i32 : i32, i32, i32
  }
}

</mosaic_0001>

<llo_original>
// kernel: tpu_custom_call.1
$region0: #{tpu_custom_call.1}
  #allocation0 [shape = 'u32[]', space=smem, size = 0x4, offset = 0x4, fixed_abs, tag = 'smem constant byte address 0x4 - core index']
  #allocation1 [shape = 'u32[144,128]{1,0:T(1,128)}', space=vmem, size = 0x12000, scoped, tag = 'internal scratch']
  #allocation2 [shape = 'f32[4,64,1]{2,1,0:T(8,128)}', space=vmem, size = 0x20000, scoped, tag = 'scratch operand']
  #allocation3 [shape = 'f32[4,64,1]{2,1,0:T(8,128)}', space=vmem, size = 0x20000, scoped, tag = 'scratch operand']
  #allocation4 [shape = 'f32[4,64,32]{2,1,0:T(8,128)}', space=vmem, size = 0x20000, scoped, tag = 'scratch operand']
  %s0 = inlined_call_operand.vmem [shape: f32[2,4,64,32], index: 0, kind: input, shape index: {}]
  %s1 = inlined_call_operand.vmem [shape: f32[2,4,128,32], index: 1, kind: input, shape index: {}]
  %s2 = inlined_call_operand.vmem [shape: f32[2,4,128,32], index: 2, kind: input, shape index: {}]
  %s3 = inlined_call_operand.hbm [shape: f32[2,64,128], index: 3, kind: output, shape index: {}]
  %s4 = sld [smem:[#allocation0]]
  $region53: #{tpu_custom_call.1} parent=0
    _
  %s6 = ssub.s32 1, %s4
  %s7 = scalar_select 0, %s6, %s4
  $region1: #{tpu_custom_call.1} parent=0
    #allocation5 [shape = 'u8[65536]{0}', space=vmem, size = 0x10000, scoped, tag = 'output window, operand 0']
    #allocation6 [shape = 's32[2]{0}', space=sflag, size = 0x8, scoped, tag = 'scoped memory for tpu_custom_call.1']
    %8 = vsyncpa [#allocation6], 0
    %s9 = scalar_lea.sflag [#allocation6], 1
    %10 = vsyncpa %s9, 0
    loop: start=0, step=1, limit=4
    $region2: #{tpu_custom_call.1} parent=1 // loop_pre_header
      _
    $region3: #{tpu_custom_call.1} parent=1 // loop_header
      %s12 = sphi 0, %s16
      %p13 = scmp.ge.s32.totalorder %s12, 4
      %s19 = sphi 0, %s38
      %s20 = sphi 0, %s34
      %s21 = sphi 0, %s30
      %s22 = sphi 0, %s19
      %s23 = sphi 0, %s20
      %s24 = sphi 0, %s21
      %s25 = sphi 0, %s22
      %s26 = sphi 0, %s23
      %s27 = sphi 0, %s24
      %s43 = sphi 0, %s45
      %s46 = sphi 0, %s43
      %s47 = sphi 0, %s46
      %s63 = sphi 0, %s47
      %s71 = sphi 0, %s73
      %s74 = sphi 0, %s71
      %s75 = sphi 0, %s74
      %s91 = sphi 0, %s75
      %s99 = sphi 0, %s101
      %s102 = sphi 0, %s99
      %s103 = sphi 0, %s102
      %s119 = sphi 0, %s103
      %s127 = sphi 0, %s129
      %s130 = sphi 0, %s127
      %s131 = sphi 0, %s130
      %s147 = sphi 0, %s131
    $region4: #{tpu_custom_call.1} parent=1 // loop_header_branch
      %15 = sbr.rel (%p13) target = $region8
    $region5: #{tpu_custom_call.1} parent=1 // loop_body
      %s17 = ssub.s32 %s12, 1
      %s18 = ssub.s32 %s12, 2
      %s28 = sadd.s32 1, %s21
      %p29 = scmp.ge.s32.totalorder %s28, 1
      %s30 = scalar_select %p29, 0, %s28
      %s31 = sadd.s32 1, %s20
      %s32 = scalar_select %p29, %s31, %s20
      %p33 = scmp.ge.s32.totalorder %s32, 1
      %s34 = scalar_select %p33, 0, %s32
      %s35 = sadd.s32 1, %s19
      %s36 = scalar_select %p33, %s35, %s19
      %p37 = scmp.ge.s32.totalorder %s36, 2
      %s38 = scalar_select %p37, 0, %s36
      %s39 = ssub.s32 %s19, %s38
      %s40 = ssub.s32 %s20, %s34
      %s41 = sor.u32 %s39, %s40
      %p42 = scmp.eq.s32.totalorder %s41, 0
      %s44 = sadd.s32 %s43, 1
      %s45 = scalar_select %p42, %s43, %s44
      %p48 = pneg %p42
      %p49 = scmp.eq.s32.totalorder %s12, 1
      %p50 = por %p48, %p49
      %p51 = scmp.ne.s32.totalorder %s43, %s46
      %p52 = scmp.eq.s32.totalorder %s12, 0
      %p53 = por %p51, %p52
      %p54 = scmp.ne.s32.totalorder %s43, %s46
      %p55 = scmp.eq.s32.totalorder %s17, 1
      %p56 = por %p54, %p55
      %p57 = scmp.ne.s32.totalorder %s46, %s47
      %p58 = scmp.eq.s32.totalorder %s17, 0
      %p59 = por %p57, %p58
      %p60 = scmp.ne.s32.totalorder %s46, %s47
      %p61 = scmp.eq.s32.totalorder %s18, 1
      %p62 = por %p60, %p61
      %p64 = scmp.ne.s32.totalorder %s47, %s63
      %p65 = scmp.eq.s32.totalorder %s18, 0
      %p66 = por %p64, %p65
      %s67 = ssub.s32 %s19, %s38
      %s68 = ssub.s32 %s21, %s30
      %s69 = sor.u32 %s67, %s68
      %p70 = scmp.eq.s32.totalorder %s69, 0
      %s72 = sadd.s32 %s71, 1
      %s73 = scalar_select %p70, %s71, %s72
      %p76 = pneg %p70
      %p77 = scmp.eq.s32.totalorder %s12, 1
      %p78 = por %p76, %p77
      %p79 = scmp.ne.s32.totalorder %s71, %s74
      %p80 = scmp.eq.s32.totalorder %s12, 0
      %p81 = por %p79, %p80
      %p82 = scmp.ne.s32.totalorder %s71, %s74
      %p83 = scmp.eq.s32.totalorder %s17, 1
      %p84 = por %p82, %p83
      %p85 = scmp.ne.s32.totalorder %s74, %s75
      %p86 = scmp.eq.s32.totalorder %s17, 0
      %p87 = por %p85, %p86
      %p88 = scmp.ne.s32.totalorder %s74, %s75
      %p89 = scmp.eq.s32.totalorder %s18, 1
      %p90 = por %p88, %p89
      %p92 = scmp.ne.s32.totalorder %s75, %s91
      %p93 = scmp.eq.s32.totalorder %s18, 0
      %p94 = por %p92, %p93
      %s95 = ssub.s32 %s19, %s38
      %s96 = ssub.s32 %s21, %s30
      %s97 = sor.u32 %s95, %s96
      %p98 = scmp.eq.s32.totalorder %s97, 0
      %s100 = sadd.s32 %s99, 1
      %s101 = scalar_select %p98, %s99, %s100
      %p104 = pneg %p98
      %p105 = scmp.eq.s32.totalorder %s12, 1
      %p106 = por %p104, %p105
      %p107 = scmp.ne.s32.totalorder %s99, %s102
      %p108 = scmp.eq.s32.totalorder %s12, 0
      %p109 = por %p107, %p108
      %p110 = scmp.ne.s32.totalorder %s99, %s102
      %p111 = scmp.eq.s32.totalorder %s17, 1
      %p112 = por %p110, %p111
      %p113 = scmp.ne.s32.totalorder %s102, %s103
      %p114 = scmp.eq.s32.totalorder %s17, 0
      %p115 = por %p113, %p114
      %p116 = scmp.ne.s32.totalorder %s102, %s103
      %p117 = scmp.eq.s32.totalorder %s18, 1
      %p118 = por %p116, %p117
      %p120 = scmp.ne.s32.totalorder %s103, %s119
      %p121 = scmp.eq.s32.totalorder %s18, 0
      %p122 = por %p120, %p121
      %s123 = ssub.s32 %s19, %s38
      %s124 = ssub.s32 %s20, %s34
      %s125 = sor.u32 %s123, %s124
      %p126 = scmp.eq.s32.totalorder %s125, 0
      %s128 = sadd.s32 %s127, 1
      %s129 = scalar_select %p126, %s127, %s128
      %p132 = pneg %p126
      %p133 = scmp.eq.s32.totalorder %s12, 1
      %p134 = por %p132, %p133
      %p135 = scmp.ne.s32.totalorder %s127, %s130
      %p136 = scmp.eq.s32.totalorder %s12, 0
      %p137 = por %p135, %p136
      %p138 = scmp.ne.s32.totalorder %s127, %s130
      %p139 = scmp.eq.s32.totalorder %s17, 1
      %p140 = por %p138, %p139
      %p141 = scmp.ne.s32.totalorder %s130, %s131
      %p142 = scmp.eq.s32.totalorder %s17, 0
      %p143 = por %p141, %p142
      %p144 = scmp.ne.s32.totalorder %s130, %s131
      %p145 = scmp.eq.s32.totalorder %s18, 1
      %p146 = por %p144, %p145
      %p148 = scmp.ne.s32.totalorder %s131, %s147
      %p149 = scmp.eq.s32.totalorder %s18, 0
      %p150 = por %p148, %p149
      %p151 = scmp.le.s32.totalorder 1, %s12
      %p152 = scmp.lt.s32.totalorder %s12, 3
      %p153 = pnand %p151, %p152
      %p154 = pneg %p153
      // Predicated region
      $region9: #{tpu_custom_call.1} parent=5 // pred_check
        _
      $region10: #{tpu_custom_call.1} parent=5 // pred_check_branch
        %156 = sbr.rel (%p153) target = $region12
      $region11: #{tpu_custom_call.1} parent=5 // pred_region
        %s157 = ssub.s32 %s12, 1
      $region12: #{tpu_custom_call.1} parent=5 // pred_fallthru
        _
      %p158 = scmp.lt.s32.totalorder %s12, 2
      // Predicated region
      $region13: #{tpu_custom_call.1} parent=5 // pred_check
        %p159 = pneg %p158
      $region14: #{tpu_custom_call.1} parent=5 // pred_check_branch
        %161 = sbr.rel (%p159) target = $region16
      $region15: #{tpu_custom_call.1} parent=5 // pred_region
        // Predicated region
        $region17: #{tpu_custom_call.1} parent=15 // pred_check
          %p162 = pneg %p53
        $region18: #{tpu_custom_call.1} parent=15 // pred_check_branch
          %164 = sbr.rel (%p162) target = $region20
        $region19: #{tpu_custom_call.1} parent=15 // pred_region
          %s165 = smul.u32 8, %s20
          %p166 = scmp.lt.s32.totalorder %s19, 1
          %s167 = scalar_select %p166, %s19, 1
          %p168 = scmp.lt.s32.totalorder %s165, 7
          %s169 = scalar_select %p168, %s165, 7
          %s170 = smul.addr %s167, 32
          %s171 = sadd.s32 %s169, %s170
          %s172 = smul.addr %s171, 8
          %s173 = scalar_lea.vmem %s0, %s172
          %s174 = smul.u32 8, %s20
        $region20: #{tpu_custom_call.1} parent=15 // pred_fallthru
          _
        // Predicated region
        $region21: #{tpu_custom_call.1} parent=15 // pred_check
          %p175 = pneg %p81
        $region22: #{tpu_custom_call.1} parent=15 // pred_check_branch
          %177 = sbr.rel (%p175) target = $region24
        $region23: #{tpu_custom_call.1} parent=15 // pred_region
          %s178 = smul.u32 16, %s21
          %p179 = scmp.lt.s32.totalorder %s19, 1
          %s180 = scalar_select %p179, %s19, 1
          %p181 = scmp.lt.s32.totalorder %s178, 15
          %s182 = scalar_select %p181, %s178, 15
          %s183 = smul.addr %s180, 64
          %s184 = sadd.s32 %s182, %s183
          %s185 = smul.addr %s184, 8
          %s186 = scalar_lea.vmem %s1, %s185
          %s187 = smul.u32 16, %s21
        $region24: #{tpu_custom_call.1} parent=15 // pred_fallthru
          _
        // Predicated region
        $region25: #{tpu_custom_call.1} parent=15 // pred_check
          %p188 = pneg %p109
        $region26: #{tpu_custom_call.1} parent=15 // pred_check_branch
          %190 = sbr.rel (%p188) target = $region28
        $region27: #{tpu_custom_call.1} parent=15 // pred_region
          %s191 = smul.u32 16, %s21
          %p192 = scmp.lt.s32.totalorder %s19, 1
          %s193 = scalar_select %p192, %s19, 1
          %p194 = scmp.lt.s32.totalorder %s191, 15
          %s195 = scalar_select %p194, %s191, 15
          %s196 = smul.addr %s193, 64
          %s197 = sadd.s32 %s195, %s196
          %s198 = smul.addr %s197, 8
          %s199 = scalar_lea.vmem %s2, %s198
          %s200 = smul.u32 16, %s21
        $region28: #{tpu_custom_call.1} parent=15 // pred_fallthru
          _
      $region16: #{tpu_custom_call.1} parent=5 // pred_fallthru
        _
      %p201 = scmp.le.s32.totalorder 1, %s12
      %p202 = scmp.lt.s32.totalorder %s12, 3
      %p203 = pnand %p201, %p202
      %p204 = pneg %p203
      // Predicated region
      $region29: #{tpu_custom_call.1} parent=5 // pred_check
        _
      $region30: #{tpu_custom_call.1} parent=5 // pred_check_branch
        %206 = sbr.rel (%p203) target = $region32
      $region31: #{tpu_custom_call.1} parent=5 // pred_region
        %s207 = ssub.s32 %s12, 1
        %s208 = smul.u32 8, %s23
        %p209 = scmp.lt.s32.totalorder %s22, 1
        %s210 = scalar_select %p209, %s22, 1
        %p211 = scmp.lt.s32.totalorder %s208, 7
        %s212 = scalar_select %p211, %s208, 7
        %s213 = smul.addr %s210, 32
        %s214 = sadd.s32 %s212, %s213
        %s215 = smul.addr %s214, 8
        %s216 = scalar_lea.vmem %s0, %s215
        %p217 = pneg %p59
        %p218 = pneg %p56
        %s219 = smul.u32 16, %s24
        %p220 = scmp.lt.s32.totalorder %s22, 1
        %s221 = scalar_select %p220, %s22, 1
        %p222 = scmp.lt.s32.totalorder %s219, 15
        %s223 = scalar_select %p222, %s219, 15
        %s224 = smul.addr %s221, 64
        %s225 = sadd.s32 %s223, %s224
        %s226 = smul.addr %s225, 8
        %s227 = scalar_lea.vmem %s1, %s226
        %p228 = pneg %p87
        %p229 = pneg %p84
        %s230 = smul.u32 16, %s24
        %p231 = scmp.lt.s32.totalorder %s22, 1
        %s232 = scalar_select %p231, %s22, 1
        %p233 = scmp.lt.s32.totalorder %s230, 15
        %s234 = scalar_select %p233, %s230, 15
        %s235 = smul.addr %s232, 64
        %s236 = sadd.s32 %s234, %s235
        %s237 = smul.addr %s236, 8
        %s238 = scalar_lea.vmem %s2, %s237
        %p239 = pneg %p115
        %p240 = pneg %p112
        %p241 = pneg %p143
        %p242 = pneg %p140
        %s243 = sand.u32 %s130, 1
        %s244 = scalar_lea.sflag [#allocation6], %s243
        %s245 = sand.u32 %s130, 1
        %s246 = smul.addr %s245, 64
        %s247 = scalar_lea.vmem [#allocation5], %s246
        %s248 = smul.u32 8, %s23
        %p249 = scmp.lt.s32.totalorder %s22, 1
        %s250 = scalar_select %p249, %s22, 1
        %p251 = scmp.lt.s32.totalorder %s248, 7
        %s252 = scalar_select %p251, %s248, 7
        %s253 = smul.addr %s250, 32
        %s254 = sadd.s32 %s252, %s253
        %s255 = smul.addr %s254, 8
        %s256 = scalar_lea.vmem %s0, %s255
        %s257 = smul.u32 8, %s23
        %s258 = smul.u32 16, %s24
        %p259 = scmp.lt.s32.totalorder %s22, 1
        %s260 = scalar_select %p259, %s22, 1
        %p261 = scmp.lt.s32.totalorder %s258, 15
        %s262 = scalar_select %p261, %s258, 15
        %s263 = smul.addr %s260, 64
        %s264 = sadd.s32 %s262, %s263
        %s265 = smul.addr %s264, 8
        %s266 = scalar_lea.vmem %s1, %s265
        %s267 = smul.u32 16, %s24
        %s268 = smul.u32 16, %s24
        %p269 = scmp.lt.s32.totalorder %s22, 1
        %s270 = scalar_select %p269, %s22, 1
        %p271 = scmp.lt.s32.totalorder %s268, 15
        %s272 = scalar_select %p271, %s268, 15
        %s273 = smul.addr %s270, 64
        %s274 = sadd.s32 %s272, %s273
        %s275 = smul.addr %s274, 8
        %s276 = scalar_lea.vmem %s2, %s275
        %s277 = smul.u32 16, %s24
        %s278 = smul.u32 8, %s23
        %p279 = scmp.eq.s32.totalorder %s24, 0
        // Predicated region
        $region33: #{tpu_custom_call.1} parent=31 // pred_check
          %p280 = pneg %p279
        $region34: #{tpu_custom_call.1} parent=31 // pred_check_branch
          %282 = sbr.rel (%p280) target = $region36
        $region35: #{tpu_custom_call.1} parent=31 // pred_region
          %vm283 = vcmask 7168
          %284 = vst.msk [vmem:[#allocation2] sm:$0xff] %vm283, -inf
          %285 = vst.msk [vmem:[#allocation2 + $0x8] sm:$0xff] %vm283, -inf
          %286 = vst.msk [vmem:[#allocation2 + $0x10] sm:$0xff] %vm283, -inf
          %287 = vst.msk [vmem:[#allocation2 + $0x18] sm:$0xff] %vm283, -inf
          %288 = vst.msk [vmem:[#allocation2 + $0x20] sm:$0xff] %vm283, -inf
          %289 = vst.msk [vmem:[#allocation2 + $0x28] sm:$0xff] %vm283, -inf
          %290 = vst.msk [vmem:[#allocation2 + $0x30] sm:$0xff] %vm283, -inf
          %291 = vst.msk [vmem:[#allocation2 + $0x38] sm:$0xff] %vm283, -inf
          %292 = vst.msk [vmem:[#allocation2 + $0x40] sm:$0xff] %vm283, -inf
          %293 = vst.msk [vmem:[#allocation2 + $0x48] sm:$0xff] %vm283, -inf
          %294 = vst.msk [vmem:[#allocation2 + $0x50] sm:$0xff] %vm283, -inf
          %295 = vst.msk [vmem:[#allocation2 + $0x58] sm:$0xff] %vm283, -inf
          %296 = vst.msk [vmem:[#allocation2 + $0x60] sm:$0xff] %vm283, -inf
          %297 = vst.msk [vmem:[#allocation2 + $0x68] sm:$0xff] %vm283, -inf
          %298 = vst.msk [vmem:[#allocation2 + $0x70] sm:$0xff] %vm283, -inf
          %299 = vst.msk [vmem:[#allocation2 + $0x78] sm:$0xff] %vm283, -inf
          %300 = vst.msk [vmem:[#allocation2 + $0x80] sm:$0xff] %vm283, -inf
          %301 = vst.msk [vmem:[#allocation2 + $0x88] sm:$0xff] %vm283, -inf
          %302 = vst.msk [vmem:[#allocation2 + $0x90] sm:$0xff] %vm283, -inf
          %303 = vst.msk [vmem:[#allocation2 + $0x98] sm:$0xff] %vm283, -inf
          %304 = vst.msk [vmem:[#allocation2 + $0xa0] sm:$0xff] %vm283, -inf
          %305 = vst.msk [vmem:[#allocation2 + $0xa8] sm:$0xff] %vm283, -inf
          %306 = vst.msk [vmem:[#allocation2 + $0xb0] sm:$0xff] %vm283, -inf
          %307 = vst.msk [vmem:[#allocation2 + $0xb8] sm:$0xff] %vm283, -inf
          %308 = vst.msk [vmem:[#allocation2 + $0xc0] sm:$0xff] %vm283, -inf
          %309 = vst.msk [vmem:[#allocation2 + $0xc8] sm:$0xff] %vm283, -inf
          %310 = vst.msk [vmem:[#allocation2 + $0xd0] sm:$0xff] %vm283, -inf
          %311 = vst.msk [vmem:[#allocation2 + $0xd8] sm:$0xff] %vm283, -inf
          %312 = vst.msk [vmem:[#allocation2 + $0xe0] sm:$0xff] %vm283, -inf
          %313 = vst.msk [vmem:[#allocation2 + $0xe8] sm:$0xff] %vm283, -inf
          %314 = vst.msk [vmem:[#allocation2 + $0xf0] sm:$0xff] %vm283, -inf
          %315 = vst.msk [vmem:[#allocation2 + $0xf8] sm:$0xff] %vm283, -inf
          %316 = vst.msk [vmem:[#allocation3] sm:$0xff] %vm283, 0.0
          %317 = vst.msk [vmem:[#allocation3 + $0x8] sm:$0xff] %vm283, 0.0
          %318 = vst.msk [vmem:[#allocation3 + $0x10] sm:$0xff] %vm283, 0.0
          %319 = vst.msk [vmem:[#allocation3 + $0x18] sm:$0xff] %vm283, 0.0
          %320 = vst.msk [vmem:[#allocation3 + $0x20] sm:$0xff] %vm283, 0.0
          %321 = vst.msk [vmem:[#allocation3 + $0x28] sm:$0xff] %vm283, 0.0
          %322 = vst.msk [vmem:[#allocation3 + $0x30] sm:$0xff] %vm283, 0.0
          %323 = vst.msk [vmem:[#allocation3 + $0x38] sm:$0xff] %vm283, 0.0
          %324 = vst.msk [vmem:[#allocation3 + $0x40] sm:$0xff] %vm283, 0.0
          %325 = vst.msk [vmem:[#allocation3 + $0x48] sm:$0xff] %vm283, 0.0
          %326 = vst.msk [vmem:[#allocation3 + $0x50] sm:$0xff] %vm283, 0.0
          %327 = vst.msk [vmem:[#allocation3 + $0x58] sm:$0xff] %vm283, 0.0
          %328 = vst.msk [vmem:[#allocation3 + $0x60] sm:$0xff] %vm283, 0.0
          %329 = vst.msk [vmem:[#allocation3 + $0x68] sm:$0xff] %vm283, 0.0
          %330 = vst.msk [vmem:[#allocation3 + $0x70] sm:$0xff] %vm283, 0.0
          %331 = vst.msk [vmem:[#allocation3 + $0x78] sm:$0xff] %vm283, 0.0
          %332 = vst.msk [vmem:[#allocation3 + $0x80] sm:$0xff] %vm283, 0.0
          %333 = vst.msk [vmem:[#allocation3 + $0x88] sm:$0xff] %vm283, 0.0
          %334 = vst.msk [vmem:[#allocation3 + $0x90] sm:$0xff] %vm283, 0.0
          %335 = vst.msk [vmem:[#allocation3 + $0x98] sm:$0xff] %vm283, 0.0
          %336 = vst.msk [vmem:[#allocation3 + $0xa0] sm:$0xff] %vm283, 0.0
          %337 = vst.msk [vmem:[#allocation3 + $0xa8] sm:$0xff] %vm283, 0.0
          %338 = vst.msk [vmem:[#allocation3 + $0xb0] sm:$0xff] %vm283, 0.0
          %339 = vst.msk [vmem:[#allocation3 + $0xb8] sm:$0xff] %vm283, 0.0
          %340 = vst.msk [vmem:[#allocation3 + $0xc0] sm:$0xff] %vm283, 0.0
          %341 = vst.msk [vmem:[#allocation3 + $0xc8] sm:$0xff] %vm283, 0.0
          %342 = vst.msk [vmem:[#allocation3 + $0xd0] sm:$0xff] %vm283, 0.0
          %343 = vst.msk [vmem:[#allocation3 + $0xd8] sm:$0xff] %vm283, 0.0
          %344 = vst.msk [vmem:[#allocation3 + $0xe0] sm:$0xff] %vm283, 0.0
          %345 = vst.msk [vmem:[#allocation3 + $0xe8] sm:$0xff] %vm283, 0.0
          %346 = vst.msk [vmem:[#allocation3 + $0xf0] sm:$0xff] %vm283, 0.0
          %347 = vst.msk [vmem:[#allocation3 + $0xf8] sm:$0xff] %vm283, 0.0
          %vm348 = vcmask 261120
          %349 = vst.msk [vmem:[#allocation4] sm:$0xff] %vm348, 0.0
          %350 = vst.msk [vmem:[#allocation4 + $0x8] sm:$0xff] %vm348, 0.0
          %351 = vst.msk [vmem:[#allocation4 + $0x10] sm:$0xff] %vm348, 0.0
          %352 = vst.msk [vmem:[#allocation4 + $0x18] sm:$0xff] %vm348, 0.0
          %353 = vst.msk [vmem:[#allocation4 + $0x20] sm:$0xff] %vm348, 0.0
          %354 = vst.msk [vmem:[#allocation4 + $0x28] sm:$0xff] %vm348, 0.0
          %355 = vst.msk [vmem:[#allocation4 + $0x30] sm:$0xff] %vm348, 0.0
          %356 = vst.msk [vmem:[#allocation4 + $0x38] sm:$0xff] %vm348, 0.0
          %357 = vst.msk [vmem:[#allocation4 + $0x40] sm:$0xff] %vm348, 0.0
          %358 = vst.msk [vmem:[#allocation4 + $0x48] sm:$0xff] %vm348, 0.0
          %359 = vst.msk [vmem:[#allocation4 + $0x50] sm:$0xff] %vm348, 0.0
          %360 = vst.msk [vmem:[#allocation4 + $0x58] sm:$0xff] %vm348, 0.0
          %361 = vst.msk [vmem:[#allocation4 + $0x60] sm:$0xff] %vm348, 0.0
          %362 = vst.msk [vmem:[#allocation4 + $0x68] sm:$0xff] %vm348, 0.0
          %363 = vst.msk [vmem:[#allocation4 + $0x70] sm:$0xff] %vm348, 0.0
          %364 = vst.msk [vmem:[#allocation4 + $0x78] sm:$0xff] %vm348, 0.0
          %365 = vst.msk [vmem:[#allocation4 + $0x80] sm:$0xff] %vm348, 0.0
          %366 = vst.msk [vmem:[#allocation4 + $0x88] sm:$0xff] %vm348, 0.0
          %367 = vst.msk [vmem:[#allocation4 + $0x90] sm:$0xff] %vm348, 0.0
          %368 = vst.msk [vmem:[#allocation4 + $0x98] sm:$0xff] %vm348, 0.0
          %369 = vst.msk [vmem:[#allocation4 + $0xa0] sm:$0xff] %vm348, 0.0
          %370 = vst.msk [vmem:[#allocation4 + $0xa8] sm:$0xff] %vm348, 0.0
          %371 = vst.msk [vmem:[#allocation4 + $0xb0] sm:$0xff] %vm348, 0.0
          %372 = vst.msk [vmem:[#allocation4 + $0xb8] sm:$0xff] %vm348, 0.0
          %373 = vst.msk [vmem:[#allocation4 + $0xc0] sm:$0xff] %vm348, 0.0
          %374 = vst.msk [vmem:[#allocation4 + $0xc8] sm:$0xff] %vm348, 0.0
          %375 = vst.msk [vmem:[#allocation4 + $0xd0] sm:$0xff] %vm348, 0.0
          %376 = vst.msk [vmem:[#allocation4 + $0xd8] sm:$0xff] %vm348, 0.0
          %377 = vst.msk [vmem:[#allocation4 + $0xe0] sm:$0xff] %vm348, 0.0
          %378 = vst.msk [vmem:[#allocation4 + $0xe8] sm:$0xff] %vm348, 0.0
          %379 = vst.msk [vmem:[#allocation4 + $0xf0] sm:$0xff] %vm348, 0.0
          %380 = vst.msk [vmem:[#allocation4 + $0xf8] sm:$0xff] %vm348, 0.0
        $region36: #{tpu_custom_call.1} parent=31 // pred_fallthru
          _
        %v381 = vld [vmem:[%s256] sm:$0xff]
        %v382 = vld [vmem:[%s256 + $0x8] sm:$0xff]
        %v383 = vld [vmem:[%s256 + $0x10] sm:$0xff]
        %v384 = vld [vmem:[%s256 + $0x18] sm:$0xff]
        %v385 = vld [vmem:[%s256 + $0x20] sm:$0xff]
        %v386 = vld [vmem:[%s256 + $0x28] sm:$0xff]
        %v387 = vld [vmem:[%s256 + $0x30] sm:$0xff]
        %v388 = vld [vmem:[%s256 + $0x38] sm:$0xff]
        %v389 = vld [vmem:[%s256 + $0x40] sm:$0xff]
        %v390 = vld [vmem:[%s256 + $0x48] sm:$0xff]
        %v391 = vld [vmem:[%s256 + $0x50] sm:$0xff]
        %v392 = vld [vmem:[%s256 + $0x58] sm:$0xff]
        %v393 = vld [vmem:[%s256 + $0x60] sm:$0xff]
        %v394 = vld [vmem:[%s256 + $0x68] sm:$0xff]
        %v395 = vld [vmem:[%s256 + $0x70] sm:$0xff]
        %v396 = vld [vmem:[%s256 + $0x78] sm:$0xff]
        %v397 = vld [vmem:[%s256 + $0x80] sm:$0xff]
        %v398 = vld [vmem:[%s256 + $0x88] sm:$0xff]
        %v399 = vld [vmem:[%s256 + $0x90] sm:$0xff]
        %v400 = vld [vmem:[%s256 + $0x98] sm:$0xff]
        %v401 = vld [vmem:[%s256 + $0xa0] sm:$0xff]
        %v402 = vld [vmem:[%s256 + $0xa8] sm:$0xff]
        %v403 = vld [vmem:[%s256 + $0xb0] sm:$0xff]
        %v404 = vld [vmem:[%s256 + $0xb8] sm:$0xff]
        %v405 = vld [vmem:[%s256 + $0xc0] sm:$0xff]
        %v406 = vld [vmem:[%s256 + $0xc8] sm:$0xff]
        %v407 = vld [vmem:[%s256 + $0xd0] sm:$0xff]
        %v408 = vld [vmem:[%s256 + $0xd8] sm:$0xff]
        %v409 = vld [vmem:[%s256 + $0xe0] sm:$0xff]
        %v410 = vld [vmem:[%s256 + $0xe8] sm:$0xff]
        %v411 = vld [vmem:[%s256 + $0xf0] sm:$0xff]
        %v412 = vld [vmem:[%s256 + $0xf8] sm:$0xff]
        %v413 = vmul.f32 %v381, 0.17677669
        %v414 = vmul.f32 %v382, 0.17677669
        %v415 = vmul.f32 %v383, 0.17677669
        %v416 = vmul.f32 %v384, 0.17677669
        %v417 = vmul.f32 %v385, 0.17677669
        %v418 = vmul.f32 %v386, 0.17677669
        %v419 = vmul.f32 %v387, 0.17677669
        %v420 = vmul.f32 %v388, 0.17677669
        %v421 = vmul.f32 %v389, 0.17677669
        %v422 = vmul.f32 %v390, 0.17677669
        %v423 = vmul.f32 %v391, 0.17677669
        %v424 = vmul.f32 %v392, 0.17677669
        %v425 = vmul.f32 %v393, 0.17677669
        %v426 = vmul.f32 %v394, 0.17677669
        %v427 = vmul.f32 %v395, 0.17677669
        %v428 = vmul.f32 %v396, 0.17677669
        %v429 = vmul.f32 %v397, 0.17677669
        %v430 = vmul.f32 %v398, 0.17677669
        %v431 = vmul.f32 %v399, 0.17677669
        %v432 = vmul.f32 %v400, 0.17677669
        %v433 = vmul.f32 %v401, 0.17677669
        %v434 = vmul.f32 %v402, 0.17677669
        %v435 = vmul.f32 %v403, 0.17677669
        %v436 = vmul.f32 %v404, 0.17677669
        %v437 = vmul.f32 %v405, 0.17677669
        %v438 = vmul.f32 %v406, 0.17677669
        %v439 = vmul.f32 %v407, 0.17677669
        %v440 = vmul.f32 %v408, 0.17677669
        %v441 = vmul.f32 %v409, 0.17677669
        %v442 = vmul.f32 %v410, 0.17677669
        %v443 = vmul.f32 %v411, 0.17677669
        %v444 = vmul.f32 %v412, 0.17677669
        %v445 = vld [vmem:[%s266] sm:$0xff]
        %v446 = vld [vmem:[%s266 + $0x8] sm:$0xff]
        %v447 = vld [vmem:[%s266 + $0x10] sm:$0xff]
        %v448 = vld [vmem:[%s266 + $0x18] sm:$0xff]
        %v449 = vld [vmem:[%s266 + $0x20] sm:$0xff]
        %v450 = vld [vmem:[%s266 + $0x28] sm:$0xff]
        %v451 = vld [vmem:[%s266 + $0x30] sm:$0xff]
        %v452 = vld [vmem:[%s266 + $0x38] sm:$0xff]
        %v453 = vld [vmem:[%s266 + $0x40] sm:$0xff]
        %v454 = vld [vmem:[%s266 + $0x48] sm:$0xff]
        %v455 = vld [vmem:[%s266 + $0x50] sm:$0xff]
        %v456 = vld [vmem:[%s266 + $0x58] sm:$0xff]
        %v457 = vld [vmem:[%s266 + $0x60] sm:$0xff]
        %v458 = vld [vmem:[%s266 + $0x68] sm:$0xff]
        %v459 = vld [vmem:[%s266 + $0x70] sm:$0xff]
        %v460 = vld [vmem:[%s266 + $0x78] sm:$0xff]
        %v461 = vld [vmem:[%s266 + $0x80] sm:$0xff]
        %v462 = vld [vmem:[%s266 + $0x88] sm:$0xff]
        %v463 = vld [vmem:[%s266 + $0x90] sm:$0xff]
        %v464 = vld [vmem:[%s266 + $0x98] sm:$0xff]
        %v465 = vld [vmem:[%s266 + $0xa0] sm:$0xff]
        %v466 = vld [vmem:[%s266 + $0xa8] sm:$0xff]
        %v467 = vld [vmem:[%s266 + $0xb0] sm:$0xff]
        %v468 = vld [vmem:[%s266 + $0xb8] sm:$0xff]
        %v469 = vld [vmem:[%s266 + $0xc0] sm:$0xff]
        %v470 = vld [vmem:[%s266 + $0xc8] sm:$0xff]
        %v471 = vld [vmem:[%s266 + $0xd0] sm:$0xff]
        %v472 = vld [vmem:[%s266 + $0xd8] sm:$0xff]
        %v473 = vld [vmem:[%s266 + $0xe0] sm:$0xff]
        %v474 = vld [vmem:[%s266 + $0xe8] sm:$0xff]
        %v475 = vld [vmem:[%s266 + $0xf0] sm:$0xff]
        %v476 = vld [vmem:[%s266 + $0xf8] sm:$0xff]
        %v477 = vld [vmem:[%s266 + $0x100] sm:$0xff]
        %v478 = vld [vmem:[%s266 + $0x108] sm:$0xff]
        %v479 = vld [vmem:[%s266 + $0x110] sm:$0xff]
        %v480 = vld [vmem:[%s266 + $0x118] sm:$0xff]
        %v481 = vld [vmem:[%s266 + $0x120] sm:$0xff]
        %v482 = vld [vmem:[%s266 + $0x128] sm:$0xff]
        %v483 = vld [vmem:[%s266 + $0x130] sm:$0xff]
        %v484 = vld [vmem:[%s266 + $0x138] sm:$0xff]
        %v485 = vld [vmem:[%s266 + $0x140] sm:$0xff]
        %v486 = vld [vmem:[%s266 + $0x148] sm:$0xff]
        %v487 = vld [vmem:[%s266 + $0x150] sm:$0xff]
        %v488 = vld [vmem:[%s266 + $0x158] sm:$0xff]
        %v489 = vld [vmem:[%s266 + $0x160] sm:$0xff]
        %v490 = vld [vmem:[%s266 + $0x168] sm:$0xff]
        %v491 = vld [vmem:[%s266 + $0x170] sm:$0xff]
        %v492 = vld [vmem:[%s266 + $0x178] sm:$0xff]
        %v493 = vld [vmem:[%s266 + $0x180] sm:$0xff]
        %v494 = vld [vmem:[%s266 + $0x188] sm:$0xff]
        %v495 = vld [vmem:[%s266 + $0x190] sm:$0xff]
        %v496 = vld [vmem:[%s266 + $0x198] sm:$0xff]
        %v497 = vld [vmem:[%s266 + $0x1a0] sm:$0xff]
        %v498 = vld [vmem:[%s266 + $0x1a8] sm:$0xff]
        %v499 = vld [vmem:[%s266 + $0x1b0] sm:$0xff]
        %v500 = vld [vmem:[%s266 + $0x1b8] sm:$0xff]
        %v501 = vld [vmem:[%s266 + $0x1c0] sm:$0xff]
        %v502 = vld [vmem:[%s266 + $0x1c8] sm:$0xff]
        %v503 = vld [vmem:[%s266 + $0x1d0] sm:$0xff]
        %v504 = vld [vmem:[%s266 + $0x1d8] sm:$0xff]
        %v505 = vld [vmem:[%s266 + $0x1e0] sm:$0xff]
        %v506 = vld [vmem:[%s266 + $0x1e8] sm:$0xff]
        %v507 = vld [vmem:[%s266 + $0x1f0] sm:$0xff]
        %v508 = vld [vmem:[%s266 + $0x1f8] sm:$0xff]
        %v509 = vld [vmem:[%s276] sm:$0xff]
        %v510 = vld [vmem:[%s276 + $0x8] sm:$0xff]
        %v511 = vld [vmem:[%s276 + $0x10] sm:$0xff]
        %v512 = vld [vmem:[%s276 + $0x18] sm:$0xff]
        %v513 = vld [vmem:[%s276 + $0x20] sm:$0xff]
        %v514 = vld [vmem:[%s276 + $0x28] sm:$0xff]
        %v515 = vld [vmem:[%s276 + $0x30] sm:$0xff]
        %v516 = vld [vmem:[%s276 + $0x38] sm:$0xff]
        %v517 = vld [vmem:[%s276 + $0x40] sm:$0xff]
        %v518 = vld [vmem:[%s276 + $0x48] sm:$0xff]
        %v519 = vld [vmem:[%s276 + $0x50] sm:$0xff]
        %v520 = vld [vmem:[%s276 + $0x58] sm:$0xff]
        %v521 = vld [vmem:[%s276 + $0x60] sm:$0xff]
        %v522 = vld [vmem:[%s276 + $0x68] sm:$0xff]
        %v523 = vld [vmem:[%s276 + $0x70] sm:$0xff]
        %v524 = vld [vmem:[%s276 + $0x78] sm:$0xff]
        %v525 = vld [vmem:[%s276 + $0x80] sm:$0xff]
        %v526 = vld [vmem:[%s276 + $0x88] sm:$0xff]
        %v527 = vld [vmem:[%s276 + $0x90] sm:$0xff]
        %v528 = vld [vmem:[%s276 + $0x98] sm:$0xff]
        %v529 = vld [vmem:[%s276 + $0xa0] sm:$0xff]
        %v530 = vld [vmem:[%s276 + $0xa8] sm:$0xff]
        %v531 = vld [vmem:[%s276 + $0xb0] sm:$0xff]
        %v532 = vld [vmem:[%s276 + $0xb8] sm:$0xff]
        %v533 = vld [vmem:[%s276 + $0xc0] sm:$0xff]
        %v534 = vld [vmem:[%s276 + $0xc8] sm:$0xff]
        %v535 = vld [vmem:[%s276 + $0xd0] sm:$0xff]
        %v536 = vld [vmem:[%s276 + $0xd8] sm:$0xff]
        %v537 = vld [vmem:[%s276 + $0xe0] sm:$0xff]
        %v538 = vld [vmem:[%s276 + $0xe8] sm:$0xff]
        %v539 = vld [vmem:[%s276 + $0xf0] sm:$0xff]
        %v540 = vld [vmem:[%s276 + $0xf8] sm:$0xff]
        %v541 = vld [vmem:[%s276 + $0x100] sm:$0xff]
        %v542 = vld [vmem:[%s276 + $0x108] sm:$0xff]
        %v543 = vld [vmem:[%s276 + $0x110] sm:$0xff]
        %v544 = vld [vmem:[%s276 + $0x118] sm:$0xff]
        %v545 = vld [vmem:[%s276 + $0x120] sm:$0xff]
        %v546 = vld [vmem:[%s276 + $0x128] sm:$0xff]
        %v547 = vld [vmem:[%s276 + $0x130] sm:$0xff]
        %v548 = vld [vmem:[%s276 + $0x138] sm:$0xff]
        %v549 = vld [vmem:[%s276 + $0x140] sm:$0xff]
        %v550 = vld [vmem:[%s276 + $0x148] sm:$0xff]
        %v551 = vld [vmem:[%s276 + $0x150] sm:$0xff]
        %v552 = vld [vmem:[%s276 + $0x158] sm:$0xff]
        %v553 = vld [vmem:[%s276 + $0x160] sm:$0xff]
        %v554 = vld [vmem:[%s276 + $0x168] sm:$0xff]
        %v555 = vld [vmem:[%s276 + $0x170] sm:$0xff]
        %v556 = vld [vmem:[%s276 + $0x178] sm:$0xff]
        %v557 = vld [vmem:[%s276 + $0x180] sm:$0xff]
        %v558 = vld [vmem:[%s276 + $0x188] sm:$0xff]
        %v559 = vld [vmem:[%s276 + $0x190] sm:$0xff]
        %v560 = vld [vmem:[%s276 + $0x198] sm:$0xff]
        %v561 = vld [vmem:[%s276 + $0x1a0] sm:$0xff]
        %v562 = vld [vmem:[%s276 + $0x1a8] sm:$0xff]
        %v563 = vld [vmem:[%s276 + $0x1b0] sm:$0xff]
        %v564 = vld [vmem:[%s276 + $0x1b8] sm:$0xff]
        %v565 = vld [vmem:[%s276 + $0x1c0] sm:$0xff]
        %v566 = vld [vmem:[%s276 + $0x1c8] sm:$0xff]
        %v567 = vld [vmem:[%s276 + $0x1d0] sm:$0xff]
        %v568 = vld [vmem:[%s276 + $0x1d8] sm:$0xff]
        %v569 = vld [vmem:[%s276 + $0x1e0] sm:$0xff]
        %v570 = vld [vmem:[%s276 + $0x1e8] sm:$0xff]
        %v571 = vld [vmem:[%s276 + $0x1f0] sm:$0xff]
        %v572 = vld [vmem:[%s276 + $0x1f8] sm:$0xff]
        %vm573 = vcmask 261120
        %v575 = vsel %vm573, %v413, 0
        %v578 = vsel %vm573, %v414, 0
        %v581 = vsel %vm573, %v415, 0
        %v584 = vsel %vm573, %v416, 0
        %v587 = vsel %vm573, %v417, 0
        %v590 = vsel %vm573, %v418, 0
        %v593 = vsel %vm573, %v419, 0
        %v596 = vsel %vm573, %v420, 0
        %v599 = vsel %vm573, %v445, 0
        %v602 = vsel %vm573, %v446, 0
        %v605 = vsel %vm573, %v447, 0
        %v608 = vsel %vm573, %v448, 0
        %v611 = vsel %vm573, %v449, 0
        %v614 = vsel %vm573, %v450, 0
        %v617 = vsel %vm573, %v451, 0
        %v620 = vsel %vm573, %v452, 0
        %v623 = vsel %vm573, %v453, 0
        %v626 = vsel %vm573, %v454, 0
        %v629 = vsel %vm573, %v455, 0
        %v632 = vsel %vm573, %v456, 0
        %v635 = vsel %vm573, %v457, 0
        %v638 = vsel %vm573, %v458, 0
        %v641 = vsel %vm573, %v459, 0
        %v644 = vsel %vm573, %v460, 0
        %646 = vmatprep.subr.mxu0 0.0
        %647 = vmatpush1.xpose.msra.mxu0 %v599
        %648 = vmatprep.subr.mxu0 0.0
        %649 = vmatpush1.xpose.msra.mxu0 %v602
        %650 = vmatprep.subr.mxu0 0.0
        %651 = vmatpush1.xpose.msra.mxu0 %v605
        %652 = vmatprep.subr.mxu0 0.0
        %653 = vmatpush1.xpose.msra.mxu0 %v608
        %654 = vmatprep.subr.mxu0 0.0
        %655 = vmatpush1.xpose.msra.mxu0 %v611
        %656 = vmatprep.subr.mxu0 0.0
        %657 = vmatpush1.xpose.msra.mxu0 %v614
        %658 = vmatprep.subr.mxu0 0.0
        %659 = vmatpush1.xpose.msra.mxu0 %v617
        %660 = vmatprep.subr.mxu0 0.0
        %661 = vmatpush1.xpose.msra.mxu0 %v620
        %662 = vmatprep.subr.mxu0 0.0
        %663 = vmatpush1.xpose.msra.mxu0 %v623
        %664 = vmatprep.subr.mxu0 0.0
        %665 = vmatpush1.xpose.msra.mxu0 %v626
        %666 = vmatprep.subr.mxu0 0.0
        %667 = vmatpush1.xpose.msra.mxu0 %v629
        %668 = vmatprep.subr.mxu0 0.0
        %669 = vmatpush1.xpose.msra.mxu0 %v632
        %670 = vmatprep.subr.mxu0 0.0
        %671 = vmatpush1.xpose.msra.mxu0 %v635
        %672 = vmatprep.subr.mxu0 0.0
        %673 = vmatpush1.xpose.msra.mxu0 %v638
        %674 = vmatprep.subr.mxu0 0.0
        %675 = vmatpush1.xpose.msra.mxu0 %v641
        %676 = vmatprep.subr.mxu0 0.0
        %677 = vmatpush1.xpose.msra.mxu0 %v644
        %678 = vmatprep.subr.mxu0 0.0
        %679 = vmatpush1.xpose.msra.mxu0 0.0
        %680 = vmatprep.subr.mxu0 0.0
        %681 = vmatpush1.xpose.msra.mxu0 0.0
        %682 = vmatprep.subr.mxu0 0.0
        %683 = vmatpush1.xpose.msra.mxu0 0.0
        %684 = vmatprep.subr.mxu0 0.0
        %685 = vmatpush1.xpose.msra.mxu0 0.0
        %686 = vmatprep.subr.mxu0 0.0
        %687 = vmatpush1.xpose.msra.mxu0 0.0
        %688 = vmatprep.subr.mxu0 0.0
        %689 = vmatpush1.xpose.msra.mxu0 0.0
        %690 = vmatprep.subr.mxu0 0.0
        %691 = vmatpush1.xpose.msra.mxu0 0.0
        %692 = vmatprep.subr.mxu0 0.0
        %693 = vmatpush1.xpose.msra.mxu0 0.0
        %694 = vmatprep.subr.mxu0 0.0
        %695 = vmatpush1.xpose.msra.mxu0 0.0
        %696 = vmatprep.subr.mxu0 0.0
        %697 = vmatpush1.xpose.msra.mxu0 0.0
        %698 = vmatprep.subr.mxu0 0.0
        %699 = vmatpush1.xpose.msra.mxu0 0.0
        %700 = vmatprep.subr.mxu0 0.0
        %701 = vmatpush1.xpose.msra.mxu0 0.0
        %702 = vmatprep.subr.mxu0 0.0
        %703 = vmatpush1.xpose.msra.mxu0 0.0
        %704 = vmatprep.subr.mxu0 0.0
        %705 = vmatpush1.xpose.msra.mxu0 0.0
        %706 = vmatprep.subr.mxu0 0.0
        %707 = vmatpush1.xpose.msra.mxu0 0.0
        %708 = vmatprep.subr.mxu0 0.0
        %709 = vmatpush1.xpose.msra.mxu0 0.0
        %710 = vmatprep.mubr.f32.mxu0 0.0
        %711 = vmatmul.mubr.f32.gmra.mrb[0].mxu0 %v575
        %v712 = vpop.f32.mrb[0].mxu0
        %v713 = vadd.f32 0.0, %v712
        %v714 = vpop.f32.mrb[0].mxu0
        %715 = vmatprep.mubr.f32.mxu0 0.0
        %716 = vmatmul.mubr.f32.gmra.mrb[0].mxu0 %v578
        %v717 = vpop.f32.mrb[0].mxu0
        %v718 = vadd.f32 0.0, %v717
        %v719 = vpop.f32.mrb[0].mxu0
        %720 = vmatprep.mubr.f32.mxu0 0.0
        %721 = vmatmul.mubr.f32.gmra.mrb[0].mxu0 %v581
        %v722 = vpop.f32.mrb[0].mxu0
        %v723 = vadd.f32 0.0, %v722
        %v724 = vpop.f32.mrb[0].mxu0
        %725 = vmatprep.mubr.f32.mxu0 0.0
        %726 = vmatmul.mubr.f32.gmra.mrb[0].mxu0 %v584
        %v727 = vpop.f32.mrb[0].mxu0
        %v728 = vadd.f32 0.0, %v727
        %v729 = vpop.f32.mrb[0].mxu0
        %730 = vmatprep.mubr.f32.mxu0 0.0
        %731 = vmatmul.mubr.f32.gmra.mrb[0].mxu0 %v587
        %v732 = vpop.f32.mrb[0].mxu0
        %v733 = vadd.f32 0.0, %v732
        %v734 = vpop.f32.mrb[0].mxu0
        %735 = vmatprep.mubr.f32.mxu0 0.0
        %736 = vmatmul.mubr.f32.gmra.mrb[0].mxu0 %v590
        %v737 = vpop.f32.mrb[0].mxu0
        %v738 = vadd.f32 0.0, %v737
        %v739 = vpop.f32.mrb[0].mxu0
        %740 = vmatprep.mubr.f32.mxu0 0.0
        %741 = vmatmul.mubr.f32.gmra.mrb[0].mxu0 %v593
        %v742 = vpop.f32.mrb[0].mxu0
        %v743 = vadd.f32 0.0, %v742
        %v744 = vpop.f32.mrb[0].mxu0
        %745 = vmatprep.mubr.f32.mxu0 0.0
        %746 = vmatmul.mubr.f32.gmra.mrb[0].mxu0 %v596
        %v747 = vpop.f32.mrb[0].mxu0
        %v748 = vadd.f32 0.0, %v747
        %v749 = vpop.f32.mrb[0].mxu0
        %750 = vdwg.mxu0
        %v752 = vsel %vm573, %v421, 0
        %v755 = vsel %vm573, %v422, 0
        %v758 = vsel %vm573, %v423, 0
        %v761 = vsel %vm573, %v424, 0
        %v764 = vsel %vm573, %v425, 0
        %v767 = vsel %vm573, %v426, 0
        %v770 = vsel %vm573, %v427, 0
        %v773 = vsel %vm573, %v428, 0
        %v776 = vsel %vm573, %v461, 0
        %v779 = vsel %vm573, %v462, 0
        %v782 = vsel %vm573, %v463, 0
        %v785 = vsel %vm573, %v464, 0
        %v788 = vsel %vm573, %v465, 0
        %v791 = vsel %vm573, %v466, 0
        %v794 = vsel %vm573, %v467, 0
        %v797 = vsel %vm573, %v468, 0
        %v800 = vsel %vm573, %v469, 0
        %v803 = vsel %vm573, %v470, 0
        %v806 = vsel %vm573, %v471, 0
        %v809 = vsel %vm573, %v472, 0
        %v812 = vsel %vm573, %v473, 0
        %v815 = vsel %vm573, %v474, 0
        %v818 = vsel %vm573, %v475, 0
        %v821 = vsel %vm573, %v476, 0
        %823 = vmatprep.subr.mxu0 0.0
        %824 = vmatpush1.xpose.msra.mxu0 %v776
        %825 = vmatprep.subr.mxu0 0.0
        %826 = vmatpush1.xpose.msra.mxu0 %v779
        %827 = vmatprep.subr.mxu0 0.0
        %828 = vmatpush1.xpose.msra.mxu0 %v782
        %829 = vmatprep.subr.mxu0 0.0
        %830 = vmatpush1.xpose.msra.mxu0 %v785
        %831 = vmatprep.subr.mxu0 0.0
        %832 = vmatpush1.xpose.msra.mxu0 %v788
        %833 = vmatprep.subr.mxu0 0.0
        %834 = vmatpush1.xpose.msra.mxu0 %v791
        %835 = vmatprep.subr.mxu0 0.0
        %836 = vmatpush1.xpose.msra.mxu0 %v794
        %837 = vmatprep.subr.mxu0 0.0
        %838 = vmatpush1.xpose.msra.mxu0 %v797
        %839 = vmatprep.subr.mxu0 0.0
        %840 = vmatpush1.xpose.msra.mxu0 %v800
        %841 = vmatprep.subr.mxu0 0.0
        %842 = vmatpush1.xpose.msra.mxu0 %v803
        %843 = vmatprep.subr.mxu0 0.0
        %844 = vmatpush1.xpose.msra.mxu0 %v806
        %845 = vmatprep.subr.mxu0 0.0
        %846 = vmatpush1.xpose.msra.mxu0 %v809
        %847 = vmatprep.subr.mxu0 0.0
        %848 = vmatpush1.xpose.msra.mxu0 %v812
        %849 = vmatprep.subr.mxu0 0.0
        %850 = vmatpush1.xpose.msra.mxu0 %v815
        %851 = vmatprep.subr.mxu0 0.0
        %852 = vmatpush1.xpose.msra.mxu0 %v818
        %853 = vmatprep.subr.mxu0 0.0
        %854 = vmatpush1.xpose.msra.mxu0 %v821
        %855 = vmatprep.subr.mxu0 0.0
        %856 = vmatpush1.xpose.msra.mxu0 0.0
        %857 = vmatprep.subr.mxu0 0.0
        %858 = vmatpush1.xpose.msra.mxu0 0.0
        %859 = vmatprep.subr.mxu0 0.0
        %860 = vmatpush1.xpose.msra.mxu0 0.0
        %861 = vmatprep.subr.mxu0 0.0
        %862 = vmatpush1.xpose.msra.mxu0 0.0
        %863 = vmatprep.subr.mxu0 0.0
        %864 = vmatpush1.xpose.msra.mxu0 0.0
        %865 = vmatprep.subr.mxu0 0.0
        %866 = vmatpush1.xpose.msra.mxu0 0.0
        %867 = vmatprep.subr.mxu0 0.0
        %868 = vmatpush1.xpose.msra.mxu0 0.0
        %869 = vmatprep.subr.mxu0 0.0
        %870 = vmatpush1.xpose.msra.mxu0 0.0
        %871 = vmatprep.subr.mxu0 0.0
        %872 = vmatpush1.xpose.msra.mxu0 0.0
        %873 = vmatprep.subr.mxu0 0.0
        %874 = vmatpush1.xpose.msra.mxu0 0.0
        %875 = vmatprep.subr.mxu0 0.0
        %876 = vmatpush1.xpose.msra.mxu0 0.0
        %877 = vmatprep.subr.mxu0 0.0
        %878 = vmatpush1.xpose.msra.mxu0 0.0
        %879 = vmatprep.subr.mxu0 0.0
        %880 = vmatpush1.xpose.msra.mxu0 0.0
        %881 = vmatprep.subr.mxu0 0.0
        %882 = vmatpush1.xpose.msra.mxu0 0.0
        %883 = vmatprep.subr.mxu0 0.0
        %884 = vmatpush1.xpose.msra.mxu0 0.0
        %885 = vmatprep.subr.mxu0 0.0
        %886 = vmatpush1.xpose.msra.mxu0 0.0
        %887 = vmatprep.mubr.f32.mxu0 0.0
        %888 = vmatmul.mubr.f32.gmra.mrb[0].mxu0 %v752
        %v889 = vpop.f32.mrb[0].mxu0
        %v890 = vadd.f32 0.0, %v889
        %v891 = vpop.f32.mrb[0].mxu0
        %892 = vmatprep.mubr.f32.mxu0 0.0
        %893 = vmatmul.mubr.f32.gmra.mrb[0].mxu0 %v755
        %v894 = vpop.f32.mrb[0].mxu0
        %v895 = vadd.f32 0.0, %v894
        %v896 = vpop.f32.mrb[0].mxu0
        %897 = vmatprep.mubr.f32.mxu0 0.0
        %898 = vmatmul.mubr.f32.gmra.mrb[0].mxu0 %v758
        %v899 = vpop.f32.mrb[0].mxu0
        %v900 = vadd.f32 0.0, %v899
        %v901 = vpop.f32.mrb[0].mxu0
        %902 = vmatprep.mubr.f32.mxu0 0.0
        %903 = vmatmul.mubr.f32.gmra.mrb[0].mxu0 %v761
        %v904 = vpop.f32.mrb[0].mxu0
        %v905 = vadd.f32 0.0, %v904
        %v906 = vpop.f32.mrb[0].mxu0
        %907 = vmatprep.mubr.f32.mxu0 0.0
        %908 = vmatmul.mubr.f32.gmra.mrb[0].mxu0 %v764
        %v909 = vpop.f32.mrb[0].mxu0
        %v910 = vadd.f32 0.0, %v909
        %v911 = vpop.f32.mrb[0].mxu0
        %912 = vmatprep.mubr.f32.mxu0 0.0
        %913 = vmatmul.mubr.f32.gmra.mrb[0].mxu0 %v767
        %v914 = vpop.f32.mrb[0].mxu0
        %v915 = vadd.f32 0.0, %v914
        %v916 = vpop.f32.mrb[0].mxu0
        %917 = vmatprep.mubr.f32.mxu0 0.0
        %918 = vmatmul.mubr.f32.gmra.mrb[0].mxu0 %v770
        %v919 = vpop.f32.mrb[0].mxu0
        %v920 = vadd.f32 0.0, %v919
        %v921 = vpop.f32.mrb[0].mxu0
        %922 = vmatprep.mubr.f32.mxu0 0.0
        %923 = vmatmul.mubr.f32.gmra.mrb[0].mxu0 %v773
        %v924 = vpop.f32.mrb[0].mxu0
        %v925 = vadd.f32 0.0, %v924
        %v926 = vpop.f32.mrb[0].mxu0
        %927 = vdwg.mxu0
        %v929 = vsel %vm573, %v429, 0
        %v932 = vsel %vm573, %v430, 0
        %v935 = vsel %vm573, %v431, 0
        %v938 = vsel %vm573, %v432, 0
        %v941 = vsel %vm573, %v433, 0
        %v944 = vsel %vm573, %v434, 0
        %v947 = vsel %vm573, %v435, 0
        %v950 = vsel %vm573, %v436, 0
        %v953 = vsel %vm573, %v477, 0
        %v956 = vsel %vm573, %v478, 0
        %v959 = vsel %vm573, %v479, 0
        %v962 = vsel %vm573, %v480, 0
        %v965 = vsel %vm573, %v481, 0
        %v968 = vsel %vm573, %v482, 0
        %v971 = vsel %vm573, %v483, 0
        %v974 = vsel %vm573, %v484, 0
        %v977 = vsel %vm573, %v485, 0
        %v980 = vsel %vm573, %v486, 0
        %v983 = vsel %vm573, %v487, 0
        %v986 = vsel %vm573, %v488, 0
        %v989 = vsel %vm573, %v489, 0
        %v992 = vsel %vm573, %v490, 0
        %v995 = vsel %vm573, %v491, 0
        %v998 = vsel %vm573, %v492, 0
        %1000 = vmatprep.subr.mxu0 0.0
        %1001 = vmatpush1.xpose.msra.mxu0 %v953
        %1002 = vmatprep.subr.mxu0 0.0
        %1003 = vmatpush1.xpose.msra.mxu0 %v956
        %1004 = vmatprep.subr.mxu0 0.0
        %1005 = vmatpush1.xpose.msra.mxu0 %v959
        %1006 = vmatprep.subr.mxu0 0.0
        %1007 = vmatpush1.xpose.msra.mxu0 %v962
        %1008 = vmatprep.subr.mxu0 0.0
        %1009 = vmatpush1.xpose.msra.mxu0 %v965
        %1010 = vmatprep.subr.mxu0 0.0
        %1011 = vmatpush1.xpose.msra.mxu0 %v968
        %1012 = vmatprep.subr.mxu0 0.0
        %1013 = vmatpush1.xpose.msra.mxu0 %v971
        %1014 = vmatprep.subr.mxu0 0.0
        %1015 = vmatpush1.xpose.msra.mxu0 %v974
        %1016 = vmatprep.subr.mxu0 0.0
        %1017 = vmatpush1.xpose.msra.mxu0 %v977
        %1018 = vmatprep.subr.mxu0 0.0
        %1019 = vmatpush1.xpose.msra.mxu0 %v980
        %1020 = vmatprep.subr.mxu0 0.0
        %1021 = vmatpush1.xpose.msra.mxu0 %v983
        %1022 = vmatprep.subr.mxu0 0.0
        %1023 = vmatpush1.xpose.msra.mxu0 %v986
        %1024 = vmatprep.subr.mxu0 0.0
        %1025 = vmatpush1.xpose.msra.mxu0 %v989
        %1026 = vmatprep.subr.mxu0 0.0
        %1027 = vmatpush1.xpose.msra.mxu0 %v992
        %1028 = vmatprep.subr.mxu0 0.0
        %1029 = vmatpush1.xpose.msra.mxu0 %v995
        %1030 = vmatprep.subr.mxu0 0.0
        %1031 = vmatpush1.xpose.msra.mxu0 %v998
        %1032 = vmatprep.subr.mxu0 0.0
        %1033 = vmatpush1.xpose.msra.mxu0 0.0
        %1034 = vmatprep.subr.mxu0 0.0
        %1035 = vmatpush1.xpose.msra.mxu0 0.0
        %1036 = vmatprep.subr.mxu0 0.0
        %1037 = vmatpush1.xpose.msra.mxu0 0.0
        %1038 = vmatprep.subr.mxu0 0.0
        %1039 = vmatpush1.xpose.msra.mxu0 0.0
        %1040 = vmatprep.subr.mxu0 0.0
        %1041 = vmatpush1.xpose.msra.mxu0 0.0
        %1042 = vmatprep.subr.mxu0 0.0
        %1043 = vmatpush1.xpose.msra.mxu0 0.0
        %1044 = vmatprep.subr.mxu0 0.0
        %1045 = vmatpush1.xpose.msra.mxu0 0.0
        %1046 = vmatprep.subr.mxu0 0.0
        %1047 = vmatpush1.xpose.msra.mxu0 0.0
        %1048 = vmatprep.subr.mxu0 0.0
        %1049 = vmatpush1.xpose.msra.mxu0 0.0
        %1050 = vmatprep.subr.mxu0 0.0
        %1051 = vmatpush1.xpose.msra.mxu0 0.0
        %1052 = vmatprep.subr.mxu0 0.0
        %1053 = vmatpush1.xpose.msra.mxu0 0.0
        %1054 = vmatprep.subr.mxu0 0.0
        %1055 = vmatpush1.xpose.msra.mxu0 0.0
        %1056 = vmatprep.subr.mxu0 0.0
        %1057 = vmatpush1.xpose.msra.mxu0 0.0
        %1058 = vmatprep.subr.mxu0 0.0
        %1059 = vmatpush1.xpose.msra.mxu0 0.0
        %1060 = vmatprep.subr.mxu0 0.0
        %1061 = vmatpush1.xpose.msra.mxu0 0.0
        %1062 = vmatprep.subr.mxu0 0.0
        %1063 = vmatpush1.xpose.msra.mxu0 0.0
        %1064 = vmatprep.mubr.f32.mxu0 0.0
        %1065 = vmatmul.mubr.f32.gmra.mrb[0].mxu0 %v929
        %v1066 = vpop.f32.mrb[0].mxu0
        %v1067 = vadd.f32 0.0, %v1066
        %v1068 = vpop.f32.mrb[0].mxu0
        %1069 = vmatprep.mubr.f32.mxu0 0.0
        %1070 = vmatmul.mubr.f32.gmra.mrb[0].mxu0 %v932
        %v1071 = vpop.f32.mrb[0].mxu0
        %v1072 = vadd.f32 0.0, %v1071
        %v1073 = vpop.f32.mrb[0].mxu0
        %1074 = vmatprep.mubr.f32.mxu0 0.0
        %1075 = vmatmul.mubr.f32.gmra.mrb[0].mxu0 %v935
        %v1076 = vpop.f32.mrb[0].mxu0
        %v1077 = vadd.f32 0.0, %v1076
        %v1078 = vpop.f32.mrb[0].mxu0
        %1079 = vmatprep.mubr.f32.mxu0 0.0
        %1080 = vmatmul.mubr.f32.gmra.mrb[0].mxu0 %v938
        %v1081 = vpop.f32.mrb[0].mxu0
        %v1082 = vadd.f32 0.0, %v1081
        %v1083 = vpop.f32.mrb[0].mxu0
        %1084 = vmatprep.mubr.f32.mxu0 0.0
        %1085 = vmatmul.mubr.f32.gmra.mrb[0].mxu0 %v941
        %v1086 = vpop.f32.mrb[0].mxu0
        %v1087 = vadd.f32 0.0, %v1086
        %v1088 = vpop.f32.mrb[0].mxu0
        %1089 = vmatprep.mubr.f32.mxu0 0.0
        %1090 = vmatmul.mubr.f32.gmra.mrb[0].mxu0 %v944
        %v1091 = vpop.f32.mrb[0].mxu0
        %v1092 = vadd.f32 0.0, %v1091
        %v1093 = vpop.f32.mrb[0].mxu0
        %1094 = vmatprep.mubr.f32.mxu0 0.0
        %1095 = vmatmul.mubr.f32.gmra.mrb[0].mxu0 %v947
        %v1096 = vpop.f32.mrb[0].mxu0
        %v1097 = vadd.f32 0.0, %v1096
        %v1098 = vpop.f32.mrb[0].mxu0
        %1099 = vmatprep.mubr.f32.mxu0 0.0
        %1100 = vmatmul.mubr.f32.gmra.mrb[0].mxu0 %v950
        %v1101 = vpop.f32.mrb[0].mxu0
        %v1102 = vadd.f32 0.0, %v1101
        %v1103 = vpop.f32.mrb[0].mxu0
        %1104 = vdwg.mxu0
        %v1106 = vsel %vm573, %v437, 0
        %v1109 = vsel %vm573, %v438, 0
        %v1112 = vsel %vm573, %v439, 0
        %v1115 = vsel %vm573, %v440, 0
        %v1118 = vsel %vm573, %v441, 0
        %v1121 = vsel %vm573, %v442, 0
        %v1124 = vsel %vm573, %v443, 0
        %v1127 = vsel %vm573, %v444, 0
        %v1130 = vsel %vm573, %v493, 0
        %v1133 = vsel %vm573, %v494, 0
        %v1136 = vsel %vm573, %v495, 0
        %v1139 = vsel %vm573, %v496, 0
        %v1142 = vsel %vm573, %v497, 0
        %v1145 = vsel %vm573, %v498, 0
        %v1148 = vsel %vm573, %v499, 0
        %v1151 = vsel %vm573, %v500, 0
        %v1154 = vsel %vm573, %v501, 0
        %v1157 = vsel %vm573, %v502, 0
        %v1160 = vsel %vm573, %v503, 0
        %v1163 = vsel %vm573, %v504, 0
        %v1166 = vsel %vm573, %v505, 0
        %v1169 = vsel %vm573, %v506, 0
        %v1172 = vsel %vm573, %v507, 0
        %v1175 = vsel %vm573, %v508, 0
        %1177 = vmatprep.subr.mxu0 0.0
        %1178 = vmatpush1.xpose.msra.mxu0 %v1130
        %1179 = vmatprep.subr.mxu0 0.0
        %1180 = vmatpush1.xpose.msra.mxu0 %v1133
        %1181 = vmatprep.subr.mxu0 0.0
        %1182 = vmatpush1.xpose.msra.mxu0 %v1136
        %1183 = vmatprep.subr.mxu0 0.0
        %1184 = vmatpush1.xpose.msra.mxu0 %v1139
        %1185 = vmatprep.subr.mxu0 0.0
        %1186 = vmatpush1.xpose.msra.mxu0 %v1142
        %1187 = vmatprep.subr.mxu0 0.0
        %1188 = vmatpush1.xpose.msra.mxu0 %v1145
        %1189 = vmatprep.subr.mxu0 0.0
        %1190 = vmatpush1.xpose.msra.mxu0 %v1148
        %1191 = vmatprep.subr.mxu0 0.0
        %1192 = vmatpush1.xpose.msra.mxu0 %v1151
        %1193 = vmatprep.subr.mxu0 0.0
        %1194 = vmatpush1.xpose.msra.mxu0 %v1154
        %1195 = vmatprep.subr.mxu0 0.0
        %1196 = vmatpush1.xpose.msra.mxu0 %v1157
        %1197 = vmatprep.subr.mxu0 0.0
        %1198 = vmatpush1.xpose.msra.mxu0 %v1160
        %1199 = vmatprep.subr.mxu0 0.0
        %1200 = vmatpush1.xpose.msra.mxu0 %v1163
        %1201 = vmatprep.subr.mxu0 0.0
        %1202 = vmatpush1.xpose.msra.mxu0 %v1166
        %1203 = vmatprep.subr.mxu0 0.0
        %1204 = vmatpush1.xpose.msra.mxu0 %v1169
        %1205 = vmatprep.subr.mxu0 0.0
        %1206 = vmatpush1.xpose.msra.mxu0 %v1172
        %1207 = vmatprep.subr.mxu0 0.0
        %1208 = vmatpush1.xpose.msra.mxu0 %v1175
        %1209 = vmatprep.subr.mxu0 0.0
        %1210 = vmatpush1.xpose.msra.mxu0 0.0
        %1211 = vmatprep.subr.mxu0 0.0
        %1212 = vmatpush1.xpose.msra.mxu0 0.0
        %1213 = vmatprep.subr.mxu0 0.0
        %1214 = vmatpush1.xpose.msra.mxu0 0.0
        %1215 = vmatprep.subr.mxu0 0.0
        %1216 = vmatpush1.xpose.msra.mxu0 0.0
        %1217 = vmatprep.subr.mxu0 0.0
        %1218 = vmatpush1.xpose.msra.mxu0 0.0
        %1219 = vmatprep.subr.mxu0 0.0
        %1220 = vmatpush1.xpose.msra.mxu0 0.0
        %1221 = vmatprep.subr.mxu0 0.0
        %1222 = vmatpush1.xpose.msra.mxu0 0.0
        %1223 = vmatprep.subr.mxu0 0.0
        %1224 = vmatpush1.xpose.msra.mxu0 0.0
        %1225 = vmatprep.subr.mxu0 0.0
        %1226 = vmatpush1.xpose.msra.mxu0 0.0
        %1227 = vmatprep.subr.mxu0 0.0
        %1228 = vmatpush1.xpose.msra.mxu0 0.0
        %1229 = vmatprep.subr.mxu0 0.0
        %1230 = vmatpush1.xpose.msra.mxu0 0.0
        %1231 = vmatprep.subr.mxu0 0.0
        %1232 = vmatpush1.xpose.msra.mxu0 0.0
        %1233 = vmatprep.subr.mxu0 0.0
        %1234 = vmatpush1.xpose.msra.mxu0 0.0
        %1235 = vmatprep.subr.mxu0 0.0
        %1236 = vmatpush1.xpose.msra.mxu0 0.0
        %1237 = vmatprep.subr.mxu0 0.0
        %1238 = vmatpush1.xpose.msra.mxu0 0.0
        %1239 = vmatprep.subr.mxu0 0.0
        %1240 = vmatpush1.xpose.msra.mxu0 0.0
        %1241 = vmatprep.mubr.f32.mxu0 0.0
        %1242 = vmatmul.mubr.f32.gmra.mrb[0].mxu0 %v1106
        %v1243 = vpop.f32.mrb[0].mxu0
        %v1244 = vadd.f32 0.0, %v1243
        %v1245 = vpop.f32.mrb[0].mxu0
        %1246 = vmatprep.mubr.f32.mxu0 0.0
        %1247 = vmatmul.mubr.f32.gmra.mrb[0].mxu0 %v1109
        %v1248 = vpop.f32.mrb[0].mxu0
        %v1249 = vadd.f32 0.0, %v1248
        %v1250 = vpop.f32.mrb[0].mxu0
        %1251 = vmatprep.mubr.f32.mxu0 0.0
        %1252 = vmatmul.mubr.f32.gmra.mrb[0].mxu0 %v1112
        %v1253 = vpop.f32.mrb[0].mxu0
        %v1254 = vadd.f32 0.0, %v1253
        %v1255 = vpop.f32.mrb[0].mxu0
        %1256 = vmatprep.mubr.f32.mxu0 0.0
        %1257 = vmatmul.mubr.f32.gmra.mrb[0].mxu0 %v1115
        %v1258 = vpop.f32.mrb[0].mxu0
        %v1259 = vadd.f32 0.0, %v1258
        %v1260 = vpop.f32.mrb[0].mxu0
        %1261 = vmatprep.mubr.f32.mxu0 0.0
        %1262 = vmatmul.mubr.f32.gmra.mrb[0].mxu0 %v1118
        %v1263 = vpop.f32.mrb[0].mxu0
        %v1264 = vadd.f32 0.0, %v1263
        %v1265 = vpop.f32.mrb[0].mxu0
        %1266 = vmatprep.mubr.f32.mxu0 0.0
        %1267 = vmatmul.mubr.f32.gmra.mrb[0].mxu0 %v1121
        %v1268 = vpop.f32.mrb[0].mxu0
        %v1269 = vadd.f32 0.0, %v1268
        %v1270 = vpop.f32.mrb[0].mxu0
        %1271 = vmatprep.mubr.f32.mxu0 0.0
        %1272 = vmatmul.mubr.f32.gmra.mrb[0].mxu0 %v1124
        %v1273 = vpop.f32.mrb[0].mxu0
        %v1274 = vadd.f32 0.0, %v1273
        %v1275 = vpop.f32.mrb[0].mxu0
        %1276 = vmatprep.mubr.f32.mxu0 0.0
        %1277 = vmatmul.mubr.f32.gmra.mrb[0].mxu0 %v1127
        %v1278 = vpop.f32.mrb[0].mxu0
        %v1279 = vadd.f32 0.0, %v1278
        %v1280 = vpop.f32.mrb[0].mxu0
        %1281 = vdwg.mxu0
        %v1282 = vld [vmem:[#allocation2] sm:$0xff]
        %v1283 = vld [vmem:[#allocation2 + $0x8] sm:$0xff]
        %v1284 = vld [vmem:[#allocation2 + $0x10] sm:$0xff]
        %v1285 = vld [vmem:[#allocation2 + $0x18] sm:$0xff]
        %v1286 = vld [vmem:[#allocation2 + $0x20] sm:$0xff]
        %v1287 = vld [vmem:[#allocation2 + $0x28] sm:$0xff]
        %v1288 = vld [vmem:[#allocation2 + $0x30] sm:$0xff]
        %v1289 = vld [vmem:[#allocation2 + $0x38] sm:$0xff]
        %v1290 = vld [vmem:[#allocation2 + $0x40] sm:$0xff]
        %v1291 = vld [vmem:[#allocation2 + $0x48] sm:$0xff]
        %v1292 = vld [vmem:[#allocation2 + $0x50] sm:$0xff]
        %v1293 = vld [vmem:[#allocation2 + $0x58] sm:$0xff]
        %v1294 = vld [vmem:[#allocation2 + $0x60] sm:$0xff]
        %v1295 = vld [vmem:[#allocation2 + $0x68] sm:$0xff]
        %v1296 = vld [vmem:[#allocation2 + $0x70] sm:$0xff]
        %v1297 = vld [vmem:[#allocation2 + $0x78] sm:$0xff]
        %v1298 = vld [vmem:[#allocation2 + $0x80] sm:$0xff]
        %v1299 = vld [vmem:[#allocation2 + $0x88] sm:$0xff]
        %v1300 = vld [vmem:[#allocation2 + $0x90] sm:$0xff]
        %v1301 = vld [vmem:[#allocation2 + $0x98] sm:$0xff]
        %v1302 = vld [vmem:[#allocation2 + $0xa0] sm:$0xff]
        %v1303 = vld [vmem:[#allocation2 + $0xa8] sm:$0xff]
        %v1304 = vld [vmem:[#allocation2 + $0xb0] sm:$0xff]
        %v1305 = vld [vmem:[#allocation2 + $0xb8] sm:$0xff]
        %v1306 = vld [vmem:[#allocation2 + $0xc0] sm:$0xff]
        %v1307 = vld [vmem:[#allocation2 + $0xc8] sm:$0xff]
        %v1308 = vld [vmem:[#allocation2 + $0xd0] sm:$0xff]
        %v1309 = vld [vmem:[#allocation2 + $0xd8] sm:$0xff]
        %v1310 = vld [vmem:[#allocation2 + $0xe0] sm:$0xff]
        %v1311 = vld [vmem:[#allocation2 + $0xe8] sm:$0xff]
        %v1312 = vld [vmem:[#allocation2 + $0xf0] sm:$0xff]
        %v1313 = vld [vmem:[#allocation2 + $0xf8] sm:$0xff]
        %1314 = vmax.xlane.f32.xlu0 %v713
        %v1315 = vpop.xlane.xlu0 %1314
        %1316 = vmax.xlane.f32.xlu0 %v718
        %v1317 = vpop.xlane.xlu0 %1316
        %1318 = vmax.xlane.f32.xlu0 %v723
        %v1319 = vpop.xlane.xlu0 %1318
        %1320 = vmax.xlane.f32.xlu0 %v728
        %v1321 = vpop.xlane.xlu0 %1320
        %1322 = vmax.xlane.f32.xlu0 %v733
        %v1323 = vpop.xlane.xlu0 %1322
        %1324 = vmax.xlane.f32.xlu0 %v738
        %v1325 = vpop.xlane.xlu0 %1324
        %1326 = vmax.xlane.f32.xlu0 %v743
        %v1327 = vpop.xlane.xlu0 %1326
        %1328 = vmax.xlane.f32.xlu0 %v748
        %v1329 = vpop.xlane.xlu0 %1328
        %1330 = vmax.xlane.f32.xlu0 %v890
        %v1331 = vpop.xlane.xlu0 %1330
        %1332 = vmax.xlane.f32.xlu0 %v895
        %v1333 = vpop.xlane.xlu0 %1332
        %1334 = vmax.xlane.f32.xlu0 %v900
        %v1335 = vpop.xlane.xlu0 %1334
        %1336 = vmax.xlane.f32.xlu0 %v905
        %v1337 = vpop.xlane.xlu0 %1336
        %1338 = vmax.xlane.f32.xlu0 %v910
        %v1339 = vpop.xlane.xlu0 %1338
        %1340 = vmax.xlane.f32.xlu0 %v915
        %v1341 = vpop.xlane.xlu0 %1340
        %1342 = vmax.xlane.f32.xlu0 %v920
        %v1343 = vpop.xlane.xlu0 %1342
        %1344 = vmax.xlane.f32.xlu0 %v925
        %v1345 = vpop.xlane.xlu0 %1344
        %1346 = vmax.xlane.f32.xlu0 %v1067
        %v1347 = vpop.xlane.xlu0 %1346
        %1348 = vmax.xlane.f32.xlu0 %v1072
        %v1349 = vpop.xlane.xlu0 %1348
        %1350 = vmax.xlane.f32.xlu0 %v1077
        %v1351 = vpop.xlane.xlu0 %1350
        %1352 = vmax.xlane.f32.xlu0 %v1082
        %v1353 = vpop.xlane.xlu0 %1352
        %1354 = vmax.xlane.f32.xlu0 %v1087
        %v1355 = vpop.xlane.xlu0 %1354
        %1356 = vmax.xlane.f32.xlu0 %v1092
        %v1357 = vpop.xlane.xlu0 %1356
        %1358 = vmax.xlane.f32.xlu0 %v1097
        %v1359 = vpop.xlane.xlu0 %1358
        %1360 = vmax.xlane.f32.xlu0 %v1102
        %v1361 = vpop.xlane.xlu0 %1360
        %1362 = vmax.xlane.f32.xlu0 %v1244
        %v1363 = vpop.xlane.xlu0 %1362
        %1364 = vmax.xlane.f32.xlu0 %v1249
        %v1365 = vpop.xlane.xlu0 %1364
        %1366 = vmax.xlane.f32.xlu0 %v1254
        %v1367 = vpop.xlane.xlu0 %1366
        %1368 = vmax.xlane.f32.xlu0 %v1259
        %v1369 = vpop.xlane.xlu0 %1368
        %1370 = vmax.xlane.f32.xlu0 %v1264
        %v1371 = vpop.xlane.xlu0 %1370
        %1372 = vmax.xlane.f32.xlu0 %v1269
        %v1373 = vpop.xlane.xlu0 %1372
        %1374 = vmax.xlane.f32.xlu0 %v1274
        %v1375 = vpop.xlane.xlu0 %1374
        %1376 = vmax.xlane.f32.xlu0 %v1279
        %v1377 = vpop.xlane.xlu0 %1376
        %v1378 = vmax.f32 %v1282, %v1315
        %v1379 = vmax.f32 %v1283, %v1317
        %v1380 = vmax.f32 %v1284, %v1319
        %v1381 = vmax.f32 %v1285, %v1321
        %v1382 = vmax.f32 %v1286, %v1323
        %v1383 = vmax.f32 %v1287, %v1325
        %v1384 = vmax.f32 %v1288, %v1327
        %v1385 = vmax.f32 %v1289, %v1329
        %v1386 = vmax.f32 %v1290, %v1331
        %v1387 = vmax.f32 %v1291, %v1333
        %v1388 = vmax.f32 %v1292, %v1335
        %v1389 = vmax.f32 %v1293, %v1337
        %v1390 = vmax.f32 %v1294, %v1339
        %v1391 = vmax.f32 %v1295, %v1341
        %v1392 = vmax.f32 %v1296, %v1343
        %v1393 = vmax.f32 %v1297, %v1345
        %v1394 = vmax.f32 %v1298, %v1347
        %v1395 = vmax.f32 %v1299, %v1349
        %v1396 = vmax.f32 %v1300, %v1351
        %v1397 = vmax.f32 %v1301, %v1353
        %v1398 = vmax.f32 %v1302, %v1355
        %v1399 = vmax.f32 %v1303, %v1357
        %v1400 = vmax.f32 %v1304, %v1359
        %v1401 = vmax.f32 %v1305, %v1361
        %v1402 = vmax.f32 %v1306, %v1363
        %v1403 = vmax.f32 %v1307, %v1365
        %v1404 = vmax.f32 %v1308, %v1367
        %v1405 = vmax.f32 %v1309, %v1369
        %v1406 = vmax.f32 %v1310, %v1371
        %v1407 = vmax.f32 %v1311, %v1373
        %v1408 = vmax.f32 %v1312, %v1375
        %v1409 = vmax.f32 %v1313, %v1377
        %v1410 = vsub.f32 %v1282, %v1378
        %v1411 = vsub.f32 %v1283, %v1379
        %v1412 = vsub.f32 %v1284, %v1380
        %v1413 = vsub.f32 %v1285, %v1381
        %v1414 = vsub.f32 %v1286, %v1382
        %v1415 = vsub.f32 %v1287, %v1383
        %v1416 = vsub.f32 %v1288, %v1384
        %v1417 = vsub.f32 %v1289, %v1385
        %v1418 = vsub.f32 %v1290, %v1386
        %v1419 = vsub.f32 %v1291, %v1387
        %v1420 = vsub.f32 %v1292, %v1388
        %v1421 = vsub.f32 %v1293, %v1389
        %v1422 = vsub.f32 %v1294, %v1390
        %v1423 = vsub.f32 %v1295, %v1391
        %v1424 = vsub.f32 %v1296, %v1392
        %v1425 = vsub.f32 %v1297, %v1393
        %v1426 = vsub.f32 %v1298, %v1394
        %v1427 = vsub.f32 %v1299, %v1395
        %v1428 = vsub.f32 %v1300, %v1396
        %v1429 = vsub.f32 %v1301, %v1397
        %v1430 = vsub.f32 %v1302, %v1398
        %v1431 = vsub.f32 %v1303, %v1399
        %v1432 = vsub.f32 %v1304, %v1400
        %v1433 = vsub.f32 %v1305, %v1401
        %v1434 = vsub.f32 %v1306, %v1402
        %v1435 = vsub.f32 %v1307, %v1403
        %v1436 = vsub.f32 %v1308, %v1404
        %v1437 = vsub.f32 %v1309, %v1405
        %v1438 = vsub.f32 %v1310, %v1406
        %v1439 = vsub.f32 %v1311, %v1407
        %v1440 = vsub.f32 %v1312, %v1408
        %v1441 = vsub.f32 %v1313, %v1409
        %v1442 = vmul.f32 %v1410, 1.442695
        %v1443 = vpow.pop %v1442
        %v1444 = vmul.f32 %v1411, 1.442695
        %v1445 = vpow.pop %v1444
        %v1446 = vmul.f32 %v1412, 1.442695
        %v1447 = vpow.pop %v1446
        %v1448 = vmul.f32 %v1413, 1.442695
        %v1449 = vpow.pop %v1448
        %v1450 = vmul.f32 %v1414, 1.442695
        %v1451 = vpow.pop %v1450
        %v1452 = vmul.f32 %v1415, 1.442695
        %v1453 = vpow.pop %v1452
        %v1454 = vmul.f32 %v1416, 1.442695
        %v1455 = vpow.pop %v1454
        %v1456 = vmul.f32 %v1417, 1.442695
        %v1457 = vpow.pop %v1456
        %v1458 = vmul.f32 %v1418, 1.442695
        %v1459 = vpow.pop %v1458
        %v1460 = vmul.f32 %v1419, 1.442695
        %v1461 = vpow.pop %v1460
        %v1462 = vmul.f32 %v1420, 1.442695
        %v1463 = vpow.pop %v1462
        %v1464 = vmul.f32 %v1421, 1.442695
        %v1465 = vpow.pop %v1464
        %v1466 = vmul.f32 %v1422, 1.442695
        %v1467 = vpow.pop %v1466
        %v1468 = vmul.f32 %v1423, 1.442695
        %v1469 = vpow.pop %v1468
        %v1470 = vmul.f32 %v1424, 1.442695
        %v1471 = vpow.pop %v1470
        %v1472 = vmul.f32 %v1425, 1.442695
        %v1473 = vpow.pop %v1472
        %v1474 = vmul.f32 %v1426, 1.442695
        %v1475 = vpow.pop %v1474
        %v1476 = vmul.f32 %v1427, 1.442695
        %v1477 = vpow.pop %v1476
        %v1478 = vmul.f32 %v1428, 1.442695
        %v1479 = vpow.pop %v1478
        %v1480 = vmul.f32 %v1429, 1.442695
        %v1481 = vpow.pop %v1480
        %v1482 = vmul.f32 %v1430, 1.442695
        %v1483 = vpow.pop %v1482
        %v1484 = vmul.f32 %v1431, 1.442695
        %v1485 = vpow.pop %v1484
        %v1486 = vmul.f32 %v1432, 1.442695
        %v1487 = vpow.pop %v1486
        %v1488 = vmul.f32 %v1433, 1.442695
        %v1489 = vpow.pop %v1488
        %v1490 = vmul.f32 %v1434, 1.442695
        %v1491 = vpow.pop %v1490
        %v1492 = vmul.f32 %v1435, 1.442695
        %v1493 = vpow.pop %v1492
        %v1494 = vmul.f32 %v1436, 1.442695
        %v1495 = vpow.pop %v1494
        %v1496 = vmul.f32 %v1437, 1.442695
        %v1497 = vpow.pop %v1496
        %v1498 = vmul.f32 %v1438, 1.442695
        %v1499 = vpow.pop %v1498
        %v1500 = vmul.f32 %v1439, 1.442695
        %v1501 = vpow.pop %v1500
        %v1502 = vmul.f32 %v1440, 1.442695
        %v1503 = vpow.pop %v1502
        %v1504 = vmul.f32 %v1441, 1.442695
        %v1505 = vpow.pop %v1504
        %1507 = vset.pattern.permute.xlu0 0
        %1508 = vperm.xlu0 %1507, %v1378
        %v1509 = vpop.permute.xlu0 %1508
        %1512 = vset.pattern.permute.xlu0 0
        %1513 = vperm.xlu0 %1512, %v1379
        %v1514 = vpop.permute.xlu0 %1513
        %1517 = vset.pattern.permute.xlu0 0
        %1518 = vperm.xlu0 %1517, %v1380
        %v1519 = vpop.permute.xlu0 %1518
        %1522 = vset.pattern.permute.xlu0 0
        %1523 = vperm.xlu0 %1522, %v1381
        %v1524 = vpop.permute.xlu0 %1523
        %1527 = vset.pattern.permute.xlu0 0
        %1528 = vperm.xlu0 %1527, %v1382
        %v1529 = vpop.permute.xlu0 %1528
        %1532 = vset.pattern.permute.xlu0 0
        %1533 = vperm.xlu0 %1532, %v1383
        %v1534 = vpop.permute.xlu0 %1533
        %1537 = vset.pattern.permute.xlu0 0
        %1538 = vperm.xlu0 %1537, %v1384
        %v1539 = vpop.permute.xlu0 %1538
        %1542 = vset.pattern.permute.xlu0 0
        %1543 = vperm.xlu0 %1542, %v1385
        %v1544 = vpop.permute.xlu0 %1543
        %1547 = vset.pattern.permute.xlu0 0
        %1548 = vperm.xlu0 %1547, %v1386
        %v1549 = vpop.permute.xlu0 %1548
        %1552 = vset.pattern.permute.xlu0 0
        %1553 = vperm.xlu0 %1552, %v1387
        %v1554 = vpop.permute.xlu0 %1553
        %1557 = vset.pattern.permute.xlu0 0
        %1558 = vperm.xlu0 %1557, %v1388
        %v1559 = vpop.permute.xlu0 %1558
        %1562 = vset.pattern.permute.xlu0 0
        %1563 = vperm.xlu0 %1562, %v1389
        %v1564 = vpop.permute.xlu0 %1563
        %1567 = vset.pattern.permute.xlu0 0
        %1568 = vperm.xlu0 %1567, %v1390
        %v1569 = vpop.permute.xlu0 %1568
        %1572 = vset.pattern.permute.xlu0 0
        %1573 = vperm.xlu0 %1572, %v1391
        %v1574 = vpop.permute.xlu0 %1573
        %1577 = vset.pattern.permute.xlu0 0
        %1578 = vperm.xlu0 %1577, %v1392
        %v1579 = vpop.permute.xlu0 %1578
        %1582 = vset.pattern.permute.xlu0 0
        %1583 = vperm.xlu0 %1582, %v1393
        %v1584 = vpop.permute.xlu0 %1583
        %1587 = vset.pattern.permute.xlu0 0
        %1588 = vperm.xlu0 %1587, %v1394
        %v1589 = vpop.permute.xlu0 %1588
        %1592 = vset.pattern.permute.xlu0 0
        %1593 = vperm.xlu0 %1592, %v1395
        %v1594 = vpop.permute.xlu0 %1593
        %1597 = vset.pattern.permute.xlu0 0
        %1598 = vperm.xlu0 %1597, %v1396
        %v1599 = vpop.permute.xlu0 %1598
        %1602 = vset.pattern.permute.xlu0 0
        %1603 = vperm.xlu0 %1602, %v1397
        %v1604 = vpop.permute.xlu0 %1603
        %1607 = vset.pattern.permute.xlu0 0
        %1608 = vperm.xlu0 %1607, %v1398
        %v1609 = vpop.permute.xlu0 %1608
        %1612 = vset.pattern.permute.xlu0 0
        %1613 = vperm.xlu0 %1612, %v1399
        %v1614 = vpop.permute.xlu0 %1613
        %1617 = vset.pattern.permute.xlu0 0
        %1618 = vperm.xlu0 %1617, %v1400
        %v1619 = vpop.permute.xlu0 %1618
        %1622 = vset.pattern.permute.xlu0 0
        %1623 = vperm.xlu0 %1622, %v1401
        %v1624 = vpop.permute.xlu0 %1623
        %1627 = vset.pattern.permute.xlu0 0
        %1628 = vperm.xlu0 %1627, %v1402
        %v1629 = vpop.permute.xlu0 %1628
        %1632 = vset.pattern.permute.xlu0 0
        %1633 = vperm.xlu0 %1632, %v1403
        %v1634 = vpop.permute.xlu0 %1633
        %1637 = vset.pattern.permute.xlu0 0
        %1638 = vperm.xlu0 %1637, %v1404
        %v1639 = vpop.permute.xlu0 %1638
        %1642 = vset.pattern.permute.xlu0 0
        %1643 = vperm.xlu0 %1642, %v1405
        %v1644 = vpop.permute.xlu0 %1643
        %1647 = vset.pattern.permute.xlu0 0
        %1648 = vperm.xlu0 %1647, %v1406
        %v1649 = vpop.permute.xlu0 %1648
        %1652 = vset.pattern.permute.xlu0 0
        %1653 = vperm.xlu0 %1652, %v1407
        %v1654 = vpop.permute.xlu0 %1653
        %1657 = vset.pattern.permute.xlu0 0
        %1658 = vperm.xlu0 %1657, %v1408
        %v1659 = vpop.permute.xlu0 %1658
        %1662 = vset.pattern.permute.xlu0 0
        %1663 = vperm.xlu0 %1662, %v1409
        %v1664 = vpop.permute.xlu0 %1663
        %v1666 = vsub.f32 %v713, %v1509
        %v1667 = vsub.f32 %v718, %v1514
        %v1668 = vsub.f32 %v723, %v1519
        %v1669 = vsub.f32 %v728, %v1524
        %v1670 = vsub.f32 %v733, %v1529
        %v1671 = vsub.f32 %v738, %v1534
        %v1672 = vsub.f32 %v743, %v1539
        %v1673 = vsub.f32 %v748, %v1544
        %v1674 = vsub.f32 %v890, %v1549
        %v1675 = vsub.f32 %v895, %v1554
        %v1676 = vsub.f32 %v900, %v1559
        %v1677 = vsub.f32 %v905, %v1564
        %v1678 = vsub.f32 %v910, %v1569
        %v1679 = vsub.f32 %v915, %v1574
        %v1680 = vsub.f32 %v920, %v1579
        %v1681 = vsub.f32 %v925, %v1584
        %v1682 = vsub.f32 %v1067, %v1589
        %v1683 = vsub.f32 %v1072, %v1594
        %v1684 = vsub.f32 %v1077, %v1599
        %v1685 = vsub.f32 %v1082, %v1604
        %v1686 = vsub.f32 %v1087, %v1609
        %v1687 = vsub.f32 %v1092, %v1614
        %v1688 = vsub.f32 %v1097, %v1619
        %v1689 = vsub.f32 %v1102, %v1624
        %v1690 = vsub.f32 %v1244, %v1629
        %v1691 = vsub.f32 %v1249, %v1634
        %v1692 = vsub.f32 %v1254, %v1639
        %v1693 = vsub.f32 %v1259, %v1644
        %v1694 = vsub.f32 %v1264, %v1649
        %v1695 = vsub.f32 %v1269, %v1654
        %v1696 = vsub.f32 %v1274, %v1659
        %v1697 = vsub.f32 %v1279, %v1664
        %v1698 = vmul.f32 %v1666, 1.442695
        %v1699 = vpow.pop %v1698
        %v1700 = vmul.f32 %v1667, 1.442695
        %v1701 = vpow.pop %v1700
        %v1702 = vmul.f32 %v1668, 1.442695
        %v1703 = vpow.pop %v1702
        %v1704 = vmul.f32 %v1669, 1.442695
        %v1705 = vpow.pop %v1704
        %v1706 = vmul.f32 %v1670, 1.442695
        %v1707 = vpow.pop %v1706
        %v1708 = vmul.f32 %v1671, 1.442695
        %v1709 = vpow.pop %v1708
        %v1710 = vmul.f32 %v1672, 1.442695
        %v1711 = vpow.pop %v1710
        %v1712 = vmul.f32 %v1673, 1.442695
        %v1713 = vpow.pop %v1712
        %v1714 = vmul.f32 %v1674, 1.442695
        %v1715 = vpow.pop %v1714
        %v1716 = vmul.f32 %v1675, 1.442695
        %v1717 = vpow.pop %v1716
        %v1718 = vmul.f32 %v1676, 1.442695
        %v1719 = vpow.pop %v1718
        %v1720 = vmul.f32 %v1677, 1.442695
        %v1721 = vpow.pop %v1720
        %v1722 = vmul.f32 %v1678, 1.442695
        %v1723 = vpow.pop %v1722
        %v1724 = vmul.f32 %v1679, 1.442695
        %v1725 = vpow.pop %v1724
        %v1726 = vmul.f32 %v1680, 1.442695
        %v1727 = vpow.pop %v1726
        %v1728 = vmul.f32 %v1681, 1.442695
        %v1729 = vpow.pop %v1728
        %v1730 = vmul.f32 %v1682, 1.442695
        %v1731 = vpow.pop %v1730
        %v1732 = vmul.f32 %v1683, 1.442695
        %v1733 = vpow.pop %v1732
        %v1734 = vmul.f32 %v1684, 1.442695
        %v1735 = vpow.pop %v1734
        %v1736 = vmul.f32 %v1685, 1.442695
        %v1737 = vpow.pop %v1736
        %v1738 = vmul.f32 %v1686, 1.442695
        %v1739 = vpow.pop %v1738
        %v1740 = vmul.f32 %v1687, 1.442695
        %v1741 = vpow.pop %v1740
        %v1742 = vmul.f32 %v1688, 1.442695
        %v1743 = vpow.pop %v1742
        %v1744 = vmul.f32 %v1689, 1.442695
        %v1745 = vpow.pop %v1744
        %v1746 = vmul.f32 %v1690, 1.442695
        %v1747 = vpow.pop %v1746
        %v1748 = vmul.f32 %v1691, 1.442695
        %v1749 = vpow.pop %v1748
        %v1750 = vmul.f32 %v1692, 1.442695
        %v1751 = vpow.pop %v1750
        %v1752 = vmul.f32 %v1693, 1.442695
        %v1753 = vpow.pop %v1752
        %v1754 = vmul.f32 %v1694, 1.442695
        %v1755 = vpow.pop %v1754
        %v1756 = vmul.f32 %v1695, 1.442695
        %v1757 = vpow.pop %v1756
        %v1758 = vmul.f32 %v1696, 1.442695
        %v1759 = vpow.pop %v1758
        %v1760 = vmul.f32 %v1697, 1.442695
        %v1761 = vpow.pop %v1760
        %1762 = vmatprep.subr.mxu0 0.0
        %1763 = vmatpush1.msra.mxu0 1.0
        %1764 = vmatprep.subr.mxu0 0.0
        %1765 = vmatpush1.msra.mxu0 1.0
        %1766 = vmatprep.subr.mxu0 0.0
        %1767 = vmatpush1.msra.mxu0 1.0
        %1768 = vmatprep.subr.mxu0 0.0
        %1769 = vmatpush1.msra.mxu0 1.0
        %1770 = vmatprep.subr.mxu0 0.0
        %1771 = vmatpush1.msra.mxu0 1.0
        %1772 = vmatprep.subr.mxu0 0.0
        %1773 = vmatpush1.msra.mxu0 1.0
        %1774 = vmatprep.subr.mxu0 0.0
        %1775 = vmatpush1.msra.mxu0 1.0
        %1776 = vmatprep.subr.mxu0 0.0
        %1777 = vmatpush1.msra.mxu0 1.0
        %1778 = vmatprep.subr.mxu0 0.0
        %1779 = vmatpush1.msra.mxu0 1.0
        %1780 = vmatprep.subr.mxu0 0.0
        %1781 = vmatpush1.msra.mxu0 1.0
        %1782 = vmatprep.subr.mxu0 0.0
        %1783 = vmatpush1.msra.mxu0 1.0
        %1784 = vmatprep.subr.mxu0 0.0
        %1785 = vmatpush1.msra.mxu0 1.0
        %1786 = vmatprep.subr.mxu0 0.0
        %1787 = vmatpush1.msra.mxu0 1.0
        %1788 = vmatprep.subr.mxu0 0.0
        %1789 = vmatpush1.msra.mxu0 1.0
        %1790 = vmatprep.subr.mxu0 0.0
        %1791 = vmatpush1.msra.mxu0 1.0
        %1792 = vmatprep.subr.mxu0 0.0
        %1793 = vmatpush1.msra.mxu0 1.0
        %1794 = vmatprep.subr.mxu0 0.0
        %1795 = vmatpush1.msra.mxu0 0.0
        %1796 = vmatprep.subr.mxu0 0.0
        %1797 = vmatpush1.msra.mxu0 0.0
        %1798 = vmatprep.subr.mxu0 0.0
        %1799 = vmatpush1.msra.mxu0 0.0
        %1800 = vmatprep.subr.mxu0 0.0
        %1801 = vmatpush1.msra.mxu0 0.0
        %1802 = vmatprep.subr.mxu0 0.0
        %1803 = vmatpush1.msra.mxu0 0.0
        %1804 = vmatprep.subr.mxu0 0.0
        %1805 = vmatpush1.msra.mxu0 0.0
        %1806 = vmatprep.subr.mxu0 0.0
        %1807 = vmatpush1.msra.mxu0 0.0
        %1808 = vmatprep.subr.mxu0 0.0
        %1809 = vmatpush1.msra.mxu0 0.0
        %1810 = vmatprep.subr.mxu0 0.0
        %1811 = vmatpush1.msra.mxu0 0.0
        %1812 = vmatprep.subr.mxu0 0.0
        %1813 = vmatpush1.msra.mxu0 0.0
        %1814 = vmatprep.subr.mxu0 0.0
        %1815 = vmatpush1.msra.mxu0 0.0
        %1816 = vmatprep.subr.mxu0 0.0
        %1817 = vmatpush1.msra.mxu0 0.0
        %1818 = vmatprep.subr.mxu0 0.0
        %1819 = vmatpush1.msra.mxu0 0.0
        %1820 = vmatprep.subr.mxu0 0.0
        %1821 = vmatpush1.msra.mxu0 0.0
        %1822 = vmatprep.subr.mxu0 0.0
        %1823 = vmatpush1.msra.mxu0 0.0
        %1824 = vmatprep.subr.mxu0 0.0
        %1825 = vmatpush1.msra.mxu0 0.0
        %1826 = vmatprep.mubr.f32.mxu0 0.0
        %1827 = vmatmul.mubr.f32.gmra.mrb[0].mxu0 %v1699
        %v1828 = vpop.f32.mrb[0].mxu0
        %v1829 = vadd.f32 0.0, %v1828
        %v1830 = vpop.f32.mrb[0].mxu0
        %1831 = vmatprep.mubr.f32.mxu0 0.0
        %1832 = vmatmul.mubr.f32.gmra.mrb[0].mxu0 %v1701
        %v1833 = vpop.f32.mrb[0].mxu0
        %v1834 = vadd.f32 0.0, %v1833
        %v1835 = vpop.f32.mrb[0].mxu0
        %1836 = vmatprep.mubr.f32.mxu0 0.0
        %1837 = vmatmul.mubr.f32.gmra.mrb[0].mxu0 %v1703
        %v1838 = vpop.f32.mrb[0].mxu0
        %v1839 = vadd.f32 0.0, %v1838
        %v1840 = vpop.f32.mrb[0].mxu0
        %1841 = vmatprep.mubr.f32.mxu0 0.0
        %1842 = vmatmul.mubr.f32.gmra.mrb[0].mxu0 %v1705
        %v1843 = vpop.f32.mrb[0].mxu0
        %v1844 = vadd.f32 0.0, %v1843
        %v1845 = vpop.f32.mrb[0].mxu0
        %1846 = vmatprep.mubr.f32.mxu0 0.0
        %1847 = vmatmul.mubr.f32.gmra.mrb[0].mxu0 %v1707
        %v1848 = vpop.f32.mrb[0].mxu0
        %v1849 = vadd.f32 0.0, %v1848
        %v1850 = vpop.f32.mrb[0].mxu0
        %1851 = vmatprep.mubr.f32.mxu0 0.0
        %1852 = vmatmul.mubr.f32.gmra.mrb[0].mxu0 %v1709
        %v1853 = vpop.f32.mrb[0].mxu0
        %v1854 = vadd.f32 0.0, %v1853
        %v1855 = vpop.f32.mrb[0].mxu0
        %1856 = vmatprep.mubr.f32.mxu0 0.0
        %1857 = vmatmul.mubr.f32.gmra.mrb[0].mxu0 %v1711
        %v1858 = vpop.f32.mrb[0].mxu0
        %v1859 = vadd.f32 0.0, %v1858
        %v1860 = vpop.f32.mrb[0].mxu0
        %1861 = vmatprep.mubr.f32.mxu0 0.0
        %1862 = vmatmul.mubr.f32.gmra.mrb[0].mxu0 %v1713
        %v1863 = vpop.f32.mrb[0].mxu0
        %v1864 = vadd.f32 0.0, %v1863
        %v1865 = vpop.f32.mrb[0].mxu0
        %1866 = vdwg.mxu0
        %1867 = vmatprep.subr.mxu0 0.0
        %1868 = vmatpush1.msra.mxu0 1.0
        %1869 = vmatprep.subr.mxu0 0.0
        %1870 = vmatpush1.msra.mxu0 1.0
        %1871 = vmatprep.subr.mxu0 0.0
        %1872 = vmatpush1.msra.mxu0 1.0
        %1873 = vmatprep.subr.mxu0 0.0
        %1874 = vmatpush1.msra.mxu0 1.0
        %1875 = vmatprep.subr.mxu0 0.0
        %1876 = vmatpush1.msra.mxu0 1.0
        %1877 = vmatprep.subr.mxu0 0.0
        %1878 = vmatpush1.msra.mxu0 1.0
        %1879 = vmatprep.subr.mxu0 0.0
        %1880 = vmatpush1.msra.mxu0 1.0
        %1881 = vmatprep.subr.mxu0 0.0
        %1882 = vmatpush1.msra.mxu0 1.0
        %1883 = vmatprep.subr.mxu0 0.0
        %1884 = vmatpush1.msra.mxu0 1.0
        %1885 = vmatprep.subr.mxu0 0.0
        %1886 = vmatpush1.msra.mxu0 1.0
        %1887 = vmatprep.subr.mxu0 0.0
        %1888 = vmatpush1.msra.mxu0 1.0
        %1889 = vmatprep.subr.mxu0 0.0
        %1890 = vmatpush1.msra.mxu0 1.0
        %1891 = vmatprep.subr.mxu0 0.0
        %1892 = vmatpush1.msra.mxu0 1.0
        %1893 = vmatprep.subr.mxu0 0.0
        %1894 = vmatpush1.msra.mxu0 1.0
        %1895 = vmatprep.subr.mxu0 0.0
        %1896 = vmatpush1.msra.mxu0 1.0
        %1897 = vmatprep.subr.mxu0 0.0
        %1898 = vmatpush1.msra.mxu0 1.0
        %1899 = vmatprep.subr.mxu0 0.0
        %1900 = vmatpush1.msra.mxu0 0.0
        %1901 = vmatprep.subr.mxu0 0.0
        %1902 = vmatpush1.msra.mxu0 0.0
        %1903 = vmatprep.subr.mxu0 0.0
        %1904 = vmatpush1.msra.mxu0 0.0
        %1905 = vmatprep.subr.mxu0 0.0
        %1906 = vmatpush1.msra.mxu0 0.0
        %1907 = vmatprep.subr.mxu0 0.0
        %1908 = vmatpush1.msra.mxu0 0.0
        %1909 = vmatprep.subr.mxu0 0.0
        %1910 = vmatpush1.msra.mxu0 0.0
        %1911 = vmatprep.subr.mxu0 0.0
        %1912 = vmatpush1.msra.mxu0 0.0
        %1913 = vmatprep.subr.mxu0 0.0
        %1914 = vmatpush1.msra.mxu0 0.0
        %1915 = vmatprep.subr.mxu0 0.0
        %1916 = vmatpush1.msra.mxu0 0.0
        %1917 = vmatprep.subr.mxu0 0.0
        %1918 = vmatpush1.msra.mxu0 0.0
        %1919 = vmatprep.subr.mxu0 0.0
        %1920 = vmatpush1.msra.mxu0 0.0
        %1921 = vmatprep.subr.mxu0 0.0
        %1922 = vmatpush1.msra.mxu0 0.0
        %1923 = vmatprep.subr.mxu0 0.0
        %1924 = vmatpush1.msra.mxu0 0.0
        %1925 = vmatprep.subr.mxu0 0.0
        %1926 = vmatpush1.msra.mxu0 0.0
        %1927 = vmatprep.subr.mxu0 0.0
        %1928 = vmatpush1.msra.mxu0 0.0
        %1929 = vmatprep.subr.mxu0 0.0
        %1930 = vmatpush1.msra.mxu0 0.0
        %1931 = vmatprep.mubr.f32.mxu0 0.0
        %1932 = vmatmul.mubr.f32.gmra.mrb[0].mxu0 %v1715
        %v1933 = vpop.f32.mrb[0].mxu0
        %v1934 = vadd.f32 0.0, %v1933
        %v1935 = vpop.f32.mrb[0].mxu0
        %1936 = vmatprep.mubr.f32.mxu0 0.0
        %1937 = vmatmul.mubr.f32.gmra.mrb[0].mxu0 %v1717
        %v1938 = vpop.f32.mrb[0].mxu0
        %v1939 = vadd.f32 0.0, %v1938
        %v1940 = vpop.f32.mrb[0].mxu0
        %1941 = vmatprep.mubr.f32.mxu0 0.0
        %1942 = vmatmul.mubr.f32.gmra.mrb[0].mxu0 %v1719
        %v1943 = vpop.f32.mrb[0].mxu0
        %v1944 = vadd.f32 0.0, %v1943
        %v1945 = vpop.f32.mrb[0].mxu0
        %1946 = vmatprep.mubr.f32.mxu0 0.0
        %1947 = vmatmul.mubr.f32.gmra.mrb[0].mxu0 %v1721
        %v1948 = vpop.f32.mrb[0].mxu0
        %v1949 = vadd.f32 0.0, %v1948
        %v1950 = vpop.f32.mrb[0].mxu0
        %1951 = vmatprep.mubr.f32.mxu0 0.0
        %1952 = vmatmul.mubr.f32.gmra.mrb[0].mxu0 %v1723
        %v1953 = vpop.f32.mrb[0].mxu0
        %v1954 = vadd.f32 0.0, %v1953
        %v1955 = vpop.f32.mrb[0].mxu0
        %1956 = vmatprep.mubr.f32.mxu0 0.0
        %1957 = vmatmul.mubr.f32.gmra.mrb[0].mxu0 %v1725
        %v1958 = vpop.f32.mrb[0].mxu0
        %v1959 = vadd.f32 0.0, %v1958
        %v1960 = vpop.f32.mrb[0].mxu0
        %1961 = vmatprep.mubr.f32.mxu0 0.0
        %1962 = vmatmul.mubr.f32.gmra.mrb[0].mxu0 %v1727
        %v1963 = vpop.f32.mrb[0].mxu0
        %v1964 = vadd.f32 0.0, %v1963
        %v1965 = vpop.f32.mrb[0].mxu0
        %1966 = vmatprep.mubr.f32.mxu0 0.0
        %1967 = vmatmul.mubr.f32.gmra.mrb[0].mxu0 %v1729
        %v1968 = vpop.f32.mrb[0].mxu0
        %v1969 = vadd.f32 0.0, %v1968
        %v1970 = vpop.f32.mrb[0].mxu0
        %1971 = vdwg.mxu0
        %1972 = vmatprep.subr.mxu0 0.0
        %1973 = vmatpush1.msra.mxu0 1.0
        %1974 = vmatprep.subr.mxu0 0.0
        %1975 = vmatpush1.msra.mxu0 1.0
        %1976 = vmatprep.subr.mxu0 0.0
        %1977 = vmatpush1.msra.mxu0 1.0
        %1978 = vmatprep.subr.mxu0 0.0
        %1979 = vmatpush1.msra.mxu0 1.0
        %1980 = vmatprep.subr.mxu0 0.0
        %1981 = vmatpush1.msra.mxu0 1.0
        %1982 = vmatprep.subr.mxu0 0.0
        %1983 = vmatpush1.msra.mxu0 1.0
        %1984 = vmatprep.subr.mxu0 0.0
        %1985 = vmatpush1.msra.mxu0 1.0
        %1986 = vmatprep.subr.mxu0 0.0
        %1987 = vmatpush1.msra.mxu0 1.0
        %1988 = vmatprep.subr.mxu0 0.0
        %1989 = vmatpush1.msra.mxu0 1.0
        %1990 = vmatprep.subr.mxu0 0.0
        %1991 = vmatpush1.msra.mxu0 1.0
        %1992 = vmatprep.subr.mxu0 0.0
        %1993 = vmatpush1.msra.mxu0 1.0
        %1994 = vmatprep.subr.mxu0 0.0
        %1995 = vmatpush1.msra.mxu0 1.0
        %1996 = vmatprep.subr.mxu0 0.0
        %1997 = vmatpush1.msra.mxu0 1.0
        %1998 = vmatprep.subr.mxu0 0.0
        %1999 = vmatpush1.msra.mxu0 1.0
        %2000 = vmatprep.subr.mxu0 0.0
        %2001 = vmatpush1.msra.mxu0 1.0
        %2002 = vmatprep.subr.mxu0 0.0
        %2003 = vmatpush1.msra.mxu0 1.0
        %2004 = vmatprep.subr.mxu0 0.0
        %2005 = vmatpush1.msra.mxu0 0.0
        %2006 = vmatprep.subr.mxu0 0.0
        %2007 = vmatpush1.msra.mxu0 0.0
        %2008 = vmatprep.subr.mxu0 0.0
        %2009 = vmatpush1.msra.mxu0 0.0
        %2010 = vmatprep.subr.mxu0 0.0
        %2011 = vmatpush1.msra.mxu0 0.0
        %2012 = vmatprep.subr.mxu0 0.0
        %2013 = vmatpush1.msra.mxu0 0.0
        %2014 = vmatprep.subr.mxu0 0.0
        %2015 = vmatpush1.msra.mxu0 0.0
        %2016 = vmatprep.subr.mxu0 0.0
        %2017 = vmatpush1.msra.mxu0 0.0
        %2018 = vmatprep.subr.mxu0 0.0
        %2019 = vmatpush1.msra.mxu0 0.0
        %2020 = vmatprep.subr.mxu0 0.0
        %2021 = vmatpush1.msra.mxu0 0.0
        %2022 = vmatprep.subr.mxu0 0.0
        %2023 = vmatpush1.msra.mxu0 0.0
        %2024 = vmatprep.subr.mxu0 0.0
        %2025 = vmatpush1.msra.mxu0 0.0
        %2026 = vmatprep.subr.mxu0 0.0
        %2027 = vmatpush1.msra.mxu0 0.0
        %2028 = vmatprep.subr.mxu0 0.0
        %2029 = vmatpush1.msra.mxu0 0.0
        %2030 = vmatprep.subr.mxu0 0.0
        %2031 = vmatpush1.msra.mxu0 0.0
        %2032 = vmatprep.subr.mxu0 0.0
        %2033 = vmatpush1.msra.mxu0 0.0
        %2034 = vmatprep.subr.mxu0 0.0
        %2035 = vmatpush1.msra.mxu0 0.0
        %2036 = vmatprep.mubr.f32.mxu0 0.0
        %2037 = vmatmul.mubr.f32.gmra.mrb[0].mxu0 %v1731
        %v2038 = vpop.f32.mrb[0].mxu0
        %v2039 = vadd.f32 0.0, %v2038
        %v2040 = vpop.f32.mrb[0].mxu0
        %2041 = vmatprep.mubr.f32.mxu0 0.0
        %2042 = vmatmul.mubr.f32.gmra.mrb[0].mxu0 %v1733
        %v2043 = vpop.f32.mrb[0].mxu0
        %v2044 = vadd.f32 0.0, %v2043
        %v2045 = vpop.f32.mrb[0].mxu0
        %2046 = vmatprep.mubr.f32.mxu0 0.0
        %2047 = vmatmul.mubr.f32.gmra.mrb[0].mxu0 %v1735
        %v2048 = vpop.f32.mrb[0].mxu0
        %v2049 = vadd.f32 0.0, %v2048
        %v2050 = vpop.f32.mrb[0].mxu0
        %2051 = vmatprep.mubr.f32.mxu0 0.0
        %2052 = vmatmul.mubr.f32.gmra.mrb[0].mxu0 %v1737
        %v2053 = vpop.f32.mrb[0].mxu0
        %v2054 = vadd.f32 0.0, %v2053
        %v2055 = vpop.f32.mrb[0].mxu0
        %2056 = vmatprep.mubr.f32.mxu0 0.0
        %2057 = vmatmul.mubr.f32.gmra.mrb[0].mxu0 %v1739
        %v2058 = vpop.f32.mrb[0].mxu0
        %v2059 = vadd.f32 0.0, %v2058
        %v2060 = vpop.f32.mrb[0].mxu0
        %2061 = vmatprep.mubr.f32.mxu0 0.0
        %2062 = vmatmul.mubr.f32.gmra.mrb[0].mxu0 %v1741
        %v2063 = vpop.f32.mrb[0].mxu0
        %v2064 = vadd.f32 0.0, %v2063
        %v2065 = vpop.f32.mrb[0].mxu0
        %2066 = vmatprep.mubr.f32.mxu0 0.0
        %2067 = vmatmul.mubr.f32.gmra.mrb[0].mxu0 %v1743
        %v2068 = vpop.f32.mrb[0].mxu0
        %v2069 = vadd.f32 0.0, %v2068
        %v2070 = vpop.f32.mrb[0].mxu0
        %2071 = vmatprep.mubr.f32.mxu0 0.0
        %2072 = vmatmul.mubr.f32.gmra.mrb[0].mxu0 %v1745
        %v2073 = vpop.f32.mrb[0].mxu0
        %v2074 = vadd.f32 0.0, %v2073
        %v2075 = vpop.f32.mrb[0].mxu0
        %2076 = vdwg.mxu0
        %2077 = vmatprep.subr.mxu0 0.0
        %2078 = vmatpush1.msra.mxu0 1.0
        %2079 = vmatprep.subr.mxu0 0.0
        %2080 = vmatpush1.msra.mxu0 1.0
        %2081 = vmatprep.subr.mxu0 0.0
        %2082 = vmatpush1.msra.mxu0 1.0
        %2083 = vmatprep.subr.mxu0 0.0
        %2084 = vmatpush1.msra.mxu0 1.0
        %2085 = vmatprep.subr.mxu0 0.0
        %2086 = vmatpush1.msra.mxu0 1.0
        %2087 = vmatprep.subr.mxu0 0.0
        %2088 = vmatpush1.msra.mxu0 1.0
        %2089 = vmatprep.subr.mxu0 0.0
        %2090 = vmatpush1.msra.mxu0 1.0
        %2091 = vmatprep.subr.mxu0 0.0
        %2092 = vmatpush1.msra.mxu0 1.0
        %2093 = vmatprep.subr.mxu0 0.0
        %2094 = vmatpush1.msra.mxu0 1.0
        %2095 = vmatprep.subr.mxu0 0.0
        %2096 = vmatpush1.msra.mxu0 1.0
        %2097 = vmatprep.subr.mxu0 0.0
        %2098 = vmatpush1.msra.mxu0 1.0
        %2099 = vmatprep.subr.mxu0 0.0
        %2100 = vmatpush1.msra.mxu0 1.0
        %2101 = vmatprep.subr.mxu0 0.0
        %2102 = vmatpush1.msra.mxu0 1.0
        %2103 = vmatprep.subr.mxu0 0.0
        %2104 = vmatpush1.msra.mxu0 1.0
        %2105 = vmatprep.subr.mxu0 0.0
        %2106 = vmatpush1.msra.mxu0 1.0
        %2107 = vmatprep.subr.mxu0 0.0
        %2108 = vmatpush1.msra.mxu0 1.0
        %2109 = vmatprep.subr.mxu0 0.0
        %2110 = vmatpush1.msra.mxu0 0.0
        %2111 = vmatprep.subr.mxu0 0.0
        %2112 = vmatpush1.msra.mxu0 0.0
        %2113 = vmatprep.subr.mxu0 0.0
        %2114 = vmatpush1.msra.mxu0 0.0
        %2115 = vmatprep.subr.mxu0 0.0
        %2116 = vmatpush1.msra.mxu0 0.0
        %2117 = vmatprep.subr.mxu0 0.0
        %2118 = vmatpush1.msra.mxu0 0.0
        %2119 = vmatprep.subr.mxu0 0.0
        %2120 = vmatpush1.msra.mxu0 0.0
        %2121 = vmatprep.subr.mxu0 0.0
        %2122 = vmatpush1.msra.mxu0 0.0
        %2123 = vmatprep.subr.mxu0 0.0
        %2124 = vmatpush1.msra.mxu0 0.0
        %2125 = vmatprep.subr.mxu0 0.0
        %2126 = vmatpush1.msra.mxu0 0.0
        %2127 = vmatprep.subr.mxu0 0.0
        %2128 = vmatpush1.msra.mxu0 0.0
        %2129 = vmatprep.subr.mxu0 0.0
        %2130 = vmatpush1.msra.mxu0 0.0
        %2131 = vmatprep.subr.mxu0 0.0
        %2132 = vmatpush1.msra.mxu0 0.0
        %2133 = vmatprep.subr.mxu0 0.0
        %2134 = vmatpush1.msra.mxu0 0.0
        %2135 = vmatprep.subr.mxu0 0.0
        %2136 = vmatpush1.msra.mxu0 0.0
        %2137 = vmatprep.subr.mxu0 0.0
        %2138 = vmatpush1.msra.mxu0 0.0
        %2139 = vmatprep.subr.mxu0 0.0
        %2140 = vmatpush1.msra.mxu0 0.0
        %2141 = vmatprep.mubr.f32.mxu0 0.0
        %2142 = vmatmul.mubr.f32.gmra.mrb[0].mxu0 %v1747
        %v2143 = vpop.f32.mrb[0].mxu0
        %v2144 = vadd.f32 0.0, %v2143
        %v2145 = vpop.f32.mrb[0].mxu0
        %2146 = vmatprep.mubr.f32.mxu0 0.0
        %2147 = vmatmul.mubr.f32.gmra.mrb[0].mxu0 %v1749
        %v2148 = vpop.f32.mrb[0].mxu0
        %v2149 = vadd.f32 0.0, %v2148
        %v2150 = vpop.f32.mrb[0].mxu0
        %2151 = vmatprep.mubr.f32.mxu0 0.0
        %2152 = vmatmul.mubr.f32.gmra.mrb[0].mxu0 %v1751
        %v2153 = vpop.f32.mrb[0].mxu0
        %v2154 = vadd.f32 0.0, %v2153
        %v2155 = vpop.f32.mrb[0].mxu0
        %2156 = vmatprep.mubr.f32.mxu0 0.0
        %2157 = vmatmul.mubr.f32.gmra.mrb[0].mxu0 %v1753
        %v2158 = vpop.f32.mrb[0].mxu0
        %v2159 = vadd.f32 0.0, %v2158
        %v2160 = vpop.f32.mrb[0].mxu0
        %2161 = vmatprep.mubr.f32.mxu0 0.0
        %2162 = vmatmul.mubr.f32.gmra.mrb[0].mxu0 %v1755
        %v2163 = vpop.f32.mrb[0].mxu0
        %v2164 = vadd.f32 0.0, %v2163
        %v2165 = vpop.f32.mrb[0].mxu0
        %2166 = vmatprep.mubr.f32.mxu0 0.0
        %2167 = vmatmul.mubr.f32.gmra.mrb[0].mxu0 %v1757
        %v2168 = vpop.f32.mrb[0].mxu0
        %v2169 = vadd.f32 0.0, %v2168
        %v2170 = vpop.f32.mrb[0].mxu0
        %2171 = vmatprep.mubr.f32.mxu0 0.0
        %2172 = vmatmul.mubr.f32.gmra.mrb[0].mxu0 %v1759
        %v2173 = vpop.f32.mrb[0].mxu0
        %v2174 = vadd.f32 0.0, %v2173
        %v2175 = vpop.f32.mrb[0].mxu0
        %2176 = vmatprep.mubr.f32.mxu0 0.0
        %2177 = vmatmul.mubr.f32.gmra.mrb[0].mxu0 %v1761
        %v2178 = vpop.f32.mrb[0].mxu0
        %v2179 = vadd.f32 0.0, %v2178
        %v2180 = vpop.f32.mrb[0].mxu0
        %2181 = vdwg.mxu0
        %v2182 = vld [vmem:[#allocation3] sm:$0xff]
        %v2183 = vld [vmem:[#allocation3 + $0x8] sm:$0xff]
        %v2184 = vld [vmem:[#allocation3 + $0x10] sm:$0xff]
        %v2185 = vld [vmem:[#allocation3 + $0x18] sm:$0xff]
        %v2186 = vld [vmem:[#allocation3 + $0x20] sm:$0xff]
        %v2187 = vld [vmem:[#allocation3 + $0x28] sm:$0xff]
        %v2188 = vld [vmem:[#allocation3 + $0x30] sm:$0xff]
        %v2189 = vld [vmem:[#allocation3 + $0x38] sm:$0xff]
        %v2190 = vld [vmem:[#allocation3 + $0x40] sm:$0xff]
        %v2191 = vld [vmem:[#allocation3 + $0x48] sm:$0xff]
        %v2192 = vld [vmem:[#allocation3 + $0x50] sm:$0xff]
        %v2193 = vld [vmem:[#allocation3 + $0x58] sm:$0xff]
        %v2194 = vld [vmem:[#allocation3 + $0x60] sm:$0xff]
        %v2195 = vld [vmem:[#allocation3 + $0x68] sm:$0xff]
        %v2196 = vld [vmem:[#allocation3 + $0x70] sm:$0xff]
        %v2197 = vld [vmem:[#allocation3 + $0x78] sm:$0xff]
        %v2198 = vld [vmem:[#allocation3 + $0x80] sm:$0xff]
        %v2199 = vld [vmem:[#allocation3 + $0x88] sm:$0xff]
        %v2200 = vld [vmem:[#allocation3 + $0x90] sm:$0xff]
        %v2201 = vld [vmem:[#allocation3 + $0x98] sm:$0xff]
        %v2202 = vld [vmem:[#allocation3 + $0xa0] sm:$0xff]
        %v2203 = vld [vmem:[#allocation3 + $0xa8] sm:$0xff]
        %v2204 = vld [vmem:[#allocation3 + $0xb0] sm:$0xff]
        %v2205 = vld [vmem:[#allocation3 + $0xb8] sm:$0xff]
        %v2206 = vld [vmem:[#allocation3 + $0xc0] sm:$0xff]
        %v2207 = vld [vmem:[#allocation3 + $0xc8] sm:$0xff]
        %v2208 = vld [vmem:[#allocation3 + $0xd0] sm:$0xff]
        %v2209 = vld [vmem:[#allocation3 + $0xd8] sm:$0xff]
        %v2210 = vld [vmem:[#allocation3 + $0xe0] sm:$0xff]
        %v2211 = vld [vmem:[#allocation3 + $0xe8] sm:$0xff]
        %v2212 = vld [vmem:[#allocation3 + $0xf0] sm:$0xff]
        %v2213 = vld [vmem:[#allocation3 + $0xf8] sm:$0xff]
        %v2214 = vmul.f32 %v1443, %v2182
        %v2215 = vmul.f32 %v1445, %v2183
        %v2216 = vmul.f32 %v1447, %v2184
        %v2217 = vmul.f32 %v1449, %v2185
        %v2218 = vmul.f32 %v1451, %v2186
        %v2219 = vmul.f32 %v1453, %v2187
        %v2220 = vmul.f32 %v1455, %v2188
        %v2221 = vmul.f32 %v1457, %v2189
        %v2222 = vmul.f32 %v1459, %v2190
        %v2223 = vmul.f32 %v1461, %v2191
        %v2224 = vmul.f32 %v1463, %v2192
        %v2225 = vmul.f32 %v1465, %v2193
        %v2226 = vmul.f32 %v1467, %v2194
        %v2227 = vmul.f32 %v1469, %v2195
        %v2228 = vmul.f32 %v1471, %v2196
        %v2229 = vmul.f32 %v1473, %v2197
        %v2230 = vmul.f32 %v1475, %v2198
        %v2231 = vmul.f32 %v1477, %v2199
        %v2232 = vmul.f32 %v1479, %v2200
        %v2233 = vmul.f32 %v1481, %v2201
        %v2234 = vmul.f32 %v1483, %v2202
        %v2235 = vmul.f32 %v1485, %v2203
        %v2236 = vmul.f32 %v1487, %v2204
        %v2237 = vmul.f32 %v1489, %v2205
        %v2238 = vmul.f32 %v1491, %v2206
        %v2239 = vmul.f32 %v1493, %v2207
        %v2240 = vmul.f32 %v1495, %v2208
        %v2241 = vmul.f32 %v1497, %v2209
        %v2242 = vmul.f32 %v1499, %v2210
        %v2243 = vmul.f32 %v1501, %v2211
        %v2244 = vmul.f32 %v1503, %v2212
        %v2245 = vmul.f32 %v1505, %v2213
        %v2246 = vadd.f32 %v2214, %v1829
        %v2247 = vadd.f32 %v2215, %v1834
        %v2248 = vadd.f32 %v2216, %v1839
        %v2249 = vadd.f32 %v2217, %v1844
        %v2250 = vadd.f32 %v2218, %v1849
        %v2251 = vadd.f32 %v2219, %v1854
        %v2252 = vadd.f32 %v2220, %v1859
        %v2253 = vadd.f32 %v2221, %v1864
        %v2254 = vadd.f32 %v2222, %v1934
        %v2255 = vadd.f32 %v2223, %v1939
        %v2256 = vadd.f32 %v2224, %v1944
        %v2257 = vadd.f32 %v2225, %v1949
        %v2258 = vadd.f32 %v2226, %v1954
        %v2259 = vadd.f32 %v2227, %v1959
        %v2260 = vadd.f32 %v2228, %v1964
        %v2261 = vadd.f32 %v2229, %v1969
        %v2262 = vadd.f32 %v2230, %v2039
        %v2263 = vadd.f32 %v2231, %v2044
        %v2264 = vadd.f32 %v2232, %v2049
        %v2265 = vadd.f32 %v2233, %v2054
        %v2266 = vadd.f32 %v2234, %v2059
        %v2267 = vadd.f32 %v2235, %v2064
        %v2268 = vadd.f32 %v2236, %v2069
        %v2269 = vadd.f32 %v2237, %v2074
        %v2270 = vadd.f32 %v2238, %v2144
        %v2271 = vadd.f32 %v2239, %v2149
        %v2272 = vadd.f32 %v2240, %v2154
        %v2273 = vadd.f32 %v2241, %v2159
        %v2274 = vadd.f32 %v2242, %v2164
        %v2275 = vadd.f32 %v2243, %v2169
        %v2276 = vadd.f32 %v2244, %v2174
        %v2277 = vadd.f32 %v2245, %v2179
        %vm2278 = vcmask 7168
        %2279 = vst.msk [vmem:[#allocation3] sm:$0xff] %vm2278, %v2246
        %2280 = vst.msk [vmem:[#allocation3 + $0x8] sm:$0xff] %vm2278, %v2247
        %2281 = vst.msk [vmem:[#allocation3 + $0x10] sm:$0xff] %vm2278, %v2248
        %2282 = vst.msk [vmem:[#allocation3 + $0x18] sm:$0xff] %vm2278, %v2249
        %2283 = vst.msk [vmem:[#allocation3 + $0x20] sm:$0xff] %vm2278, %v2250
        %2284 = vst.msk [vmem:[#allocation3 + $0x28] sm:$0xff] %vm2278, %v2251
        %2285 = vst.msk [vmem:[#allocation3 + $0x30] sm:$0xff] %vm2278, %v2252
        %2286 = vst.msk [vmem:[#allocation3 + $0x38] sm:$0xff] %vm2278, %v2253
        %2287 = vst.msk [vmem:[#allocation3 + $0x40] sm:$0xff] %vm2278, %v2254
        %2288 = vst.msk [vmem:[#allocation3 + $0x48] sm:$0xff] %vm2278, %v2255
        %2289 = vst.msk [vmem:[#allocation3 + $0x50] sm:$0xff] %vm2278, %v2256
        %2290 = vst.msk [vmem:[#allocation3 + $0x58] sm:$0xff] %vm2278, %v2257
        %2291 = vst.msk [vmem:[#allocation3 + $0x60] sm:$0xff] %vm2278, %v2258
        %2292 = vst.msk [vmem:[#allocation3 + $0x68] sm:$0xff] %vm2278, %v2259
        %2293 = vst.msk [vmem:[#allocation3 + $0x70] sm:$0xff] %vm2278, %v2260
        %2294 = vst.msk [vmem:[#allocation3 + $0x78] sm:$0xff] %vm2278, %v2261
        %2295 = vst.msk [vmem:[#allocation3 + $0x80] sm:$0xff] %vm2278, %v2262
        %2296 = vst.msk [vmem:[#allocation3 + $0x88] sm:$0xff] %vm2278, %v2263
        %2297 = vst.msk [vmem:[#allocation3 + $0x90] sm:$0xff] %vm2278, %v2264
        %2298 = vst.msk [vmem:[#allocation3 + $0x98] sm:$0xff] %vm2278, %v2265
        %2299 = vst.msk [vmem:[#allocation3 + $0xa0] sm:$0xff] %vm2278, %v2266
        %2300 = vst.msk [vmem:[#allocation3 + $0xa8] sm:$0xff] %vm2278, %v2267
        %2301 = vst.msk [vmem:[#allocation3 + $0xb0] sm:$0xff] %vm2278, %v2268
        %2302 = vst.msk [vmem:[#allocation3 + $0xb8] sm:$0xff] %vm2278, %v2269
        %2303 = vst.msk [vmem:[#allocation3 + $0xc0] sm:$0xff] %vm2278, %v2270
        %2304 = vst.msk [vmem:[#allocation3 + $0xc8] sm:$0xff] %vm2278, %v2271
        %2305 = vst.msk [vmem:[#allocation3 + $0xd0] sm:$0xff] %vm2278, %v2272
        %2306 = vst.msk [vmem:[#allocation3 + $0xd8] sm:$0xff] %vm2278, %v2273
        %2307 = vst.msk [vmem:[#allocation3 + $0xe0] sm:$0xff] %vm2278, %v2274
        %2308 = vst.msk [vmem:[#allocation3 + $0xe8] sm:$0xff] %vm2278, %v2275
        %2309 = vst.msk [vmem:[#allocation3 + $0xf0] sm:$0xff] %vm2278, %v2276
        %2310 = vst.msk [vmem:[#allocation3 + $0xf8] sm:$0xff] %vm2278, %v2277
        %v2311 = vld [vmem:[#allocation4] sm:$0xff]
        %v2312 = vld [vmem:[#allocation4 + $0x8] sm:$0xff]
        %v2313 = vld [vmem:[#allocation4 + $0x10] sm:$0xff]
        %v2314 = vld [vmem:[#allocation4 + $0x18] sm:$0xff]
        %v2315 = vld [vmem:[#allocation4 + $0x20] sm:$0xff]
        %v2316 = vld [vmem:[#allocation4 + $0x28] sm:$0xff]
        %v2317 = vld [vmem:[#allocation4 + $0x30] sm:$0xff]
        %v2318 = vld [vmem:[#allocation4 + $0x38] sm:$0xff]
        %v2319 = vld [vmem:[#allocation4 + $0x40] sm:$0xff]
        %v2320 = vld [vmem:[#allocation4 + $0x48] sm:$0xff]
        %v2321 = vld [vmem:[#allocation4 + $0x50] sm:$0xff]
        %v2322 = vld [vmem:[#allocation4 + $0x58] sm:$0xff]
        %v2323 = vld [vmem:[#allocation4 + $0x60] sm:$0xff]
        %v2324 = vld [vmem:[#allocation4 + $0x68] sm:$0xff]
        %v2325 = vld [vmem:[#allocation4 + $0x70] sm:$0xff]
        %v2326 = vld [vmem:[#allocation4 + $0x78] sm:$0xff]
        %v2327 = vld [vmem:[#allocation4 + $0x80] sm:$0xff]
        %v2328 = vld [vmem:[#allocation4 + $0x88] sm:$0xff]
        %v2329 = vld [vmem:[#allocation4 + $0x90] sm:$0xff]
        %v2330 = vld [vmem:[#allocation4 + $0x98] sm:$0xff]
        %v2331 = vld [vmem:[#allocation4 + $0xa0] sm:$0xff]
        %v2332 = vld [vmem:[#allocation4 + $0xa8] sm:$0xff]
        %v2333 = vld [vmem:[#allocation4 + $0xb0] sm:$0xff]
        %v2334 = vld [vmem:[#allocation4 + $0xb8] sm:$0xff]
        %v2335 = vld [vmem:[#allocation4 + $0xc0] sm:$0xff]
        %v2336 = vld [vmem:[#allocation4 + $0xc8] sm:$0xff]
        %v2337 = vld [vmem:[#allocation4 + $0xd0] sm:$0xff]
        %v2338 = vld [vmem:[#allocation4 + $0xd8] sm:$0xff]
        %v2339 = vld [vmem:[#allocation4 + $0xe0] sm:$0xff]
        %v2340 = vld [vmem:[#allocation4 + $0xe8] sm:$0xff]
        %v2341 = vld [vmem:[#allocation4 + $0xf0] sm:$0xff]
        %v2342 = vld [vmem:[#allocation4 + $0xf8] sm:$0xff]
        %2344 = vset.pattern.permute.xlu0 0
        %2345 = vperm.xlu0 %2344, %v1443
        %v2346 = vpop.permute.xlu0 %2345
        %2349 = vset.pattern.permute.xlu0 0
        %2350 = vperm.xlu0 %2349, %v1445
        %v2351 = vpop.permute.xlu0 %2350
        %2354 = vset.pattern.permute.xlu0 0
        %2355 = vperm.xlu0 %2354, %v1447
        %v2356 = vpop.permute.xlu0 %2355
        %2359 = vset.pattern.permute.xlu0 0
        %2360 = vperm.xlu0 %2359, %v1449
        %v2361 = vpop.permute.xlu0 %2360
        %2364 = vset.pattern.permute.xlu0 0
        %2365 = vperm.xlu0 %2364, %v1451
        %v2366 = vpop.permute.xlu0 %2365
        %2369 = vset.pattern.permute.xlu0 0
        %2370 = vperm.xlu0 %2369, %v1453
        %v2371 = vpop.permute.xlu0 %2370
        %2374 = vset.pattern.permute.xlu0 0
        %2375 = vperm.xlu0 %2374, %v1455
        %v2376 = vpop.permute.xlu0 %2375
        %2379 = vset.pattern.permute.xlu0 0
        %2380 = vperm.xlu0 %2379, %v1457
        %v2381 = vpop.permute.xlu0 %2380
        %2384 = vset.pattern.permute.xlu0 0
        %2385 = vperm.xlu0 %2384, %v1459
        %v2386 = vpop.permute.xlu0 %2385
        %2389 = vset.pattern.permute.xlu0 0
        %2390 = vperm.xlu0 %2389, %v1461
        %v2391 = vpop.permute.xlu0 %2390
        %2394 = vset.pattern.permute.xlu0 0
        %2395 = vperm.xlu0 %2394, %v1463
        %v2396 = vpop.permute.xlu0 %2395
        %2399 = vset.pattern.permute.xlu0 0
        %2400 = vperm.xlu0 %2399, %v1465
        %v2401 = vpop.permute.xlu0 %2400
        %2404 = vset.pattern.permute.xlu0 0
        %2405 = vperm.xlu0 %2404, %v1467
        %v2406 = vpop.permute.xlu0 %2405
        %2409 = vset.pattern.permute.xlu0 0
        %2410 = vperm.xlu0 %2409, %v1469
        %v2411 = vpop.permute.xlu0 %2410
        %2414 = vset.pattern.permute.xlu0 0
        %2415 = vperm.xlu0 %2414, %v1471
        %v2416 = vpop.permute.xlu0 %2415
        %2419 = vset.pattern.permute.xlu0 0
        %2420 = vperm.xlu0 %2419, %v1473
        %v2421 = vpop.permute.xlu0 %2420
        %2424 = vset.pattern.permute.xlu0 0
        %2425 = vperm.xlu0 %2424, %v1475
        %v2426 = vpop.permute.xlu0 %2425
        %2429 = vset.pattern.permute.xlu0 0
        %2430 = vperm.xlu0 %2429, %v1477
        %v2431 = vpop.permute.xlu0 %2430
        %2434 = vset.pattern.permute.xlu0 0
        %2435 = vperm.xlu0 %2434, %v1479
        %v2436 = vpop.permute.xlu0 %2435
        %2439 = vset.pattern.permute.xlu0 0
        %2440 = vperm.xlu0 %2439, %v1481
        %v2441 = vpop.permute.xlu0 %2440
        %2444 = vset.pattern.permute.xlu0 0
        %2445 = vperm.xlu0 %2444, %v1483
        %v2446 = vpop.permute.xlu0 %2445
        %2449 = vset.pattern.permute.xlu0 0
        %2450 = vperm.xlu0 %2449, %v1485
        %v2451 = vpop.permute.xlu0 %2450
        %2454 = vset.pattern.permute.xlu0 0
        %2455 = vperm.xlu0 %2454, %v1487
        %v2456 = vpop.permute.xlu0 %2455
        %2459 = vset.pattern.permute.xlu0 0
        %2460 = vperm.xlu0 %2459, %v1489
        %v2461 = vpop.permute.xlu0 %2460
        %2464 = vset.pattern.permute.xlu0 0
        %2465 = vperm.xlu0 %2464, %v1491
        %v2466 = vpop.permute.xlu0 %2465
        %2469 = vset.pattern.permute.xlu0 0
        %2470 = vperm.xlu0 %2469, %v1493
        %v2471 = vpop.permute.xlu0 %2470
        %2474 = vset.pattern.permute.xlu0 0
        %2475 = vperm.xlu0 %2474, %v1495
        %v2476 = vpop.permute.xlu0 %2475
        %2479 = vset.pattern.permute.xlu0 0
        %2480 = vperm.xlu0 %2479, %v1497
        %v2481 = vpop.permute.xlu0 %2480
        %2484 = vset.pattern.permute.xlu0 0
        %2485 = vperm.xlu0 %2484, %v1499
        %v2486 = vpop.permute.xlu0 %2485
        %2489 = vset.pattern.permute.xlu0 0
        %2490 = vperm.xlu0 %2489, %v1501
        %v2491 = vpop.permute.xlu0 %2490
        %2494 = vset.pattern.permute.xlu0 0
        %2495 = vperm.xlu0 %2494, %v1503
        %v2496 = vpop.permute.xlu0 %2495
        %2499 = vset.pattern.permute.xlu0 0
        %2500 = vperm.xlu0 %2499, %v1505
        %v2501 = vpop.permute.xlu0 %2500
        %v2503 = vmul.f32 %v2346, %v2311
        %v2504 = vmul.f32 %v2351, %v2312
        %v2505 = vmul.f32 %v2356, %v2313
        %v2506 = vmul.f32 %v2361, %v2314
        %v2507 = vmul.f32 %v2366, %v2315
        %v2508 = vmul.f32 %v2371, %v2316
        %v2509 = vmul.f32 %v2376, %v2317
        %v2510 = vmul.f32 %v2381, %v2318
        %v2511 = vmul.f32 %v2386, %v2319
        %v2512 = vmul.f32 %v2391, %v2320
        %v2513 = vmul.f32 %v2396, %v2321
        %v2514 = vmul.f32 %v2401, %v2322
        %v2515 = vmul.f32 %v2406, %v2323
        %v2516 = vmul.f32 %v2411, %v2324
        %v2517 = vmul.f32 %v2416, %v2325
        %v2518 = vmul.f32 %v2421, %v2326
        %v2519 = vmul.f32 %v2426, %v2327
        %v2520 = vmul.f32 %v2431, %v2328
        %v2521 = vmul.f32 %v2436, %v2329
        %v2522 = vmul.f32 %v2441, %v2330
        %v2523 = vmul.f32 %v2446, %v2331
        %v2524 = vmul.f32 %v2451, %v2332
        %v2525 = vmul.f32 %v2456, %v2333
        %v2526 = vmul.f32 %v2461, %v2334
        %v2527 = vmul.f32 %v2466, %v2335
        %v2528 = vmul.f32 %v2471, %v2336
        %v2529 = vmul.f32 %v2476, %v2337
        %v2530 = vmul.f32 %v2481, %v2338
        %v2531 = vmul.f32 %v2486, %v2339
        %v2532 = vmul.f32 %v2491, %v2340
        %v2533 = vmul.f32 %v2496, %v2341
        %v2534 = vmul.f32 %v2501, %v2342
        %2535 = vmatprep.subr.mxu0 0.0
        %2536 = vmatpush1.msra.mxu0 %v509
        %2537 = vmatprep.subr.mxu0 0.0
        %2538 = vmatpush1.msra.mxu0 %v510
        %2539 = vmatprep.subr.mxu0 0.0
        %2540 = vmatpush1.msra.mxu0 %v511
        %2541 = vmatprep.subr.mxu0 0.0
        %2542 = vmatpush1.msra.mxu0 %v512
        %2543 = vmatprep.subr.mxu0 0.0
        %2544 = vmatpush1.msra.mxu0 %v513
        %2545 = vmatprep.subr.mxu0 0.0
        %2546 = vmatpush1.msra.mxu0 %v514
        %2547 = vmatprep.subr.mxu0 0.0
        %2548 = vmatpush1.msra.mxu0 %v515
        %2549 = vmatprep.subr.mxu0 0.0
        %2550 = vmatpush1.msra.mxu0 %v516
        %2551 = vmatprep.subr.mxu0 0.0
        %2552 = vmatpush1.msra.mxu0 %v517
        %2553 = vmatprep.subr.mxu0 0.0
        %2554 = vmatpush1.msra.mxu0 %v518
        %2555 = vmatprep.subr.mxu0 0.0
        %2556 = vmatpush1.msra.mxu0 %v519
        %2557 = vmatprep.subr.mxu0 0.0
        %2558 = vmatpush1.msra.mxu0 %v520
        %2559 = vmatprep.subr.mxu0 0.0
        %2560 = vmatpush1.msra.mxu0 %v521
        %2561 = vmatprep.subr.mxu0 0.0
        %2562 = vmatpush1.msra.mxu0 %v522
        %2563 = vmatprep.subr.mxu0 0.0
        %2564 = vmatpush1.msra.mxu0 %v523
        %2565 = vmatprep.subr.mxu0 0.0
        %2566 = vmatpush1.msra.mxu0 %v524
        %2567 = vmatprep.subr.mxu0 0.0
        %2568 = vmatpush1.msra.mxu0 0.0
        %2569 = vmatprep.subr.mxu0 0.0
        %2570 = vmatpush1.msra.mxu0 0.0
        %2571 = vmatprep.subr.mxu0 0.0
        %2572 = vmatpush1.msra.mxu0 0.0
        %2573 = vmatprep.subr.mxu0 0.0
        %2574 = vmatpush1.msra.mxu0 0.0
        %2575 = vmatprep.subr.mxu0 0.0
        %2576 = vmatpush1.msra.mxu0 0.0
        %2577 = vmatprep.subr.mxu0 0.0
        %2578 = vmatpush1.msra.mxu0 0.0
        %2579 = vmatprep.subr.mxu0 0.0
        %2580 = vmatpush1.msra.mxu0 0.0
        %2581 = vmatprep.subr.mxu0 0.0
        %2582 = vmatpush1.msra.mxu0 0.0
        %2583 = vmatprep.subr.mxu0 0.0
        %2584 = vmatpush1.msra.mxu0 0.0
        %2585 = vmatprep.subr.mxu0 0.0
        %2586 = vmatpush1.msra.mxu0 0.0
        %2587 = vmatprep.subr.mxu0 0.0
        %2588 = vmatpush1.msra.mxu0 0.0
        %2589 = vmatprep.subr.mxu0 0.0
        %2590 = vmatpush1.msra.mxu0 0.0
        %2591 = vmatprep.subr.mxu0 0.0
        %2592 = vmatpush1.msra.mxu0 0.0
        %2593 = vmatprep.subr.mxu0 0.0
        %2594 = vmatpush1.msra.mxu0 0.0
        %2595 = vmatprep.subr.mxu0 0.0
        %2596 = vmatpush1.msra.mxu0 0.0
        %2597 = vmatprep.subr.mxu0 0.0
        %2598 = vmatpush1.msra.mxu0 0.0
        %2599 = vmatprep.mubr.f32.mxu0 0.0
        %2600 = vmatmul.mubr.f32.gmra.mrb[0].mxu0 %v1699
        %v2601 = vpop.f32.mrb[0].mxu0
        %v2602 = vadd.f32 0.0, %v2601
        %v2603 = vpop.f32.mrb[0].mxu0
        %2604 = vmatprep.mubr.f32.mxu0 0.0
        %2605 = vmatmul.mubr.f32.gmra.mrb[0].mxu0 %v1701
        %v2606 = vpop.f32.mrb[0].mxu0
        %v2607 = vadd.f32 0.0, %v2606
        %v2608 = vpop.f32.mrb[0].mxu0
        %2609 = vmatprep.mubr.f32.mxu0 0.0
        %2610 = vmatmul.mubr.f32.gmra.mrb[0].mxu0 %v1703
        %v2611 = vpop.f32.mrb[0].mxu0
        %v2612 = vadd.f32 0.0, %v2611
        %v2613 = vpop.f32.mrb[0].mxu0
        %2614 = vmatprep.mubr.f32.mxu0 0.0
        %2615 = vmatmul.mubr.f32.gmra.mrb[0].mxu0 %v1705
        %v2616 = vpop.f32.mrb[0].mxu0
        %v2617 = vadd.f32 0.0, %v2616
        %v2618 = vpop.f32.mrb[0].mxu0
        %2619 = vmatprep.mubr.f32.mxu0 0.0
        %2620 = vmatmul.mubr.f32.gmra.mrb[0].mxu0 %v1707
        %v2621 = vpop.f32.mrb[0].mxu0
        %v2622 = vadd.f32 0.0, %v2621
        %v2623 = vpop.f32.mrb[0].mxu0
        %2624 = vmatprep.mubr.f32.mxu0 0.0
        %2625 = vmatmul.mubr.f32.gmra.mrb[0].mxu0 %v1709
        %v2626 = vpop.f32.mrb[0].mxu0
        %v2627 = vadd.f32 0.0, %v2626
        %v2628 = vpop.f32.mrb[0].mxu0
        %2629 = vmatprep.mubr.f32.mxu0 0.0
        %2630 = vmatmul.mubr.f32.gmra.mrb[0].mxu0 %v1711
        %v2631 = vpop.f32.mrb[0].mxu0
        %v2632 = vadd.f32 0.0, %v2631
        %v2633 = vpop.f32.mrb[0].mxu0
        %2634 = vmatprep.mubr.f32.mxu0 0.0
        %2635 = vmatmul.mubr.f32.gmra.mrb[0].mxu0 %v1713
        %v2636 = vpop.f32.mrb[0].mxu0
        %v2637 = vadd.f32 0.0, %v2636
        %v2638 = vpop.f32.mrb[0].mxu0
        %2639 = vdwg.mxu0
        %2640 = vmatprep.subr.mxu0 0.0
        %2641 = vmatpush1.msra.mxu0 %v525
        %2642 = vmatprep.subr.mxu0 0.0
        %2643 = vmatpush1.msra.mxu0 %v526
        %2644 = vmatprep.subr.mxu0 0.0
        %2645 = vmatpush1.msra.mxu0 %v527
        %2646 = vmatprep.subr.mxu0 0.0
        %2647 = vmatpush1.msra.mxu0 %v528
        %2648 = vmatprep.subr.mxu0 0.0
        %2649 = vmatpush1.msra.mxu0 %v529
        %2650 = vmatprep.subr.mxu0 0.0
        %2651 = vmatpush1.msra.mxu0 %v530
        %2652 = vmatprep.subr.mxu0 0.0
        %2653 = vmatpush1.msra.mxu0 %v531
        %2654 = vmatprep.subr.mxu0 0.0
        %2655 = vmatpush1.msra.mxu0 %v532
        %2656 = vmatprep.subr.mxu0 0.0
        %2657 = vmatpush1.msra.mxu0 %v533
        %2658 = vmatprep.subr.mxu0 0.0
        %2659 = vmatpush1.msra.mxu0 %v534
        %2660 = vmatprep.subr.mxu0 0.0
        %2661 = vmatpush1.msra.mxu0 %v535
        %2662 = vmatprep.subr.mxu0 0.0
        %2663 = vmatpush1.msra.mxu0 %v536
        %2664 = vmatprep.subr.mxu0 0.0
        %2665 = vmatpush1.msra.mxu0 %v537
        %2666 = vmatprep.subr.mxu0 0.0
        %2667 = vmatpush1.msra.mxu0 %v538
        %2668 = vmatprep.subr.mxu0 0.0
        %2669 = vmatpush1.msra.mxu0 %v539
        %2670 = vmatprep.subr.mxu0 0.0
        %2671 = vmatpush1.msra.mxu0 %v540
        %2672 = vmatprep.subr.mxu0 0.0
        %2673 = vmatpush1.msra.mxu0 0.0
        %2674 = vmatprep.subr.mxu0 0.0
        %2675 = vmatpush1.msra.mxu0 0.0
        %2676 = vmatprep.subr.mxu0 0.0
        %2677 = vmatpush1.msra.mxu0 0.0
        %2678 = vmatprep.subr.mxu0 0.0
        %2679 = vmatpush1.msra.mxu0 0.0
        %2680 = vmatprep.subr.mxu0 0.0
        %2681 = vmatpush1.msra.mxu0 0.0
        %2682 = vmatprep.subr.mxu0 0.0
        %2683 = vmatpush1.msra.mxu0 0.0
        %2684 = vmatprep.subr.mxu0 0.0
        %2685 = vmatpush1.msra.mxu0 0.0
        %2686 = vmatprep.subr.mxu0 0.0
        %2687 = vmatpush1.msra.mxu0 0.0
        %2688 = vmatprep.subr.mxu0 0.0
        %2689 = vmatpush1.msra.mxu0 0.0
        %2690 = vmatprep.subr.mxu0 0.0
        %2691 = vmatpush1.msra.mxu0 0.0
        %2692 = vmatprep.subr.mxu0 0.0
        %2693 = vmatpush1.msra.mxu0 0.0
        %2694 = vmatprep.subr.mxu0 0.0
        %2695 = vmatpush1.msra.mxu0 0.0
        %2696 = vmatprep.subr.mxu0 0.0
        %2697 = vmatpush1.msra.mxu0 0.0
        %2698 = vmatprep.subr.mxu0 0.0
        %2699 = vmatpush1.msra.mxu0 0.0
        %2700 = vmatprep.subr.mxu0 0.0
        %2701 = vmatpush1.msra.mxu0 0.0
        %2702 = vmatprep.subr.mxu0 0.0
        %2703 = vmatpush1.msra.mxu0 0.0
        %2704 = vmatprep.mubr.f32.mxu0 0.0
        %2705 = vmatmul.mubr.f32.gmra.mrb[0].mxu0 %v1715
        %v2706 = vpop.f32.mrb[0].mxu0
        %v2707 = vadd.f32 0.0, %v2706
        %v2708 = vpop.f32.mrb[0].mxu0
        %2709 = vmatprep.mubr.f32.mxu0 0.0
        %2710 = vmatmul.mubr.f32.gmra.mrb[0].mxu0 %v1717
        %v2711 = vpop.f32.mrb[0].mxu0
        %v2712 = vadd.f32 0.0, %v2711
        %v2713 = vpop.f32.mrb[0].mxu0
        %2714 = vmatprep.mubr.f32.mxu0 0.0
        %2715 = vmatmul.mubr.f32.gmra.mrb[0].mxu0 %v1719
        %v2716 = vpop.f32.mrb[0].mxu0
        %v2717 = vadd.f32 0.0, %v2716
        %v2718 = vpop.f32.mrb[0].mxu0
        %2719 = vmatprep.mubr.f32.mxu0 0.0
        %2720 = vmatmul.mubr.f32.gmra.mrb[0].mxu0 %v1721
        %v2721 = vpop.f32.mrb[0].mxu0
        %v2722 = vadd.f32 0.0, %v2721
        %v2723 = vpop.f32.mrb[0].mxu0
        %2724 = vmatprep.mubr.f32.mxu0 0.0
        %2725 = vmatmul.mubr.f32.gmra.mrb[0].mxu0 %v1723
        %v2726 = vpop.f32.mrb[0].mxu0
        %v2727 = vadd.f32 0.0, %v2726
        %v2728 = vpop.f32.mrb[0].mxu0
        %2729 = vmatprep.mubr.f32.mxu0 0.0
        %2730 = vmatmul.mubr.f32.gmra.mrb[0].mxu0 %v1725
        %v2731 = vpop.f32.mrb[0].mxu0
        %v2732 = vadd.f32 0.0, %v2731
        %v2733 = vpop.f32.mrb[0].mxu0
        %2734 = vmatprep.mubr.f32.mxu0 0.0
        %2735 = vmatmul.mubr.f32.gmra.mrb[0].mxu0 %v1727
        %v2736 = vpop.f32.mrb[0].mxu0
        %v2737 = vadd.f32 0.0, %v2736
        %v2738 = vpop.f32.mrb[0].mxu0
        %2739 = vmatprep.mubr.f32.mxu0 0.0
        %2740 = vmatmul.mubr.f32.gmra.mrb[0].mxu0 %v1729
        %v2741 = vpop.f32.mrb[0].mxu0
        %v2742 = vadd.f32 0.0, %v2741
        %v2743 = vpop.f32.mrb[0].mxu0
        %2744 = vdwg.mxu0
        %2745 = vmatprep.subr.mxu0 0.0
        %2746 = vmatpush1.msra.mxu0 %v541
        %2747 = vmatprep.subr.mxu0 0.0
        %2748 = vmatpush1.msra.mxu0 %v542
        %2749 = vmatprep.subr.mxu0 0.0
        %2750 = vmatpush1.msra.mxu0 %v543
        %2751 = vmatprep.subr.mxu0 0.0
        %2752 = vmatpush1.msra.mxu0 %v544
        %2753 = vmatprep.subr.mxu0 0.0
        %2754 = vmatpush1.msra.mxu0 %v545
        %2755 = vmatprep.subr.mxu0 0.0
        %2756 = vmatpush1.msra.mxu0 %v546
        %2757 = vmatprep.subr.mxu0 0.0
        %2758 = vmatpush1.msra.mxu0 %v547
        %2759 = vmatprep.subr.mxu0 0.0
        %2760 = vmatpush1.msra.mxu0 %v548
        %2761 = vmatprep.subr.mxu0 0.0
        %2762 = vmatpush1.msra.mxu0 %v549
        %2763 = vmatprep.subr.mxu0 0.0
        %2764 = vmatpush1.msra.mxu0 %v550
        %2765 = vmatprep.subr.mxu0 0.0
        %2766 = vmatpush1.msra.mxu0 %v551
        %2767 = vmatprep.subr.mxu0 0.0
        %2768 = vmatpush1.msra.mxu0 %v552
        %2769 = vmatprep.subr.mxu0 0.0
        %2770 = vmatpush1.msra.mxu0 %v553
        %2771 = vmatprep.subr.mxu0 0.0
        %2772 = vmatpush1.msra.mxu0 %v554
        %2773 = vmatprep.subr.mxu0 0.0
        %2774 = vmatpush1.msra.mxu0 %v555
        %2775 = vmatprep.subr.mxu0 0.0
        %2776 = vmatpush1.msra.mxu0 %v556
        %2777 = vmatprep.subr.mxu0 0.0
        %2778 = vmatpush1.msra.mxu0 0.0
        %2779 = vmatprep.subr.mxu0 0.0
        %2780 = vmatpush1.msra.mxu0 0.0
        %2781 = vmatprep.subr.mxu0 0.0
        %2782 = vmatpush1.msra.mxu0 0.0
        %2783 = vmatprep.subr.mxu0 0.0
        %2784 = vmatpush1.msra.mxu0 0.0
        %2785 = vmatprep.subr.mxu0 0.0
        %2786 = vmatpush1.msra.mxu0 0.0
        %2787 = vmatprep.subr.mxu0 0.0
        %2788 = vmatpush1.msra.mxu0 0.0
        %2789 = vmatprep.subr.mxu0 0.0
        %2790 = vmatpush1.msra.mxu0 0.0
        %2791 = vmatprep.subr.mxu0 0.0
        %2792 = vmatpush1.msra.mxu0 0.0
        %2793 = vmatprep.subr.mxu0 0.0
        %2794 = vmatpush1.msra.mxu0 0.0
        %2795 = vmatprep.subr.mxu0 0.0
        %2796 = vmatpush1.msra.mxu0 0.0
        %2797 = vmatprep.subr.mxu0 0.0
        %2798 = vmatpush1.msra.mxu0 0.0
        %2799 = vmatprep.subr.mxu0 0.0
        %2800 = vmatpush1.msra.mxu0 0.0
        %2801 = vmatprep.subr.mxu0 0.0
        %2802 = vmatpush1.msra.mxu0 0.0
        %2803 = vmatprep.subr.mxu0 0.0
        %2804 = vmatpush1.msra.mxu0 0.0
        %2805 = vmatprep.subr.mxu0 0.0
        %2806 = vmatpush1.msra.mxu0 0.0
        %2807 = vmatprep.subr.mxu0 0.0
        %2808 = vmatpush1.msra.mxu0 0.0
        %2809 = vmatprep.mubr.f32.mxu0 0.0
        %2810 = vmatmul.mubr.f32.gmra.mrb[0].mxu0 %v1731
        %v2811 = vpop.f32.mrb[0].mxu0
        %v2812 = vadd.f32 0.0, %v2811
        %v2813 = vpop.f32.mrb[0].mxu0
        %2814 = vmatprep.mubr.f32.mxu0 0.0
        %2815 = vmatmul.mubr.f32.gmra.mrb[0].mxu0 %v1733
        %v2816 = vpop.f32.mrb[0].mxu0
        %v2817 = vadd.f32 0.0, %v2816
        %v2818 = vpop.f32.mrb[0].mxu0
        %2819 = vmatprep.mubr.f32.mxu0 0.0
        %2820 = vmatmul.mubr.f32.gmra.mrb[0].mxu0 %v1735
        %v2821 = vpop.f32.mrb[0].mxu0
        %v2822 = vadd.f32 0.0, %v2821
        %v2823 = vpop.f32.mrb[0].mxu0
        %2824 = vmatprep.mubr.f32.mxu0 0.0
        %2825 = vmatmul.mubr.f32.gmra.mrb[0].mxu0 %v1737
        %v2826 = vpop.f32.mrb[0].mxu0
        %v2827 = vadd.f32 0.0, %v2826
        %v2828 = vpop.f32.mrb[0].mxu0
        %2829 = vmatprep.mubr.f32.mxu0 0.0
        %2830 = vmatmul.mubr.f32.gmra.mrb[0].mxu0 %v1739
        %v2831 = vpop.f32.mrb[0].mxu0
        %v2832 = vadd.f32 0.0, %v2831
        %v2833 = vpop.f32.mrb[0].mxu0
        %2834 = vmatprep.mubr.f32.mxu0 0.0
        %2835 = vmatmul.mubr.f32.gmra.mrb[0].mxu0 %v1741
        %v2836 = vpop.f32.mrb[0].mxu0
        %v2837 = vadd.f32 0.0, %v2836
        %v2838 = vpop.f32.mrb[0].mxu0
        %2839 = vmatprep.mubr.f32.mxu0 0.0
        %2840 = vmatmul.mubr.f32.gmra.mrb[0].mxu0 %v1743
        %v2841 = vpop.f32.mrb[0].mxu0
        %v2842 = vadd.f32 0.0, %v2841
        %v2843 = vpop.f32.mrb[0].mxu0
        %2844 = vmatprep.mubr.f32.mxu0 0.0
        %2845 = vmatmul.mubr.f32.gmra.mrb[0].mxu0 %v1745
        %v2846 = vpop.f32.mrb[0].mxu0
        %v2847 = vadd.f32 0.0, %v2846
        %v2848 = vpop.f32.mrb[0].mxu0
        %2849 = vdwg.mxu0
        %2850 = vmatprep.subr.mxu0 0.0
        %2851 = vmatpush1.msra.mxu0 %v557
        %2852 = vmatprep.subr.mxu0 0.0
        %2853 = vmatpush1.msra.mxu0 %v558
        %2854 = vmatprep.subr.mxu0 0.0
        %2855 = vmatpush1.msra.mxu0 %v559
        %2856 = vmatprep.subr.mxu0 0.0
        %2857 = vmatpush1.msra.mxu0 %v560
        %2858 = vmatprep.subr.mxu0 0.0
        %2859 = vmatpush1.msra.mxu0 %v561
        %2860 = vmatprep.subr.mxu0 0.0
        %2861 = vmatpush1.msra.mxu0 %v562
        %2862 = vmatprep.subr.mxu0 0.0
        %2863 = vmatpush1.msra.mxu0 %v563
        %2864 = vmatprep.subr.mxu0 0.0
        %2865 = vmatpush1.msra.mxu0 %v564
        %2866 = vmatprep.subr.mxu0 0.0
        %2867 = vmatpush1.msra.mxu0 %v565
        %2868 = vmatprep.subr.mxu0 0.0
        %2869 = vmatpush1.msra.mxu0 %v566
        %2870 = vmatprep.subr.mxu0 0.0
        %2871 = vmatpush1.msra.mxu0 %v567
        %2872 = vmatprep.subr.mxu0 0.0
        %2873 = vmatpush1.msra.mxu0 %v568
        %2874 = vmatprep.subr.mxu0 0.0
        %2875 = vmatpush1.msra.mxu0 %v569
        %2876 = vmatprep.subr.mxu0 0.0
        %2877 = vmatpush1.msra.mxu0 %v570
        %2878 = vmatprep.subr.mxu0 0.0
        %2879 = vmatpush1.msra.mxu0 %v571
        %2880 = vmatprep.subr.mxu0 0.0
        %2881 = vmatpush1.msra.mxu0 %v572
        %2882 = vmatprep.subr.mxu0 0.0
        %2883 = vmatpush1.msra.mxu0 0.0
        %2884 = vmatprep.subr.mxu0 0.0
        %2885 = vmatpush1.msra.mxu0 0.0
        %2886 = vmatprep.subr.mxu0 0.0
        %2887 = vmatpush1.msra.mxu0 0.0
        %2888 = vmatprep.subr.mxu0 0.0
        %2889 = vmatpush1.msra.mxu0 0.0
        %2890 = vmatprep.subr.mxu0 0.0
        %2891 = vmatpush1.msra.mxu0 0.0
        %2892 = vmatprep.subr.mxu0 0.0
        %2893 = vmatpush1.msra.mxu0 0.0
        %2894 = vmatprep.subr.mxu0 0.0
        %2895 = vmatpush1.msra.mxu0 0.0
        %2896 = vmatprep.subr.mxu0 0.0
        %2897 = vmatpush1.msra.mxu0 0.0
        %2898 = vmatprep.subr.mxu0 0.0
        %2899 = vmatpush1.msra.mxu0 0.0
        %2900 = vmatprep.subr.mxu0 0.0
        %2901 = vmatpush1.msra.mxu0 0.0
        %2902 = vmatprep.subr.mxu0 0.0
        %2903 = vmatpush1.msra.mxu0 0.0
        %2904 = vmatprep.subr.mxu0 0.0
        %2905 = vmatpush1.msra.mxu0 0.0
        %2906 = vmatprep.subr.mxu0 0.0
        %2907 = vmatpush1.msra.mxu0 0.0
        %2908 = vmatprep.subr.mxu0 0.0
        %2909 = vmatpush1.msra.mxu0 0.0
        %2910 = vmatprep.subr.mxu0 0.0
        %2911 = vmatpush1.msra.mxu0 0.0
        %2912 = vmatprep.subr.mxu0 0.0
        %2913 = vmatpush1.msra.mxu0 0.0
        %2914 = vmatprep.mubr.f32.mxu0 0.0
        %2915 = vmatmul.mubr.f32.gmra.mrb[0].mxu0 %v1747
        %v2916 = vpop.f32.mrb[0].mxu0
        %v2917 = vadd.f32 0.0, %v2916
        %v2918 = vpop.f32.mrb[0].mxu0
        %2919 = vmatprep.mubr.f32.mxu0 0.0
        %2920 = vmatmul.mubr.f32.gmra.mrb[0].mxu0 %v1749
        %v2921 = vpop.f32.mrb[0].mxu0
        %v2922 = vadd.f32 0.0, %v2921
        %v2923 = vpop.f32.mrb[0].mxu0
        %2924 = vmatprep.mubr.f32.mxu0 0.0
        %2925 = vmatmul.mubr.f32.gmra.mrb[0].mxu0 %v1751
        %v2926 = vpop.f32.mrb[0].mxu0
        %v2927 = vadd.f32 0.0, %v2926
        %v2928 = vpop.f32.mrb[0].mxu0
        %2929 = vmatprep.mubr.f32.mxu0 0.0
        %2930 = vmatmul.mubr.f32.gmra.mrb[0].mxu0 %v1753
        %v2931 = vpop.f32.mrb[0].mxu0
        %v2932 = vadd.f32 0.0, %v2931
        %v2933 = vpop.f32.mrb[0].mxu0
        %2934 = vmatprep.mubr.f32.mxu0 0.0
        %2935 = vmatmul.mubr.f32.gmra.mrb[0].mxu0 %v1755
        %v2936 = vpop.f32.mrb[0].mxu0
        %v2937 = vadd.f32 0.0, %v2936
        %v2938 = vpop.f32.mrb[0].mxu0
        %2939 = vmatprep.mubr.f32.mxu0 0.0
        %2940 = vmatmul.mubr.f32.gmra.mrb[0].mxu0 %v1757
        %v2941 = vpop.f32.mrb[0].mxu0
        %v2942 = vadd.f32 0.0, %v2941
        %v2943 = vpop.f32.mrb[0].mxu0
        %2944 = vmatprep.mubr.f32.mxu0 0.0
        %2945 = vmatmul.mubr.f32.gmra.mrb[0].mxu0 %v1759
        %v2946 = vpop.f32.mrb[0].mxu0
        %v2947 = vadd.f32 0.0, %v2946
        %v2948 = vpop.f32.mrb[0].mxu0
        %2949 = vmatprep.mubr.f32.mxu0 0.0
        %2950 = vmatmul.mubr.f32.gmra.mrb[0].mxu0 %v1761
        %v2951 = vpop.f32.mrb[0].mxu0
        %v2952 = vadd.f32 0.0, %v2951
        %v2953 = vpop.f32.mrb[0].mxu0
        %2954 = vdwg.mxu0
        %v2955 = vadd.f32 %v2503, %v2602
        %v2956 = vadd.f32 %v2504, %v2607
        %v2957 = vadd.f32 %v2505, %v2612
        %v2958 = vadd.f32 %v2506, %v2617
        %v2959 = vadd.f32 %v2507, %v2622
        %v2960 = vadd.f32 %v2508, %v2627
        %v2961 = vadd.f32 %v2509, %v2632
        %v2962 = vadd.f32 %v2510, %v2637
        %v2963 = vadd.f32 %v2511, %v2707
        %v2964 = vadd.f32 %v2512, %v2712
        %v2965 = vadd.f32 %v2513, %v2717
        %v2966 = vadd.f32 %v2514, %v2722
        %v2967 = vadd.f32 %v2515, %v2727
        %v2968 = vadd.f32 %v2516, %v2732
        %v2969 = vadd.f32 %v2517, %v2737
        %v2970 = vadd.f32 %v2518, %v2742
        %v2971 = vadd.f32 %v2519, %v2812
        %v2972 = vadd.f32 %v2520, %v2817
        %v2973 = vadd.f32 %v2521, %v2822
        %v2974 = vadd.f32 %v2522, %v2827
        %v2975 = vadd.f32 %v2523, %v2832
        %v2976 = vadd.f32 %v2524, %v2837
        %v2977 = vadd.f32 %v2525, %v2842
        %v2978 = vadd.f32 %v2526, %v2847
        %v2979 = vadd.f32 %v2527, %v2917
        %v2980 = vadd.f32 %v2528, %v2922
        %v2981 = vadd.f32 %v2529, %v2927
        %v2982 = vadd.f32 %v2530, %v2932
        %v2983 = vadd.f32 %v2531, %v2937
        %v2984 = vadd.f32 %v2532, %v2942
        %v2985 = vadd.f32 %v2533, %v2947
        %v2986 = vadd.f32 %v2534, %v2952
        %2987 = vst.msk [vmem:[#allocation4] sm:$0xff] %vm573, %v2955
        %2988 = vst.msk [vmem:[#allocation4 + $0x8] sm:$0xff] %vm573, %v2956
        %2989 = vst.msk [vmem:[#allocation4 + $0x10] sm:$0xff] %vm573, %v2957
        %2990 = vst.msk [vmem:[#allocation4 + $0x18] sm:$0xff] %vm573, %v2958
        %2991 = vst.msk [vmem:[#allocation4 + $0x20] sm:$0xff] %vm573, %v2959
        %2992 = vst.msk [vmem:[#allocation4 + $0x28] sm:$0xff] %vm573, %v2960
        %2993 = vst.msk [vmem:[#allocation4 + $0x30] sm:$0xff] %vm573, %v2961
        %2994 = vst.msk [vmem:[#allocation4 + $0x38] sm:$0xff] %vm573, %v2962
        %2995 = vst.msk [vmem:[#allocation4 + $0x40] sm:$0xff] %vm573, %v2963
        %2996 = vst.msk [vmem:[#allocation4 + $0x48] sm:$0xff] %vm573, %v2964
        %2997 = vst.msk [vmem:[#allocation4 + $0x50] sm:$0xff] %vm573, %v2965
        %2998 = vst.msk [vmem:[#allocation4 + $0x58] sm:$0xff] %vm573, %v2966
        %2999 = vst.msk [vmem:[#allocation4 + $0x60] sm:$0xff] %vm573, %v2967
        %3000 = vst.msk [vmem:[#allocation4 + $0x68] sm:$0xff] %vm573, %v2968
        %3001 = vst.msk [vmem:[#allocation4 + $0x70] sm:$0xff] %vm573, %v2969
        %3002 = vst.msk [vmem:[#allocation4 + $0x78] sm:$0xff] %vm573, %v2970
        %3003 = vst.msk [vmem:[#allocation4 + $0x80] sm:$0xff] %vm573, %v2971
        %3004 = vst.msk [vmem:[#allocation4 + $0x88] sm:$0xff] %vm573, %v2972
        %3005 = vst.msk [vmem:[#allocation4 + $0x90] sm:$0xff] %vm573, %v2973
        %3006 = vst.msk [vmem:[#allocation4 + $0x98] sm:$0xff] %vm573, %v2974
        %3007 = vst.msk [vmem:[#allocation4 + $0xa0] sm:$0xff] %vm573, %v2975
        %3008 = vst.msk [vmem:[#allocation4 + $0xa8] sm:$0xff] %vm573, %v2976
        %3009 = vst.msk [vmem:[#allocation4 + $0xb0] sm:$0xff] %vm573, %v2977
        %3010 = vst.msk [vmem:[#allocation4 + $0xb8] sm:$0xff] %vm573, %v2978
        %3011 = vst.msk [vmem:[#allocation4 + $0xc0] sm:$0xff] %vm573, %v2979
        %3012 = vst.msk [vmem:[#allocation4 + $0xc8] sm:$0xff] %vm573, %v2980
        %3013 = vst.msk [vmem:[#allocation4 + $0xd0] sm:$0xff] %vm573, %v2981
        %3014 = vst.msk [vmem:[#allocation4 + $0xd8] sm:$0xff] %vm573, %v2982
        %3015 = vst.msk [vmem:[#allocation4 + $0xe0] sm:$0xff] %vm573, %v2983
        %3016 = vst.msk [vmem:[#allocation4 + $0xe8] sm:$0xff] %vm573, %v2984
        %3017 = vst.msk [vmem:[#allocation4 + $0xf0] sm:$0xff] %vm573, %v2985
        %3018 = vst.msk [vmem:[#allocation4 + $0xf8] sm:$0xff] %vm573, %v2986
        %3019 = vst.msk [vmem:[#allocation2] sm:$0xff] %vm2278, %v1378
        %3020 = vst.msk [vmem:[#allocation2 + $0x8] sm:$0xff] %vm2278, %v1379
        %3021 = vst.msk [vmem:[#allocation2 + $0x10] sm:$0xff] %vm2278, %v1380
        %3022 = vst.msk [vmem:[#allocation2 + $0x18] sm:$0xff] %vm2278, %v1381
        %3023 = vst.msk [vmem:[#allocation2 + $0x20] sm:$0xff] %vm2278, %v1382
        %3024 = vst.msk [vmem:[#allocation2 + $0x28] sm:$0xff] %vm2278, %v1383
        %3025 = vst.msk [vmem:[#allocation2 + $0x30] sm:$0xff] %vm2278, %v1384
        %3026 = vst.msk [vmem:[#allocation2 + $0x38] sm:$0xff] %vm2278, %v1385
        %3027 = vst.msk [vmem:[#allocation2 + $0x40] sm:$0xff] %vm2278, %v1386
        %3028 = vst.msk [vmem:[#allocation2 + $0x48] sm:$0xff] %vm2278, %v1387
        %3029 = vst.msk [vmem:[#allocation2 + $0x50] sm:$0xff] %vm2278, %v1388
        %3030 = vst.msk [vmem:[#allocation2 + $0x58] sm:$0xff] %vm2278, %v1389
        %3031 = vst.msk [vmem:[#allocation2 + $0x60] sm:$0xff] %vm2278, %v1390
        %3032 = vst.msk [vmem:[#allocation2 + $0x68] sm:$0xff] %vm2278, %v1391
        %3033 = vst.msk [vmem:[#allocation2 + $0x70] sm:$0xff] %vm2278, %v1392
        %3034 = vst.msk [vmem:[#allocation2 + $0x78] sm:$0xff] %vm2278, %v1393
        %3035 = vst.msk [vmem:[#allocation2 + $0x80] sm:$0xff] %vm2278, %v1394
        %3036 = vst.msk [vmem:[#allocation2 + $0x88] sm:$0xff] %vm2278, %v1395
        %3037 = vst.msk [vmem:[#allocation2 + $0x90] sm:$0xff] %vm2278, %v1396
        %3038 = vst.msk [vmem:[#allocation2 + $0x98] sm:$0xff] %vm2278, %v1397
        %3039 = vst.msk [vmem:[#allocation2 + $0xa0] sm:$0xff] %vm2278, %v1398
        %3040 = vst.msk [vmem:[#allocation2 + $0xa8] sm:$0xff] %vm2278, %v1399
        %3041 = vst.msk [vmem:[#allocation2 + $0xb0] sm:$0xff] %vm2278, %v1400
        %3042 = vst.msk [vmem:[#allocation2 + $0xb8] sm:$0xff] %vm2278, %v1401
        %3043 = vst.msk [vmem:[#allocation2 + $0xc0] sm:$0xff] %vm2278, %v1402
        %3044 = vst.msk [vmem:[#allocation2 + $0xc8] sm:$0xff] %vm2278, %v1403
        %3045 = vst.msk [vmem:[#allocation2 + $0xd0] sm:$0xff] %vm2278, %v1404
        %3046 = vst.msk [vmem:[#allocation2 + $0xd8] sm:$0xff] %vm2278, %v1405
        %3047 = vst.msk [vmem:[#allocation2 + $0xe0] sm:$0xff] %vm2278, %v1406
        %3048 = vst.msk [vmem:[#allocation2 + $0xe8] sm:$0xff] %vm2278, %v1407
        %3049 = vst.msk [vmem:[#allocation2 + $0xf0] sm:$0xff] %vm2278, %v1408
        %3050 = vst.msk [vmem:[#allocation2 + $0xf8] sm:$0xff] %vm2278, %v1409
        // Predicated region
        $region37: #{tpu_custom_call.1} parent=31 // pred_check
          %p3051 = pneg %p279
        $region38: #{tpu_custom_call.1} parent=31 // pred_check_branch
          %3053 = sbr.rel (%p3051) target = $region40
        $region39: #{tpu_custom_call.1} parent=31 // pred_region
          %v3054 = vld [vmem:[#allocation3] sm:$0xff]
          %v3055 = vld [vmem:[#allocation3 + $0x8] sm:$0xff]
          %v3056 = vld [vmem:[#allocation3 + $0x10] sm:$0xff]
          %v3057 = vld [vmem:[#allocation3 + $0x18] sm:$0xff]
          %v3058 = vld [vmem:[#allocation3 + $0x20] sm:$0xff]
          %v3059 = vld [vmem:[#allocation3 + $0x28] sm:$0xff]
          %v3060 = vld [vmem:[#allocation3 + $0x30] sm:$0xff]
          %v3061 = vld [vmem:[#allocation3 + $0x38] sm:$0xff]
          %v3062 = vld [vmem:[#allocation3 + $0x40] sm:$0xff]
          %v3063 = vld [vmem:[#allocation3 + $0x48] sm:$0xff]
          %v3064 = vld [vmem:[#allocation3 + $0x50] sm:$0xff]
          %v3065 = vld [vmem:[#allocation3 + $0x58] sm:$0xff]
          %v3066 = vld [vmem:[#allocation3 + $0x60] sm:$0xff]
          %v3067 = vld [vmem:[#allocation3 + $0x68] sm:$0xff]
          %v3068 = vld [vmem:[#allocation3 + $0x70] sm:$0xff]
          %v3069 = vld [vmem:[#allocation3 + $0x78] sm:$0xff]
          %v3070 = vld [vmem:[#allocation3 + $0x80] sm:$0xff]
          %v3071 = vld [vmem:[#allocation3 + $0x88] sm:$0xff]
          %v3072 = vld [vmem:[#allocation3 + $0x90] sm:$0xff]
          %v3073 = vld [vmem:[#allocation3 + $0x98] sm:$0xff]
          %v3074 = vld [vmem:[#allocation3 + $0xa0] sm:$0xff]
          %v3075 = vld [vmem:[#allocation3 + $0xa8] sm:$0xff]
          %v3076 = vld [vmem:[#allocation3 + $0xb0] sm:$0xff]
          %v3077 = vld [vmem:[#allocation3 + $0xb8] sm:$0xff]
          %v3078 = vld [vmem:[#allocation3 + $0xc0] sm:$0xff]
          %v3079 = vld [vmem:[#allocation3 + $0xc8] sm:$0xff]
          %v3080 = vld [vmem:[#allocation3 + $0xd0] sm:$0xff]
          %v3081 = vld [vmem:[#allocation3 + $0xd8] sm:$0xff]
          %v3082 = vld [vmem:[#allocation3 + $0xe0] sm:$0xff]
          %v3083 = vld [vmem:[#allocation3 + $0xe8] sm:$0xff]
          %v3084 = vld [vmem:[#allocation3 + $0xf0] sm:$0xff]
          %v3085 = vld [vmem:[#allocation3 + $0xf8] sm:$0xff]
          %v3086 = vrcp.pop %v3054
          %v3087 = vmul.f32 1.0, %v3086
          %v3088 = vrcp.pop %v3055
          %v3089 = vmul.f32 1.0, %v3088
          %v3090 = vrcp.pop %v3056
          %v3091 = vmul.f32 1.0, %v3090
          %v3092 = vrcp.pop %v3057
          %v3093 = vmul.f32 1.0, %v3092
          %v3094 = vrcp.pop %v3058
          %v3095 = vmul.f32 1.0, %v3094
          %v3096 = vrcp.pop %v3059
          %v3097 = vmul.f32 1.0, %v3096
          %v3098 = vrcp.pop %v3060
          %v3099 = vmul.f32 1.0, %v3098
          %v3100 = vrcp.pop %v3061
          %v3101 = vmul.f32 1.0, %v3100
          %v3102 = vrcp.pop %v3062
          %v3103 = vmul.f32 1.0, %v3102
          %v3104 = vrcp.pop %v3063
          %v3105 = vmul.f32 1.0, %v3104
          %v3106 = vrcp.pop %v3064
          %v3107 = vmul.f32 1.0, %v3106
          %v3108 = vrcp.pop %v3065
          %v3109 = vmul.f32 1.0, %v3108
          %v3110 = vrcp.pop %v3066
          %v3111 = vmul.f32 1.0, %v3110
          %v3112 = vrcp.pop %v3067
          %v3113 = vmul.f32 1.0, %v3112
          %v3114 = vrcp.pop %v3068
          %v3115 = vmul.f32 1.0, %v3114
          %v3116 = vrcp.pop %v3069
          %v3117 = vmul.f32 1.0, %v3116
          %v3118 = vrcp.pop %v3070
          %v3119 = vmul.f32 1.0, %v3118
          %v3120 = vrcp.pop %v3071
          %v3121 = vmul.f32 1.0, %v3120
          %v3122 = vrcp.pop %v3072
          %v3123 = vmul.f32 1.0, %v3122
          %v3124 = vrcp.pop %v3073
          %v3125 = vmul.f32 1.0, %v3124
          %v3126 = vrcp.pop %v3074
          %v3127 = vmul.f32 1.0, %v3126
          %v3128 = vrcp.pop %v3075
          %v3129 = vmul.f32 1.0, %v3128
          %v3130 = vrcp.pop %v3076
          %v3131 = vmul.f32 1.0, %v3130
          %v3132 = vrcp.pop %v3077
          %v3133 = vmul.f32 1.0, %v3132
          %v3134 = vrcp.pop %v3078
          %v3135 = vmul.f32 1.0, %v3134
          %v3136 = vrcp.pop %v3079
          %v3137 = vmul.f32 1.0, %v3136
          %v3138 = vrcp.pop %v3080
          %v3139 = vmul.f32 1.0, %v3138
          %v3140 = vrcp.pop %v3081
          %v3141 = vmul.f32 1.0, %v3140
          %v3142 = vrcp.pop %v3082
          %v3143 = vmul.f32 1.0, %v3142
          %v3144 = vrcp.pop %v3083
          %v3145 = vmul.f32 1.0, %v3144
          %v3146 = vrcp.pop %v3084
          %v3147 = vmul.f32 1.0, %v3146
          %v3148 = vrcp.pop %v3085
          %v3149 = vmul.f32 1.0, %v3148
          %v3150 = vld [vmem:[#allocation4] sm:$0xff]
          %v3151 = vld [vmem:[#allocation4 + $0x8] sm:$0xff]
          %v3152 = vld [vmem:[#allocation4 + $0x10] sm:$0xff]
          %v3153 = vld [vmem:[#allocation4 + $0x18] sm:$0xff]
          %v3154 = vld [vmem:[#allocation4 + $0x20] sm:$0xff]
          %v3155 = vld [vmem:[#allocation4 + $0x28] sm:$0xff]
          %v3156 = vld [vmem:[#allocation4 + $0x30] sm:$0xff]
          %v3157 = vld [vmem:[#allocation4 + $0x38] sm:$0xff]
          %v3158 = vld [vmem:[#allocation4 + $0x40] sm:$0xff]
          %v3159 = vld [vmem:[#allocation4 + $0x48] sm:$0xff]
          %v3160 = vld [vmem:[#allocation4 + $0x50] sm:$0xff]
          %v3161 = vld [vmem:[#allocation4 + $0x58] sm:$0xff]
          %v3162 = vld [vmem:[#allocation4 + $0x60] sm:$0xff]
          %v3163 = vld [vmem:[#allocation4 + $0x68] sm:$0xff]
          %v3164 = vld [vmem:[#allocation4 + $0x70] sm:$0xff]
          %v3165 = vld [vmem:[#allocation4 + $0x78] sm:$0xff]
          %v3166 = vld [vmem:[#allocation4 + $0x80] sm:$0xff]
          %v3167 = vld [vmem:[#allocation4 + $0x88] sm:$0xff]
          %v3168 = vld [vmem:[#allocation4 + $0x90] sm:$0xff]
          %v3169 = vld [vmem:[#allocation4 + $0x98] sm:$0xff]
          %v3170 = vld [vmem:[#allocation4 + $0xa0] sm:$0xff]
          %v3171 = vld [vmem:[#allocation4 + $0xa8] sm:$0xff]
          %v3172 = vld [vmem:[#allocation4 + $0xb0] sm:$0xff]
          %v3173 = vld [vmem:[#allocation4 + $0xb8] sm:$0xff]
          %v3174 = vld [vmem:[#allocation4 + $0xc0] sm:$0xff]
          %v3175 = vld [vmem:[#allocation4 + $0xc8] sm:$0xff]
          %v3176 = vld [vmem:[#allocation4 + $0xd0] sm:$0xff]
          %v3177 = vld [vmem:[#allocation4 + $0xd8] sm:$0xff]
          %v3178 = vld [vmem:[#allocation4 + $0xe0] sm:$0xff]
          %v3179 = vld [vmem:[#allocation4 + $0xe8] sm:$0xff]
          %v3180 = vld [vmem:[#allocation4 + $0xf0] sm:$0xff]
          %v3181 = vld [vmem:[#allocation4 + $0xf8] sm:$0xff]
          %3183 = vset.pattern.permute.xlu0 0
          %3184 = vperm.xlu0 %3183, %v3087
          %v3185 = vpop.permute.xlu0 %3184
          %3188 = vset.pattern.permute.xlu0 0
          %3189 = vperm.xlu0 %3188, %v3089
          %v3190 = vpop.permute.xlu0 %3189
          %3193 = vset.pattern.permute.xlu0 0
          %3194 = vperm.xlu0 %3193, %v3091
          %v3195 = vpop.permute.xlu0 %3194
          %3198 = vset.pattern.permute.xlu0 0
          %3199 = vperm.xlu0 %3198, %v3093
          %v3200 = vpop.permute.xlu0 %3199
          %3203 = vset.pattern.permute.xlu0 0
          %3204 = vperm.xlu0 %3203, %v3095
          %v3205 = vpop.permute.xlu0 %3204
          %3208 = vset.pattern.permute.xlu0 0
          %3209 = vperm.xlu0 %3208, %v3097
          %v3210 = vpop.permute.xlu0 %3209
          %3213 = vset.pattern.permute.xlu0 0
          %3214 = vperm.xlu0 %3213, %v3099
          %v3215 = vpop.permute.xlu0 %3214
          %3218 = vset.pattern.permute.xlu0 0
          %3219 = vperm.xlu0 %3218, %v3101
          %v3220 = vpop.permute.xlu0 %3219
          %3223 = vset.pattern.permute.xlu0 0
          %3224 = vperm.xlu0 %3223, %v3103
          %v3225 = vpop.permute.xlu0 %3224
          %3228 = vset.pattern.permute.xlu0 0
          %3229 = vperm.xlu0 %3228, %v3105
          %v3230 = vpop.permute.xlu0 %3229
          %3233 = vset.pattern.permute.xlu0 0
          %3234 = vperm.xlu0 %3233, %v3107
          %v3235 = vpop.permute.xlu0 %3234
          %3238 = vset.pattern.permute.xlu0 0
          %3239 = vperm.xlu0 %3238, %v3109
          %v3240 = vpop.permute.xlu0 %3239
          %3243 = vset.pattern.permute.xlu0 0
          %3244 = vperm.xlu0 %3243, %v3111
          %v3245 = vpop.permute.xlu0 %3244
          %3248 = vset.pattern.permute.xlu0 0
          %3249 = vperm.xlu0 %3248, %v3113
          %v3250 = vpop.permute.xlu0 %3249
          %3253 = vset.pattern.permute.xlu0 0
          %3254 = vperm.xlu0 %3253, %v3115
          %v3255 = vpop.permute.xlu0 %3254
          %3258 = vset.pattern.permute.xlu0 0
          %3259 = vperm.xlu0 %3258, %v3117
          %v3260 = vpop.permute.xlu0 %3259
          %3263 = vset.pattern.permute.xlu0 0
          %3264 = vperm.xlu0 %3263, %v3119
          %v3265 = vpop.permute.xlu0 %3264
          %3268 = vset.pattern.permute.xlu0 0
          %3269 = vperm.xlu0 %3268, %v3121
          %v3270 = vpop.permute.xlu0 %3269
          %3273 = vset.pattern.permute.xlu0 0
          %3274 = vperm.xlu0 %3273, %v3123
          %v3275 = vpop.permute.xlu0 %3274
          %3278 = vset.pattern.permute.xlu0 0
          %3279 = vperm.xlu0 %3278, %v3125
          %v3280 = vpop.permute.xlu0 %3279
          %3283 = vset.pattern.permute.xlu0 0
          %3284 = vperm.xlu0 %3283, %v3127
          %v3285 = vpop.permute.xlu0 %3284
          %3288 = vset.pattern.permute.xlu0 0
          %3289 = vperm.xlu0 %3288, %v3129
          %v3290 = vpop.permute.xlu0 %3289
          %3293 = vset.pattern.permute.xlu0 0
          %3294 = vperm.xlu0 %3293, %v3131
          %v3295 = vpop.permute.xlu0 %3294
          %3298 = vset.pattern.permute.xlu0 0
          %3299 = vperm.xlu0 %3298, %v3133
          %v3300 = vpop.permute.xlu0 %3299
          %3303 = vset.pattern.permute.xlu0 0
          %3304 = vperm.xlu0 %3303, %v3135
          %v3305 = vpop.permute.xlu0 %3304
          %3308 = vset.pattern.permute.xlu0 0
          %3309 = vperm.xlu0 %3308, %v3137
          %v3310 = vpop.permute.xlu0 %3309
          %3313 = vset.pattern.permute.xlu0 0
          %3314 = vperm.xlu0 %3313, %v3139
          %v3315 = vpop.permute.xlu0 %3314
          %3318 = vset.pattern.permute.xlu0 0
          %3319 = vperm.xlu0 %3318, %v3141
          %v3320 = vpop.permute.xlu0 %3319
          %3323 = vset.pattern.permute.xlu0 0
          %3324 = vperm.xlu0 %3323, %v3143
          %v3325 = vpop.permute.xlu0 %3324
          %3328 = vset.pattern.permute.xlu0 0
          %3329 = vperm.xlu0 %3328, %v3145
          %v3330 = vpop.permute.xlu0 %3329
          %3333 = vset.pattern.permute.xlu0 0
          %3334 = vperm.xlu0 %3333, %v3147
          %v3335 = vpop.permute.xlu0 %3334
          %3338 = vset.pattern.permute.xlu0 0
          %3339 = vperm.xlu0 %3338, %v3149
          %v3340 = vpop.permute.xlu0 %3339
          %v3342 = vmul.f32 %v3150, %v3185
          %v3343 = vmul.f32 %v3151, %v3190
          %v3344 = vmul.f32 %v3152, %v3195
          %v3345 = vmul.f32 %v3153, %v3200
          %v3346 = vmul.f32 %v3154, %v3205
          %v3347 = vmul.f32 %v3155, %v3210
          %v3348 = vmul.f32 %v3156, %v3215
          %v3349 = vmul.f32 %v3157, %v3220
          %v3350 = vmul.f32 %v3158, %v3225
          %v3351 = vmul.f32 %v3159, %v3230
          %v3352 = vmul.f32 %v3160, %v3235
          %v3353 = vmul.f32 %v3161, %v3240
          %v3354 = vmul.f32 %v3162, %v3245
          %v3355 = vmul.f32 %v3163, %v3250
          %v3356 = vmul.f32 %v3164, %v3255
          %v3357 = vmul.f32 %v3165, %v3260
          %v3358 = vmul.f32 %v3166, %v3265
          %v3359 = vmul.f32 %v3167, %v3270
          %v3360 = vmul.f32 %v3168, %v3275
          %v3361 = vmul.f32 %v3169, %v3280
          %v3362 = vmul.f32 %v3170, %v3285
          %v3363 = vmul.f32 %v3171, %v3290
          %v3364 = vmul.f32 %v3172, %v3295
          %v3365 = vmul.f32 %v3173, %v3300
          %v3366 = vmul.f32 %v3174, %v3305
          %v3367 = vmul.f32 %v3175, %v3310
          %v3368 = vmul.f32 %v3176, %v3315
          %v3369 = vmul.f32 %v3177, %v3320
          %v3370 = vmul.f32 %v3178, %v3325
          %v3371 = vmul.f32 %v3179, %v3330
          %v3372 = vmul.f32 %v3180, %v3335
          %v3373 = vmul.f32 %v3181, %v3340
          %3382 = vrot.lane.b32.xlu0 %v3350, 32
          %v3383 = vpop.permute.xlu0 %3382
          %3384 = vrot.lane.b32.xlu0 %v3351, 32
          %v3385 = vpop.permute.xlu0 %3384
          %3386 = vrot.lane.b32.xlu0 %v3352, 32
          %v3387 = vpop.permute.xlu0 %3386
          %3388 = vrot.lane.b32.xlu0 %v3353, 32
          %v3389 = vpop.permute.xlu0 %3388
          %3390 = vrot.lane.b32.xlu0 %v3354, 32
          %v3391 = vpop.permute.xlu0 %3390
          %3392 = vrot.lane.b32.xlu0 %v3355, 32
          %v3393 = vpop.permute.xlu0 %3392
          %3394 = vrot.lane.b32.xlu0 %v3356, 32
          %v3395 = vpop.permute.xlu0 %3394
          %3396 = vrot.lane.b32.xlu0 %v3357, 32
          %v3397 = vpop.permute.xlu0 %3396
          %3414 = vrot.lane.b32.xlu0 %v3358, 64
          %v3415 = vpop.permute.xlu0 %3414
          %3416 = vrot.lane.b32.xlu0 %v3359, 64
          %v3417 = vpop.permute.xlu0 %3416
          %3418 = vrot.lane.b32.xlu0 %v3360, 64
          %v3419 = vpop.permute.xlu0 %3418
          %3420 = vrot.lane.b32.xlu0 %v3361, 64
          %v3421 = vpop.permute.xlu0 %3420
          %3422 = vrot.lane.b32.xlu0 %v3362, 64
          %v3423 = vpop.permute.xlu0 %3422
          %3424 = vrot.lane.b32.xlu0 %v3363, 64
          %v3425 = vpop.permute.xlu0 %3424
          %3426 = vrot.lane.b32.xlu0 %v3364, 64
          %v3427 = vpop.permute.xlu0 %3426
          %3428 = vrot.lane.b32.xlu0 %v3365, 64
          %v3429 = vpop.permute.xlu0 %3428
          %3446 = vrot.lane.b32.xlu0 %v3366, 96
          %v3447 = vpop.permute.xlu0 %3446
          %3448 = vrot.lane.b32.xlu0 %v3367, 96
          %v3449 = vpop.permute.xlu0 %3448
          %3450 = vrot.lane.b32.xlu0 %v3368, 96
          %v3451 = vpop.permute.xlu0 %3450
          %3452 = vrot.lane.b32.xlu0 %v3369, 96
          %v3453 = vpop.permute.xlu0 %3452
          %3454 = vrot.lane.b32.xlu0 %v3370, 96
          %v3455 = vpop.permute.xlu0 %3454
          %3456 = vrot.lane.b32.xlu0 %v3371, 96
          %v3457 = vpop.permute.xlu0 %3456
          %3458 = vrot.lane.b32.xlu0 %v3372, 96
          %v3459 = vpop.permute.xlu0 %3458
          %3460 = vrot.lane.b32.xlu0 %v3373, 96
          %v3461 = vpop.permute.xlu0 %3460
          %v3470 = vsel %vm573, %v3342, %v3383
          %v3471 = vsel %vm573, %v3343, %v3385
          %v3472 = vsel %vm573, %v3344, %v3387
          %v3473 = vsel %vm573, %v3345, %v3389
          %v3474 = vsel %vm573, %v3346, %v3391
          %v3475 = vsel %vm573, %v3347, %v3393
          %v3476 = vsel %vm573, %v3348, %v3395
          %v3477 = vsel %vm573, %v3349, %v3397
          %vm3478 = vcmask 523264
          %v3479 = vsel %vm3478, %v3470, %v3415
          %v3480 = vsel %vm3478, %v3471, %v3417
          %v3481 = vsel %vm3478, %v3472, %v3419
          %v3482 = vsel %vm3478, %v3473, %v3421
          %v3483 = vsel %vm3478, %v3474, %v3423
          %v3484 = vsel %vm3478, %v3475, %v3425
          %v3485 = vsel %vm3478, %v3476, %v3427
          %v3486 = vsel %vm3478, %v3477, %v3429
          %vm3487 = vcmask 785408
          %v3488 = vsel %vm3487, %v3479, %v3447
          %v3489 = vsel %vm3487, %v3480, %v3449
          %v3490 = vsel %vm3487, %v3481, %v3451
          %v3491 = vsel %vm3487, %v3482, %v3453
          %v3492 = vsel %vm3487, %v3483, %v3455
          %v3493 = vsel %vm3487, %v3484, %v3457
          %v3494 = vsel %vm3487, %v3485, %v3459
          %v3495 = vsel %vm3487, %v3486, %v3461
          %3496 = vst [vmem:[%s247] sm:$0xff] %v3488
          %3497 = vst [vmem:[%s247 + $0x8] sm:$0xff] %v3489
          %3498 = vst [vmem:[%s247 + $0x10] sm:$0xff] %v3490
          %3499 = vst [vmem:[%s247 + $0x18] sm:$0xff] %v3491
          %3500 = vst [vmem:[%s247 + $0x20] sm:$0xff] %v3492
          %3501 = vst [vmem:[%s247 + $0x28] sm:$0xff] %v3493
          %3502 = vst [vmem:[%s247 + $0x30] sm:$0xff] %v3494
          %3503 = vst [vmem:[%s247 + $0x38] sm:$0xff] %v3495
        $region40: #{tpu_custom_call.1} parent=31 // pred_fallthru
          _
        %s3504 = sand.u32 %s130, 1
        %s3505 = scalar_lea.sflag [#allocation6], %s3504
        %s3506 = sand.u32 %s130, 1
        %s3507 = smul.addr %s3506, 64
        %s3508 = scalar_lea.vmem [#allocation5], %s3507
        // Predicated region
        $region41: #{tpu_custom_call.1} parent=31 // pred_check
          %p3509 = pneg %p140
        $region42: #{tpu_custom_call.1} parent=31 // pred_check_branch
          %3511 = sbr.rel (%p3509) target = $region44
        $region43: #{tpu_custom_call.1} parent=31 // pred_region
          %s3512 = smul.u32 8, %s23
          %s3514 = ssub.s32 1024, 1024
          %3515 = vsyncadd %s3505, %s3514
          %s3516 = smul.addr %s22, 8
          %s3517 = sadd.s32 %s3512, %s3516
          %s3518 = smul.addr %s3517, 128
          %s3519 = scalar_lea.hbm %s3, %s3518
          %s3520 = sshll.u32 %s3508, 4
          %s3521 = int_to_ptr.vmem [resolvable:$true] %s3520
          %3526 = dma.vmem_to_hbm [thread:$0]  %s3521, 1024, %s3519, %s3505, 128, 128, 8
        $region44: #{tpu_custom_call.1} parent=31 // pred_fallthru
          _
      $region32: #{tpu_custom_call.1} parent=5 // pred_fallthru
        _
      %p3527 = scmp.le.s32.totalorder 2, %s12
      // Predicated region
      $region45: #{tpu_custom_call.1} parent=5 // pred_check
        %p3528 = pneg %p3527
      $region46: #{tpu_custom_call.1} parent=5 // pred_check_branch
        %3530 = sbr.rel (%p3528) target = $region48
      $region47: #{tpu_custom_call.1} parent=5 // pred_region
        %s3531 = ssub.s32 %s12, 2
        // Predicated region
        $region49: #{tpu_custom_call.1} parent=47 // pred_check
          %p3532 = pneg %p146
        $region50: #{tpu_custom_call.1} parent=47 // pred_check_branch
          %3534 = sbr.rel (%p3532) target = $region52
        $region51: #{tpu_custom_call.1} parent=47 // pred_region
          %s3535 = sand.u32 %s131, 1
          %s3536 = scalar_lea.sflag [#allocation6], %s3535
          %s3537 = sand.u32 %s131, 1
          %s3538 = smul.addr %s3537, 64
          %s3539 = scalar_lea.vmem [#allocation5], %s3538
          %3540 = dma.done %s3536, 1024
        $region52: #{tpu_custom_call.1} parent=47 // pred_fallthru
          _
      $region48: #{tpu_custom_call.1} parent=5 // pred_fallthru
        _
    $region6: #{tpu_custom_call.1} parent=1 // loop_footer
      %s16 = sadd.s32 1, %s12
    $region7: #{tpu_custom_call.1} parent=1 // loop_footer_branch
      %11 = sbr.rel target = $region3
    $region8: #{tpu_custom_call.1} parent=1 // loop_exit
      _
    %3541 = vsyncpa [#allocation6], 1
    %s3542 = scalar_lea.sflag [#allocation6], 1
    %3543 = vsyncpa %s3542, 1

</llo_original>
